<compile_context>
chip_gen: v7x
topology: tpu7x:2x2x1
jax: 0.10.0
libtpu: 0.0.40
codegen_flags: <defaults>
</compile_context>

<pallas_src>
import math
import functools

import jax
import jax.numpy as jnp
from jax.experimental import pallas as pl
from jax.experimental.pallas import tpu as pltpu


def _round_up(x, m):
    return ((x + m - 1) // m) * m


# ------------------- fused conv3x3 + bias + channel-stats -------------------

def _conv3x3_bias_stats_kernel(x_ref, w_ref, b_ref,
                               y_ref, ssum_ref, ssq_ref,
                               *, H, W, Cin, Cout):
    """One padded NHWC image per grid step.

    x_ref : (1, H+2, W+2, Cin)  zero-padded input tile (VMEM)
    w_ref : (9, Cin, Cout)      packed taps, tap index t = dy*3 + dx
    b_ref : (1, Cout)           conv bias
    y_ref : (1, H*W, Cout)      conv(+bias) output (pre-BN), flat spatial
    ssum_ref/ssq_ref : (1, 1, Cout) per-image channel sum / sum of squares
    """
    acc = jnp.zeros((H * W, Cout), jnp.float32)
    for dy in range(3):
        for dx in range(3):
            t = dy * 3 + dx
            # im2col-in-kernel: shifted static window of the padded VMEM tile.
            patch = x_ref[0, dy:dy + H, dx:dx + W, :].reshape(H * W, Cin)
            acc = acc + jnp.dot(patch, w_ref[t],
                                preferred_element_type=jnp.float32)
    y = acc + b_ref[...]                          # (H*W, Cout) + (1, Cout)
    ssum_ref[...] = jnp.sum(y, axis=0, keepdims=True).reshape(1, 1, Cout)
    ssq_ref[...] = jnp.sum(y * y, axis=0, keepdims=True).reshape(1, 1, Cout)
    y_ref[...] = y.reshape(1, H * W, Cout)


def conv3x3_bias_stats(xp_nhwc, w_packed, bias_row):
    """xp_nhwc: (N, H+2, W+2, Cin) already zero-padded.  Returns
    (y (N, H*W, Cout), per-image channel sums (N, Cout), sumsq (N, Cout))."""
    N, Hp2, Wp2, Cin = xp_nhwc.shape
    H, W = Hp2 - 2, Wp2 - 2
    _, _, Cout = w_packed.shape

    kern = functools.partial(_conv3x3_bias_stats_kernel,
                             H=H, W=W, Cin=Cin, Cout=Cout)
    flops = 2 * N * H * W * 9 * Cin * Cout
    bytes_accessed = 4 * (xp_nhwc.size + w_packed.size
                          + N * H * W * Cout + 2 * N * Cout)

    # TODO(synk): for large H*W a row-tiled variant with a 1-row halo (manual
    # DMA) would be needed; at these spatial sizes one image fits VMEM easily.
    y, ssum, ssq = pl.pallas_call(
        kern,
        out_shape=(
            jax.ShapeDtypeStruct((N, H * W, Cout), jnp.float32),
            jax.ShapeDtypeStruct((N, 1, Cout), jnp.float32),
            jax.ShapeDtypeStruct((N, 1, Cout), jnp.float32),
        ),
        grid=(N,),
        in_specs=[
            pl.BlockSpec((1, Hp2, Wp2, Cin), lambda n: (n, 0, 0, 0)),
            pl.BlockSpec((9, Cin, Cout), lambda n: (0, 0, 0)),
            pl.BlockSpec((1, Cout), lambda n: (0, 0)),
        ],
        out_specs=(
            pl.BlockSpec((1, H * W, Cout), lambda n: (n, 0, 0)),
            pl.BlockSpec((1, 1, Cout), lambda n: (n, 0, 0)),
            pl.BlockSpec((1, 1, Cout), lambda n: (n, 0, 0)),
        ),
        compiler_params=pltpu.CompilerParams(
            dimension_semantics=("parallel",)),
        cost_estimate=pl.CostEstimate(flops=flops, transcendentals=0,
                                      bytes_accessed=bytes_accessed),
    )(xp_nhwc, w_packed, bias_row)
    return y, ssum[:, 0, :], ssq[:, 0, :]


# -------------------------- fused BN-affine + ReLU --------------------------

def _affine_relu_kernel(x_ref, s_ref, t_ref, o_ref):
    o_ref[...] = jnp.maximum(x_ref[...] * s_ref[...] + t_ref[...], 0.0)


def affine_relu_rows(y_rows, scale, shift, tile_rows=1024, max_lane=512):
    """relu(y * scale + shift); y_rows is (R, C), per-channel scale/shift (C,).

    Lane-dense repack: fold m consecutive rows into one row of width m*C
    (a multiple of 128) and tile scale/shift to match, so the kernel's
    loads/stores are unmasked full-lane vld/vst.  Falls back to m=1 for
    awkward channel counts.  All reshapes/pads happen wrapper-side in XLA.
    """
    R, C = y_rows.shape
    m = 128 // math.gcd(C, 128)
    if m * C > max_lane:
        m = 1
    L = m * C

    Rm = _round_up(R, m)
    if Rm != R:
        y_rows = jnp.pad(y_rows, ((0, Rm - R), (0, 0)))
    R2 = Rm // m
    y2 = y_rows.reshape(R2, L)

    tr = min(tile_rows, _round_up(R2, 8))
    R2p = _round_up(R2, tr)
    if R2p != R2:
        y2 = jnp.pad(y2, ((0, R2p - R2), (0, 0)))

    out = pl.pallas_call(
        _affine_relu_kernel,
        out_shape=jax.ShapeDtypeStruct((R2p, L), jnp.float32),
        grid=(R2p // tr,),
        in_specs=[
            pl.BlockSpec((tr, L), lambda i: (i, 0)),
            pl.BlockSpec((1, L), lambda i: (0, 0)),
            pl.BlockSpec((1, L), lambda i: (0, 0)),
        ],
        out_specs=pl.BlockSpec((tr, L), lambda i: (i, 0)),
        compiler_params=pltpu.CompilerParams(
            dimension_semantics=("parallel",)),
    )(y2, jnp.tile(scale, m).reshape(1, L), jnp.tile(shift, m).reshape(1, L))
    return out[:R2].reshape(Rm, C)[:R]


# ------------------------------- parameters -------------------------------

def init_params(key, in_ch, out_ch):
    """Matches nn.Conv2d default init + fresh BatchNorm2d; weights are packed
    once here into the (9, Cin, Cout) layout the kernel consumes."""
    fan_in = in_ch * 9
    bound = 1.0 / math.sqrt(fan_in)
    kw, kb = jax.random.split(key)
    w_oihw = jax.random.uniform(kw, (out_ch, in_ch, 3, 3), jnp.float32,
                                -bound, bound)
    bias = jax.random.uniform(kb, (out_ch,), jnp.float32, -bound, bound)
    # (Cout, Cin, kh, kw) -> (kh, kw, Cin, Cout) -> (9, Cin, Cout)
    w_packed = jnp.transpose(w_oihw, (2, 3, 1, 0)).reshape(9, in_ch, out_ch)
    return {
        "w_packed": w_packed,
        "bias_row": bias.reshape(1, out_ch),
        "gamma": jnp.ones((out_ch,), jnp.float32),
        "beta": jnp.zeros((out_ch,), jnp.float32),
    }


# --------------------------------- forward ---------------------------------

def conv_bn_relu_forward(params, x_nchw, eps=1e-5):
    """ConvBNBlock.forward: conv -> BN (training-mode batch stats) -> ReLU."""
    # NCHW <-> NHWC conversion only at the module boundary.
    x = jnp.transpose(x_nchw, (0, 2, 3, 1))
    N, H, W, _ = x.shape
    Cout = params["w_packed"].shape[-1]
    xp = jnp.pad(x, ((0, 0), (1, 1), (1, 1), (0, 0)))

    y, ssum, ssq = conv3x3_bias_stats(xp, params["w_packed"],
                                      params["bias_row"])

    # Tiny O(N*Cout) reduction + BN fold done in plain JAX.
    cnt = float(N * H * W)
    mean = jnp.sum(ssum, axis=0) / cnt
    var = jnp.maximum(jnp.sum(ssq, axis=0) / cnt - mean * mean, 0.0)  # biased
    scale = params["gamma"] * jax.lax.rsqrt(var + eps)
    shift = params["beta"] - mean * scale
    # TODO(synk): nn.BatchNorm2d's running_mean/var update is a training-time
    # buffer side effect and does not affect the forward output; omitted.

    out_rows = affine_relu_rows(y.reshape(N * H * W, Cout), scale, shift)
    out = out_rows.reshape(N, H, W, Cout)
    return jnp.transpose(out, (0, 3, 1, 2))


# -------------------------- pure-JAX reference --------------------------

def reference_forward(params, x_nchw, eps=1e-5):
    nine, cin, cout = params["w_packed"].shape
    w_oihw = jnp.transpose(params["w_packed"].reshape(3, 3, cin, cout),
                           (3, 2, 0, 1))
    y = jax.lax.conv_general_dilated(
        x_nchw, w_oihw, window_strides=(1, 1), padding=((1, 1), (1, 1)),
        dimension_numbers=("NCHW", "OIHW", "NCHW"),
        precision=jax.lax.Precision.HIGHEST)
    y = y + params["bias_row"][0][None, :, None, None]
    mean = jnp.mean(y, axis=(0, 2, 3), keepdims=True)
    var = jnp.mean((y - mean) ** 2, axis=(0, 2, 3), keepdims=True)
    yn = (y - mean) * jax.lax.rsqrt(var + eps)
    yn = yn * params["gamma"][None, :, None, None] \
        + params["beta"][None, :, None, None]
    return jnp.maximum(yn, 0.0)


if __name__ == "__main__":
    key = jax.random.PRNGKey(0)
    kp, kx = jax.random.split(key)
    B, C_IN, C_OUT, H, W = 2, 32, 64, 16, 16

    params = init_params(kp, C_IN, C_OUT)
    x = jax.random.normal(kx, (B, C_IN, H, W), jnp.float32)

    fwd = jax.jit(conv_bn_relu_forward)
    out = fwd(params, x)
    jax.block_until_ready(out)

    assert out.shape == (B, C_OUT, H, W), out.shape
    assert bool(jnp.all(jnp.isfinite(out)))
    assert bool(jnp.all(out >= 0.0))  # ReLU

    ref = reference_forward(params, x)
    max_diff = float(jnp.max(jnp.abs(out - ref)))
    assert max_diff < 1e-3, f"mismatch vs reference: max|diff|={max_diff}"

    print("KERNEL_OK")
</pallas_src>

<mosaic_0001>
module attributes {stable_mosaic.version = 11 : i64} {
  func.func @_conv3x3_bias_stats_kernel(%arg0: i32, %arg1: memref<1x18x18x32xf32, #tpu.memory_space<vmem>>, %arg2: memref<9x32x64xf32, #tpu.memory_space<vmem>>, %arg3: memref<1x64xf32, #tpu.memory_space<vmem>>, %arg4: memref<1x256x64xf32, #tpu.memory_space<vmem>>, %arg5: memref<1x1x64xf32, #tpu.memory_space<vmem>>, %arg6: memref<1x1x64xf32, #tpu.memory_space<vmem>>) attributes {dimension_semantics = [#tpu.dimension_semantics<parallel>], iteration_bounds = array<i64: 2>, scalar_prefetch = 0 : i64, scratch_operands = 0 : i64, tpu.core_type = #tpu.core_type<tc>, window_params = [{transform_indices = @transform_0, window_bounds = array<i64: 1, 18, 18, 32>}, {pipeline_mode = #tpu.pipeline_mode<synchronous>, transform_indices = @transform_1, window_bounds = array<i64: 9, 32, 64>}, {pipeline_mode = #tpu.pipeline_mode<synchronous>, transform_indices = @transform_2, window_bounds = array<i64: 1, 64>}, {transform_indices = @transform_3, window_bounds = array<i64: 1, 256, 64>}, {transform_indices = @transform_4, window_bounds = array<i64: 1, 1, 64>}, {transform_indices = @transform_5, window_bounds = array<i64: 1, 1, 64>}]} {
    %cst = arith.constant 0.000000e+00 : f32
    %0 = vector.broadcast %cst : f32 to vector<256x64xf32>
    %c0 = arith.constant 0 : index
    %c0_0 = arith.constant 0 : index
    %c0_1 = arith.constant 0 : index
    %c0_2 = arith.constant 0 : index
    %1 = vector.load %arg1[%c0, %c0_0, %c0_1, %c0_2] : memref<1x18x18x32xf32, #tpu.memory_space<vmem>>, vector<1x16x16x32xf32>
    %2 = vector.shape_cast %1 : vector<1x16x16x32xf32> to vector<16x16x32xf32>
    %3 = vector.shape_cast %2 : vector<16x16x32xf32> to vector<256x32xf32>
    %c0_3 = arith.constant 0 : index
    %c0_4 = arith.constant 0 : index
    %c0_5 = arith.constant 0 : index
    %4 = vector.load %arg2[%c0_3, %c0_4, %c0_5] : memref<9x32x64xf32, #tpu.memory_space<vmem>>, vector<1x32x64xf32>
    %5 = vector.shape_cast %4 : vector<1x32x64xf32> to vector<32x64xf32>
    %cst_6 = arith.constant dense<0.000000e+00> : vector<256x64xf32>
    %6 = tpu.matmul %3, %5, %cst_6 {dimension_numbers = #tpu.dot_dimension_numbers<[1], [0], [0], [1], [0, 0, 1, 1], [], []>} : vector<256x32xf32>, vector<32x64xf32>, vector<256x64xf32> -> vector<256x64xf32>
    %7 = arith.addf %0, %6 : vector<256x64xf32>
    %c0_7 = arith.constant 0 : index
    %c0_8 = arith.constant 0 : index
    %c1 = arith.constant 1 : index
    %c0_9 = arith.constant 0 : index
    %8 = vector.load %arg1[%c0_7, %c0_8, %c1, %c0_9] : memref<1x18x18x32xf32, #tpu.memory_space<vmem>>, vector<1x16x16x32xf32>
    %9 = vector.shape_cast %8 : vector<1x16x16x32xf32> to vector<16x16x32xf32>
    %10 = vector.shape_cast %9 : vector<16x16x32xf32> to vector<256x32xf32>
    %c1_10 = arith.constant 1 : index
    %c0_11 = arith.constant 0 : index
    %c0_12 = arith.constant 0 : index
    %11 = vector.load %arg2[%c1_10, %c0_11, %c0_12] : memref<9x32x64xf32, #tpu.memory_space<vmem>>, vector<1x32x64xf32>
    %12 = vector.shape_cast %11 : vector<1x32x64xf32> to vector<32x64xf32>
    %cst_13 = arith.constant dense<0.000000e+00> : vector<256x64xf32>
    %13 = tpu.matmul %10, %12, %cst_13 {dimension_numbers = #tpu.dot_dimension_numbers<[1], [0], [0], [1], [0, 0, 1, 1], [], []>} : vector<256x32xf32>, vector<32x64xf32>, vector<256x64xf32> -> vector<256x64xf32>
    %14 = arith.addf %7, %13 : vector<256x64xf32>
    %c0_14 = arith.constant 0 : index
    %c0_15 = arith.constant 0 : index
    %c2 = arith.constant 2 : index
    %c0_16 = arith.constant 0 : index
    %15 = vector.load %arg1[%c0_14, %c0_15, %c2, %c0_16] : memref<1x18x18x32xf32, #tpu.memory_space<vmem>>, vector<1x16x16x32xf32>
    %16 = vector.shape_cast %15 : vector<1x16x16x32xf32> to vector<16x16x32xf32>
    %17 = vector.shape_cast %16 : vector<16x16x32xf32> to vector<256x32xf32>
    %c2_17 = arith.constant 2 : index
    %c0_18 = arith.constant 0 : index
    %c0_19 = arith.constant 0 : index
    %18 = vector.load %arg2[%c2_17, %c0_18, %c0_19] : memref<9x32x64xf32, #tpu.memory_space<vmem>>, vector<1x32x64xf32>
    %19 = vector.shape_cast %18 : vector<1x32x64xf32> to vector<32x64xf32>
    %cst_20 = arith.constant dense<0.000000e+00> : vector<256x64xf32>
    %20 = tpu.matmul %17, %19, %cst_20 {dimension_numbers = #tpu.dot_dimension_numbers<[1], [0], [0], [1], [0, 0, 1, 1], [], []>} : vector<256x32xf32>, vector<32x64xf32>, vector<256x64xf32> -> vector<256x64xf32>
    %21 = arith.addf %14, %20 : vector<256x64xf32>
    %c0_21 = arith.constant 0 : index
    %c1_22 = arith.constant 1 : index
    %c0_23 = arith.constant 0 : index
    %c0_24 = arith.constant 0 : index
    %22 = vector.load %arg1[%c0_21, %c1_22, %c0_23, %c0_24] : memref<1x18x18x32xf32, #tpu.memory_space<vmem>>, vector<1x16x16x32xf32>
    %23 = vector.shape_cast %22 : vector<1x16x16x32xf32> to vector<16x16x32xf32>
    %24 = vector.shape_cast %23 : vector<16x16x32xf32> to vector<256x32xf32>
    %c3 = arith.constant 3 : index
    %c0_25 = arith.constant 0 : index
    %c0_26 = arith.constant 0 : index
    %25 = vector.load %arg2[%c3, %c0_25, %c0_26] : memref<9x32x64xf32, #tpu.memory_space<vmem>>, vector<1x32x64xf32>
    %26 = vector.shape_cast %25 : vector<1x32x64xf32> to vector<32x64xf32>
    %cst_27 = arith.constant dense<0.000000e+00> : vector<256x64xf32>
    %27 = tpu.matmul %24, %26, %cst_27 {dimension_numbers = #tpu.dot_dimension_numbers<[1], [0], [0], [1], [0, 0, 1, 1], [], []>} : vector<256x32xf32>, vector<32x64xf32>, vector<256x64xf32> -> vector<256x64xf32>
    %28 = arith.addf %21, %27 : vector<256x64xf32>
    %c0_28 = arith.constant 0 : index
    %c1_29 = arith.constant 1 : index
    %c1_30 = arith.constant 1 : index
    %c0_31 = arith.constant 0 : index
    %29 = vector.load %arg1[%c0_28, %c1_29, %c1_30, %c0_31] : memref<1x18x18x32xf32, #tpu.memory_space<vmem>>, vector<1x16x16x32xf32>
    %30 = vector.shape_cast %29 : vector<1x16x16x32xf32> to vector<16x16x32xf32>
    %31 = vector.shape_cast %30 : vector<16x16x32xf32> to vector<256x32xf32>
    %c4 = arith.constant 4 : index
    %c0_32 = arith.constant 0 : index
    %c0_33 = arith.constant 0 : index
    %32 = vector.load %arg2[%c4, %c0_32, %c0_33] : memref<9x32x64xf32, #tpu.memory_space<vmem>>, vector<1x32x64xf32>
    %33 = vector.shape_cast %32 : vector<1x32x64xf32> to vector<32x64xf32>
    %cst_34 = arith.constant dense<0.000000e+00> : vector<256x64xf32>
    %34 = tpu.matmul %31, %33, %cst_34 {dimension_numbers = #tpu.dot_dimension_numbers<[1], [0], [0], [1], [0, 0, 1, 1], [], []>} : vector<256x32xf32>, vector<32x64xf32>, vector<256x64xf32> -> vector<256x64xf32>
    %35 = arith.addf %28, %34 : vector<256x64xf32>
    %c0_35 = arith.constant 0 : index
    %c1_36 = arith.constant 1 : index
    %c2_37 = arith.constant 2 : index
    %c0_38 = arith.constant 0 : index
    %36 = vector.load %arg1[%c0_35, %c1_36, %c2_37, %c0_38] : memref<1x18x18x32xf32, #tpu.memory_space<vmem>>, vector<1x16x16x32xf32>
    %37 = vector.shape_cast %36 : vector<1x16x16x32xf32> to vector<16x16x32xf32>
    %38 = vector.shape_cast %37 : vector<16x16x32xf32> to vector<256x32xf32>
    %c5 = arith.constant 5 : index
    %c0_39 = arith.constant 0 : index
    %c0_40 = arith.constant 0 : index
    %39 = vector.load %arg2[%c5, %c0_39, %c0_40] : memref<9x32x64xf32, #tpu.memory_space<vmem>>, vector<1x32x64xf32>
    %40 = vector.shape_cast %39 : vector<1x32x64xf32> to vector<32x64xf32>
    %cst_41 = arith.constant dense<0.000000e+00> : vector<256x64xf32>
    %41 = tpu.matmul %38, %40, %cst_41 {dimension_numbers = #tpu.dot_dimension_numbers<[1], [0], [0], [1], [0, 0, 1, 1], [], []>} : vector<256x32xf32>, vector<32x64xf32>, vector<256x64xf32> -> vector<256x64xf32>
    %42 = arith.addf %35, %41 : vector<256x64xf32>
    %c0_42 = arith.constant 0 : index
    %c2_43 = arith.constant 2 : index
    %c0_44 = arith.constant 0 : index
    %c0_45 = arith.constant 0 : index
    %43 = vector.load %arg1[%c0_42, %c2_43, %c0_44, %c0_45] : memref<1x18x18x32xf32, #tpu.memory_space<vmem>>, vector<1x16x16x32xf32>
    %44 = vector.shape_cast %43 : vector<1x16x16x32xf32> to vector<16x16x32xf32>
    %45 = vector.shape_cast %44 : vector<16x16x32xf32> to vector<256x32xf32>
    %c6 = arith.constant 6 : index
    %c0_46 = arith.constant 0 : index
    %c0_47 = arith.constant 0 : index
    %46 = vector.load %arg2[%c6, %c0_46, %c0_47] : memref<9x32x64xf32, #tpu.memory_space<vmem>>, vector<1x32x64xf32>
    %47 = vector.shape_cast %46 : vector<1x32x64xf32> to vector<32x64xf32>
    %cst_48 = arith.constant dense<0.000000e+00> : vector<256x64xf32>
    %48 = tpu.matmul %45, %47, %cst_48 {dimension_numbers = #tpu.dot_dimension_numbers<[1], [0], [0], [1], [0, 0, 1, 1], [], []>} : vector<256x32xf32>, vector<32x64xf32>, vector<256x64xf32> -> vector<256x64xf32>
    %49 = arith.addf %42, %48 : vector<256x64xf32>
    %c0_49 = arith.constant 0 : index
    %c2_50 = arith.constant 2 : index
    %c1_51 = arith.constant 1 : index
    %c0_52 = arith.constant 0 : index
    %50 = vector.load %arg1[%c0_49, %c2_50, %c1_51, %c0_52] : memref<1x18x18x32xf32, #tpu.memory_space<vmem>>, vector<1x16x16x32xf32>
    %51 = vector.shape_cast %50 : vector<1x16x16x32xf32> to vector<16x16x32xf32>
    %52 = vector.shape_cast %51 : vector<16x16x32xf32> to vector<256x32xf32>
    %c7 = arith.constant 7 : index
    %c0_53 = arith.constant 0 : index
    %c0_54 = arith.constant 0 : index
    %53 = vector.load %arg2[%c7, %c0_53, %c0_54] : memref<9x32x64xf32, #tpu.memory_space<vmem>>, vector<1x32x64xf32>
    %54 = vector.shape_cast %53 : vector<1x32x64xf32> to vector<32x64xf32>
    %cst_55 = arith.constant dense<0.000000e+00> : vector<256x64xf32>
    %55 = tpu.matmul %52, %54, %cst_55 {dimension_numbers = #tpu.dot_dimension_numbers<[1], [0], [0], [1], [0, 0, 1, 1], [], []>} : vector<256x32xf32>, vector<32x64xf32>, vector<256x64xf32> -> vector<256x64xf32>
    %56 = arith.addf %49, %55 : vector<256x64xf32>
    %c0_56 = arith.constant 0 : index
    %c2_57 = arith.constant 2 : index
    %c2_58 = arith.constant 2 : index
    %c0_59 = arith.constant 0 : index
    %57 = vector.load %arg1[%c0_56, %c2_57, %c2_58, %c0_59] : memref<1x18x18x32xf32, #tpu.memory_space<vmem>>, vector<1x16x16x32xf32>
    %58 = vector.shape_cast %57 : vector<1x16x16x32xf32> to vector<16x16x32xf32>
    %59 = vector.shape_cast %58 : vector<16x16x32xf32> to vector<256x32xf32>
    %c8 = arith.constant 8 : index
    %c0_60 = arith.constant 0 : index
    %c0_61 = arith.constant 0 : index
    %60 = vector.load %arg2[%c8, %c0_60, %c0_61] : memref<9x32x64xf32, #tpu.memory_space<vmem>>, vector<1x32x64xf32>
    %61 = vector.shape_cast %60 : vector<1x32x64xf32> to vector<32x64xf32>
    %cst_62 = arith.constant dense<0.000000e+00> : vector<256x64xf32>
    %62 = tpu.matmul %59, %61, %cst_62 {dimension_numbers = #tpu.dot_dimension_numbers<[1], [0], [0], [1], [0, 0, 1, 1], [], []>} : vector<256x32xf32>, vector<32x64xf32>, vector<256x64xf32> -> vector<256x64xf32>
    %63 = arith.addf %56, %62 : vector<256x64xf32>
    %c0_63 = arith.constant 0 : index
    %c0_64 = arith.constant 0 : index
    %64 = vector.load %arg3[%c0_63, %c0_64] : memref<1x64xf32, #tpu.memory_space<vmem>>, vector<1x64xf32>
    %65 = vector.broadcast %64 : vector<1x64xf32> to vector<256x64xf32>
    %66 = arith.addf %63, %65 : vector<256x64xf32>
    %cst_65 = arith.constant dense<0.000000e+00> : vector<64xf32>
    %67 = vector.multi_reduction <add>, %66, %cst_65 [0] : vector<256x64xf32> to vector<64xf32>
    %68 = vector.shape_cast %67 : vector<64xf32> to vector<1x64xf32>
    %69 = vector.shape_cast %68 : vector<1x64xf32> to vector<1x1x64xf32>
    %c0_66 = arith.constant 0 : index
    %c0_67 = arith.constant 0 : index
    %c0_68 = arith.constant 0 : index
    %70 = vector.load %arg5[%c0_66, %c0_67, %c0_68] : memref<1x1x64xf32, #tpu.memory_space<vmem>>, vector<1x1x64xf32>
    tpu.vector_store %arg5[%c0_66, %c0_67, %c0_68], %69 {strides = array<i32>} : memref<1x1x64xf32, #tpu.memory_space<vmem>>, vector<1x1x64xf32>,
    %71 = arith.mulf %66, %66 : vector<256x64xf32>
    %cst_69 = arith.constant dense<0.000000e+00> : vector<64xf32>
    %72 = vector.multi_reduction <add>, %71, %cst_69 [0] : vector<256x64xf32> to vector<64xf32>
    %73 = vector.shape_cast %72 : vector<64xf32> to vector<1x64xf32>
    %74 = vector.shape_cast %73 : vector<1x64xf32> to vector<1x1x64xf32>
    %c0_70 = arith.constant 0 : index
    %c0_71 = arith.constant 0 : index
    %c0_72 = arith.constant 0 : index
    %75 = vector.load %arg6[%c0_70, %c0_71, %c0_72] : memref<1x1x64xf32, #tpu.memory_space<vmem>>, vector<1x1x64xf32>
    tpu.vector_store %arg6[%c0_70, %c0_71, %c0_72], %74 {strides = array<i32>} : memref<1x1x64xf32, #tpu.memory_space<vmem>>, vector<1x1x64xf32>,
    %76 = vector.shape_cast %66 : vector<256x64xf32> to vector<1x256x64xf32>
    %c0_73 = arith.constant 0 : index
    %c0_74 = arith.constant 0 : index
    %c0_75 = arith.constant 0 : index
    %77 = vector.load %arg4[%c0_73, %c0_74, %c0_75] : memref<1x256x64xf32, #tpu.memory_space<vmem>>, vector<1x256x64xf32>
    tpu.vector_store %arg4[%c0_73, %c0_74, %c0_75], %76 {strides = array<i32>} : memref<1x256x64xf32, #tpu.memory_space<vmem>>, vector<1x256x64xf32>,
    return
  }
  func.func @transform_0(%arg0: i32) -> (i32, i32, i32, i32) {
    %c0_i32 = arith.constant 0 : i32
    %c0_i32_0 = arith.constant 0 : i32
    %c0_i32_1 = arith.constant 0 : i32
    %c0_i32_2 = arith.constant 0 : i32
    return %arg0, %c0_i32, %c0_i32_0, %c0_i32_1 : i32, i32, i32, i32
  }
  func.func @transform_1(%arg0: i32) -> (i32, i32, i32) {
    %c0_i32 = arith.constant 0 : i32
    %c0_i32_0 = arith.constant 0 : i32
    %c0_i32_1 = arith.constant 0 : i32
    %c0_i32_2 = arith.constant 0 : i32
    return %c0_i32, %c0_i32_0, %c0_i32_1 : i32, i32, i32
  }
  func.func @transform_2(%arg0: i32) -> (i32, i32) {
    %c0_i32 = arith.constant 0 : i32
    %c0_i32_0 = arith.constant 0 : i32
    %c0_i32_1 = arith.constant 0 : i32
    return %c0_i32, %c0_i32_0 : i32, i32
  }
  func.func @transform_3(%arg0: i32) -> (i32, i32, i32) {
    %c0_i32 = arith.constant 0 : i32
    %c0_i32_0 = arith.constant 0 : i32
    %c0_i32_1 = arith.constant 0 : i32
    return %arg0, %c0_i32, %c0_i32_0 : i32, i32, i32
  }
  func.func @transform_4(%arg0: i32) -> (i32, i32, i32) {
    %c0_i32 = arith.constant 0 : i32
    %c0_i32_0 = arith.constant 0 : i32
    %c0_i32_1 = arith.constant 0 : i32
    return %arg0, %c0_i32, %c0_i32_0 : i32, i32, i32
  }
  func.func @transform_5(%arg0: i32) -> (i32, i32, i32) {
    %c0_i32 = arith.constant 0 : i32
    %c0_i32_0 = arith.constant 0 : i32
    %c0_i32_1 = arith.constant 0 : i32
    return %arg0, %c0_i32, %c0_i32_0 : i32, i32, i32
  }
}

module attributes {stable_mosaic.version = 11 : i64} {
  func.func @_affine_relu_kernel(%arg0: i32, %arg1: memref<256x128xf32, #tpu.memory_space<vmem>>, %arg2: memref<1x128xf32, #tpu.memory_space<vmem>>, %arg3: memref<1x128xf32, #tpu.memory_space<vmem>>, %arg4: memref<256x128xf32, #tpu.memory_space<vmem>>) attributes {dimension_semantics = [#tpu.dimension_semantics<parallel>], iteration_bounds = array<i64: 1>, scalar_prefetch = 0 : i64, scratch_operands = 0 : i64, tpu.core_type = #tpu.core_type<tc>, window_params = [{transform_indices = @transform_0, window_bounds = array<i64: 256, 128>}, {pipeline_mode = #tpu.pipeline_mode<synchronous>, transform_indices = @transform_1, window_bounds = array<i64: 1, 128>}, {pipeline_mode = #tpu.pipeline_mode<synchronous>, transform_indices = @transform_2, window_bounds = array<i64: 1, 128>}, {transform_indices = @transform_3, window_bounds = array<i64: 256, 128>}]} {
    %c0 = arith.constant 0 : index
    %c0_0 = arith.constant 0 : index
    %0 = vector.load %arg1[%c0, %c0_0] : memref<256x128xf32, #tpu.memory_space<vmem>>, vector<256x128xf32>
    %c0_1 = arith.constant 0 : index
    %c0_2 = arith.constant 0 : index
    %1 = vector.load %arg2[%c0_1, %c0_2] : memref<1x128xf32, #tpu.memory_space<vmem>>, vector<1x128xf32>
    %2 = vector.broadcast %1 : vector<1x128xf32> to vector<256x128xf32>
    %3 = arith.mulf %0, %2 : vector<256x128xf32>
    %c0_3 = arith.constant 0 : index
    %c0_4 = arith.constant 0 : index
    %4 = vector.load %arg3[%c0_3, %c0_4] : memref<1x128xf32, #tpu.memory_space<vmem>>, vector<1x128xf32>
    %5 = vector.broadcast %4 : vector<1x128xf32> to vector<256x128xf32>
    %6 = arith.addf %3, %5 : vector<256x128xf32>
    %cst = arith.constant 0.000000e+00 : f32
    %7 = vector.broadcast %cst : f32 to vector<256x128xf32>
    %8 = arith.maximumf %6, %7 : vector<256x128xf32>
    %c0_5 = arith.constant 0 : index
    %c0_6 = arith.constant 0 : index
    %9 = vector.load %arg4[%c0_5, %c0_6] : memref<256x128xf32, #tpu.memory_space<vmem>>, vector<256x128xf32>
    tpu.vector_store %arg4[%c0_5, %c0_6], %8 {strides = array<i32>} : memref<256x128xf32, #tpu.memory_space<vmem>>, vector<256x128xf32>,
    return
  }
  func.func @transform_0(%arg0: i32) -> (i32, i32) {
    %c0_i32 = arith.constant 0 : i32
    %c0_i32_0 = arith.constant 0 : i32
    return %arg0, %c0_i32 : i32, i32
  }
  func.func @transform_1(%arg0: i32) -> (i32, i32) {
    %c0_i32 = arith.constant 0 : i32
    %c0_i32_0 = arith.constant 0 : i32
    %c0_i32_1 = arith.constant 0 : i32
    return %c0_i32, %c0_i32_0 : i32, i32
  }
  func.func @transform_2(%arg0: i32) -> (i32, i32) {
    %c0_i32 = arith.constant 0 : i32
    %c0_i32_0 = arith.constant 0 : i32
    %c0_i32_1 = arith.constant 0 : i32
    return %c0_i32, %c0_i32_0 : i32, i32
  }
  func.func @transform_3(%arg0: i32) -> (i32, i32) {
    %c0_i32 = arith.constant 0 : i32
    %c0_i32_0 = arith.constant 0 : i32
    return %arg0, %c0_i32 : i32, i32
  }
}

</mosaic_0001>

<llo_original>
// kernel: tile.18
$region0: #{tile.18}
  #allocation0 [shape = 's32[1]{0}', space=sflag, size = 0x4, scoped, tag = 'scoped memory for tile.18']
  %s0 = inlined_call_operand.vmem [shape: f32[64], index: 0, kind: input, shape index: {}]
  %s1 = inlined_call_operand.vmem [shape: f32[2,64], index: 1, kind: output, shape index: {}]
  // Predicated region
  $region2: #{tile.18} parent=0 // pred_check
    _
  $region3: #{tile.18} parent=0 // pred_check_branch
    %3 = sbr.rel (0) target = $region5
  $region4: #{tile.18} parent=0 // pred_region
    _
  $region5: #{tile.18} parent=0 // pred_fallthru
    _
  %v4 = vld [vmem:[%s0] ss:$0 sm:$0xff]
  %5 = vst [vmem:[%s1] sm:$0x3] %v4

// kernel: tile.19
$region0: #{tile.19}
  %s0 = inlined_call_operand.vmem [shape: f32[2,64], index: 0, kind: input, shape index: {}]
  %s1 = inlined_call_operand.vmem [shape: f32[1,128], index: 1, kind: output, shape index: {}]
  $region1: #{tile.19} parent=0
    #allocation0 [shape = 'u8[4096]{0}', space=vmem, size = 0x1000, scoped, tag = 'scoped mem for output reshape']
    #allocation1 [shape = 'u8[4096]{0}', space=vmem, size = 0x1000, scoped, tag = 'scoped mem for input reshape']
    %s3 = sshllo.u32 0, 2
    %v4 = vld [vmem:[%s0] sm:%s3]
    %5 = vst [vmem:[#allocation1] sm:%s3] %v4
    %v6 = vld [vmem:[#allocation1] sm:$0x1]
    %vm7 = vcmask 523264
    %8 = vst.msk [vmem:[#allocation0] sm:$0x1] %vm7, %v6
    %s9 = scalar_lea.vmem [#allocation1], 1
    %v10 = vld [vmem:[%s9] sm:$0x1]
    %11 = vrot.lane.b32.xlu0 %v10, 64
    %v12 = vpop.permute.xlu0 %11
    %vm13 = vcmask 1048064
    %14 = vst.msk [vmem:[#allocation0] sm:$0x1] %vm13, %v12
    %s16 = sshllo.u32 0, 1
    %v18 = vld [vmem:[#allocation0] sm:%s16]
    %s19 = sshllo.u32 0, 1
    %20 = vst [vmem:[%s1] sm:%s19] %v18

// kernel: conv_bn_relu_forward.3
$region0: #{conv_bn_relu_forward.3}
  #allocation0 [shape = 'u32[]', space=smem, size = 0x4, offset = 0x4, fixed_abs, tag = 'smem constant byte address 0x4 - core index']
  #allocation1 [shape = 'u32[144,128]{1,0:T(1,128)}', space=vmem, size = 0x12000, scoped, tag = 'internal scratch']
  %s0 = inlined_call_operand.vmem [shape: f32[256,128], index: 0, kind: input, shape index: {}]
  %s1 = inlined_call_operand.vmem [shape: f32[1,128], index: 1, kind: input, shape index: {}]
  %s2 = inlined_call_operand.vmem [shape: f32[1,128], index: 2, kind: input, shape index: {}]
  %s3 = inlined_call_operand.vmem [shape: f32[256,128], index: 3, kind: output, shape index: {}]
  %s4 = sld [smem:[#allocation0]]
  $region22: #{conv_bn_relu_forward.3} parent=0
    _
  %s6 = ssub.s32 1, %s4
  %s7 = scalar_select 0, %s6, %s4
  // Predicated region
  $region2: #{conv_bn_relu_forward.3} parent=0 // pred_check
    _
  $region3: #{conv_bn_relu_forward.3} parent=0 // pred_check_branch
    %9 = sbr.rel (0) target = $region5
  $region4: #{conv_bn_relu_forward.3} parent=0 // pred_region
    _
  $region5: #{conv_bn_relu_forward.3} parent=0 // pred_fallthru
    _
  // Predicated region
  $region6: #{conv_bn_relu_forward.3} parent=0 // pred_check
    _
  $region7: #{conv_bn_relu_forward.3} parent=0 // pred_check_branch
    %11 = sbr.rel (0) target = $region9
  $region8: #{conv_bn_relu_forward.3} parent=0 // pred_region
    _
  $region9: #{conv_bn_relu_forward.3} parent=0 // pred_fallthru
    _
  // Predicated region
  $region10: #{conv_bn_relu_forward.3} parent=0 // pred_check
    _
  $region11: #{conv_bn_relu_forward.3} parent=0 // pred_check_branch
    %13 = sbr.rel (0) target = $region13
  $region12: #{conv_bn_relu_forward.3} parent=0 // pred_region
    _
  $region13: #{conv_bn_relu_forward.3} parent=0 // pred_fallthru
    _
  %v14 = vld [vmem:[%s0] sm:$0xff]
  %v15 = vld [vmem:[%s0 + $0x8] sm:$0xff]
  %v16 = vld [vmem:[%s0 + $0x10] sm:$0xff]
  %v17 = vld [vmem:[%s0 + $0x18] sm:$0xff]
  %v18 = vld [vmem:[%s0 + $0x20] sm:$0xff]
  %v19 = vld [vmem:[%s0 + $0x28] sm:$0xff]
  %v20 = vld [vmem:[%s0 + $0x30] sm:$0xff]
  %v21 = vld [vmem:[%s0 + $0x38] sm:$0xff]
  %v22 = vld [vmem:[%s0 + $0x40] sm:$0xff]
  %v23 = vld [vmem:[%s0 + $0x48] sm:$0xff]
  %v24 = vld [vmem:[%s0 + $0x50] sm:$0xff]
  %v25 = vld [vmem:[%s0 + $0x58] sm:$0xff]
  %v26 = vld [vmem:[%s0 + $0x60] sm:$0xff]
  %v27 = vld [vmem:[%s0 + $0x68] sm:$0xff]
  %v28 = vld [vmem:[%s0 + $0x70] sm:$0xff]
  %v29 = vld [vmem:[%s0 + $0x78] sm:$0xff]
  %v30 = vld [vmem:[%s0 + $0x80] sm:$0xff]
  %v31 = vld [vmem:[%s0 + $0x88] sm:$0xff]
  %v32 = vld [vmem:[%s0 + $0x90] sm:$0xff]
  %v33 = vld [vmem:[%s0 + $0x98] sm:$0xff]
  %v34 = vld [vmem:[%s0 + $0xa0] sm:$0xff]
  %v35 = vld [vmem:[%s0 + $0xa8] sm:$0xff]
  %v36 = vld [vmem:[%s0 + $0xb0] sm:$0xff]
  %v37 = vld [vmem:[%s0 + $0xb8] sm:$0xff]
  %v38 = vld [vmem:[%s0 + $0xc0] sm:$0xff]
  %v39 = vld [vmem:[%s0 + $0xc8] sm:$0xff]
  %v40 = vld [vmem:[%s0 + $0xd0] sm:$0xff]
  %v41 = vld [vmem:[%s0 + $0xd8] sm:$0xff]
  %v42 = vld [vmem:[%s0 + $0xe0] sm:$0xff]
  %v43 = vld [vmem:[%s0 + $0xe8] sm:$0xff]
  %v44 = vld [vmem:[%s0 + $0xf0] sm:$0xff]
  %v45 = vld [vmem:[%s0 + $0xf8] sm:$0xff]
  %v46 = vld [vmem:[%s1] sm:$0x1]
  %v48 = vlaneseq
  %v49 = vshrl.u32 %v48, 7
  %v50 = vsub.s32 0, %v49
  %v51 = vrot.slane %v46, %v50
  %v53 = vmul.f32 %v14, %v51
  %v54 = vmul.f32 %v15, %v51
  %v55 = vmul.f32 %v16, %v51
  %v56 = vmul.f32 %v17, %v51
  %v57 = vmul.f32 %v18, %v51
  %v58 = vmul.f32 %v19, %v51
  %v59 = vmul.f32 %v20, %v51
  %v60 = vmul.f32 %v21, %v51
  %v61 = vmul.f32 %v22, %v51
  %v62 = vmul.f32 %v23, %v51
  %v63 = vmul.f32 %v24, %v51
  %v64 = vmul.f32 %v25, %v51
  %v65 = vmul.f32 %v26, %v51
  %v66 = vmul.f32 %v27, %v51
  %v67 = vmul.f32 %v28, %v51
  %v68 = vmul.f32 %v29, %v51
  %v69 = vmul.f32 %v30, %v51
  %v70 = vmul.f32 %v31, %v51
  %v71 = vmul.f32 %v32, %v51
  %v72 = vmul.f32 %v33, %v51
  %v73 = vmul.f32 %v34, %v51
  %v74 = vmul.f32 %v35, %v51
  %v75 = vmul.f32 %v36, %v51
  %v76 = vmul.f32 %v37, %v51
  %v77 = vmul.f32 %v38, %v51
  %v78 = vmul.f32 %v39, %v51
  %v79 = vmul.f32 %v40, %v51
  %v80 = vmul.f32 %v41, %v51
  %v81 = vmul.f32 %v42, %v51
  %v82 = vmul.f32 %v43, %v51
  %v83 = vmul.f32 %v44, %v51
  %v84 = vmul.f32 %v45, %v51
  %v85 = vld [vmem:[%s2] sm:$0x1]
  %v87 = vlaneseq
  %v88 = vshrl.u32 %v87, 7
  %v89 = vsub.s32 0, %v88
  %v90 = vrot.slane %v85, %v89
  %v92 = vadd.f32 %v53, %v90
  %v93 = vadd.f32 %v54, %v90
  %v94 = vadd.f32 %v55, %v90
  %v95 = vadd.f32 %v56, %v90
  %v96 = vadd.f32 %v57, %v90
  %v97 = vadd.f32 %v58, %v90
  %v98 = vadd.f32 %v59, %v90
  %v99 = vadd.f32 %v60, %v90
  %v100 = vadd.f32 %v61, %v90
  %v101 = vadd.f32 %v62, %v90
  %v102 = vadd.f32 %v63, %v90
  %v103 = vadd.f32 %v64, %v90
  %v104 = vadd.f32 %v65, %v90
  %v105 = vadd.f32 %v66, %v90
  %v106 = vadd.f32 %v67, %v90
  %v107 = vadd.f32 %v68, %v90
  %v108 = vadd.f32 %v69, %v90
  %v109 = vadd.f32 %v70, %v90
  %v110 = vadd.f32 %v71, %v90
  %v111 = vadd.f32 %v72, %v90
  %v112 = vadd.f32 %v73, %v90
  %v113 = vadd.f32 %v74, %v90
  %v114 = vadd.f32 %v75, %v90
  %v115 = vadd.f32 %v76, %v90
  %v116 = vadd.f32 %v77, %v90
  %v117 = vadd.f32 %v78, %v90
  %v118 = vadd.f32 %v79, %v90
  %v119 = vadd.f32 %v80, %v90
  %v120 = vadd.f32 %v81, %v90
  %v121 = vadd.f32 %v82, %v90
  %v122 = vadd.f32 %v83, %v90
  %v123 = vadd.f32 %v84, %v90
  %v124 = vmax.f32 %v92, 0.0
  %v125 = vmax.f32 %v93, 0.0
  %v126 = vmax.f32 %v94, 0.0
  %v127 = vmax.f32 %v95, 0.0
  %v128 = vmax.f32 %v96, 0.0
  %v129 = vmax.f32 %v97, 0.0
  %v130 = vmax.f32 %v98, 0.0
  %v131 = vmax.f32 %v99, 0.0
  %v132 = vmax.f32 %v100, 0.0
  %v133 = vmax.f32 %v101, 0.0
  %v134 = vmax.f32 %v102, 0.0
  %v135 = vmax.f32 %v103, 0.0
  %v136 = vmax.f32 %v104, 0.0
  %v137 = vmax.f32 %v105, 0.0
  %v138 = vmax.f32 %v106, 0.0
  %v139 = vmax.f32 %v107, 0.0
  %v140 = vmax.f32 %v108, 0.0
  %v141 = vmax.f32 %v109, 0.0
  %v142 = vmax.f32 %v110, 0.0
  %v143 = vmax.f32 %v111, 0.0
  %v144 = vmax.f32 %v112, 0.0
  %v145 = vmax.f32 %v113, 0.0
  %v146 = vmax.f32 %v114, 0.0
  %v147 = vmax.f32 %v115, 0.0
  %v148 = vmax.f32 %v116, 0.0
  %v149 = vmax.f32 %v117, 0.0
  %v150 = vmax.f32 %v118, 0.0
  %v151 = vmax.f32 %v119, 0.0
  %v152 = vmax.f32 %v120, 0.0
  %v153 = vmax.f32 %v121, 0.0
  %v154 = vmax.f32 %v122, 0.0
  %v155 = vmax.f32 %v123, 0.0
  %156 = vst [vmem:[%s3] sm:$0xff] %v124
  %157 = vst [vmem:[%s3 + $0x8] sm:$0xff] %v125
  %158 = vst [vmem:[%s3 + $0x10] sm:$0xff] %v126
  %159 = vst [vmem:[%s3 + $0x18] sm:$0xff] %v127
  %160 = vst [vmem:[%s3 + $0x20] sm:$0xff] %v128
  %161 = vst [vmem:[%s3 + $0x28] sm:$0xff] %v129
  %162 = vst [vmem:[%s3 + $0x30] sm:$0xff] %v130
  %163 = vst [vmem:[%s3 + $0x38] sm:$0xff] %v131
  %164 = vst [vmem:[%s3 + $0x40] sm:$0xff] %v132
  %165 = vst [vmem:[%s3 + $0x48] sm:$0xff] %v133
  %166 = vst [vmem:[%s3 + $0x50] sm:$0xff] %v134
  %167 = vst [vmem:[%s3 + $0x58] sm:$0xff] %v135
  %168 = vst [vmem:[%s3 + $0x60] sm:$0xff] %v136
  %169 = vst [vmem:[%s3 + $0x68] sm:$0xff] %v137
  %170 = vst [vmem:[%s3 + $0x70] sm:$0xff] %v138
  %171 = vst [vmem:[%s3 + $0x78] sm:$0xff] %v139
  %172 = vst [vmem:[%s3 + $0x80] sm:$0xff] %v140
  %173 = vst [vmem:[%s3 + $0x88] sm:$0xff] %v141
  %174 = vst [vmem:[%s3 + $0x90] sm:$0xff] %v142
  %175 = vst [vmem:[%s3 + $0x98] sm:$0xff] %v143
  %176 = vst [vmem:[%s3 + $0xa0] sm:$0xff] %v144
  %177 = vst [vmem:[%s3 + $0xa8] sm:$0xff] %v145
  %178 = vst [vmem:[%s3 + $0xb0] sm:$0xff] %v146
  %179 = vst [vmem:[%s3 + $0xb8] sm:$0xff] %v147
  %180 = vst [vmem:[%s3 + $0xc0] sm:$0xff] %v148
  %181 = vst [vmem:[%s3 + $0xc8] sm:$0xff] %v149
  %182 = vst [vmem:[%s3 + $0xd0] sm:$0xff] %v150
  %183 = vst [vmem:[%s3 + $0xd8] sm:$0xff] %v151
  %184 = vst [vmem:[%s3 + $0xe0] sm:$0xff] %v152
  %185 = vst [vmem:[%s3 + $0xe8] sm:$0xff] %v153
  %186 = vst [vmem:[%s3 + $0xf0] sm:$0xff] %v154
  %187 = vst [vmem:[%s3 + $0xf8] sm:$0xff] %v155
  // Predicated region
  $region14: #{conv_bn_relu_forward.3} parent=0 // pred_check
    _
  $region15: #{conv_bn_relu_forward.3} parent=0 // pred_check_branch
    %189 = sbr.rel (0) target = $region17
  $region16: #{conv_bn_relu_forward.3} parent=0 // pred_region
    _
  $region17: #{conv_bn_relu_forward.3} parent=0 // pred_fallthru
    _
  // Predicated region
  $region18: #{conv_bn_relu_forward.3} parent=0 // pred_check
    _
  $region19: #{conv_bn_relu_forward.3} parent=0 // pred_check_branch
    %191 = sbr.rel (0) target = $region21
  $region20: #{conv_bn_relu_forward.3} parent=0 // pred_region
    _
  $region21: #{conv_bn_relu_forward.3} parent=0 // pred_fallthru
    _

// kernel: conv_bn_relu_forward.2
$region0: #{conv_bn_relu_forward.2}
  #allocation0 [shape = 'u32[]', space=smem, size = 0x4, offset = 0x4, fixed_abs, tag = 'smem constant byte address 0x4 - core index']
  #allocation1 [shape = 'u32[144,128]{1,0:T(1,128)}', space=vmem, size = 0x12000, scoped, tag = 'internal scratch']
  %s0 = inlined_call_operand.vmem [shape: f32[2,18,18,32], index: 0, kind: input, shape index: {}]
  %s1 = inlined_call_operand.vmem [shape: f32[9,32,64], index: 1, kind: input, shape index: {}]
  %s2 = inlined_call_operand.vmem [shape: f32[1,64], index: 2, kind: input, shape index: {}]
  %s3 = inlined_call_operand.vmem [shape: f32[2,256,64], index: 3, kind: output, shape index: {0}]
  %s4 = inlined_call_operand.vmem [shape: f32[2,1,64], index: 4, kind: output, shape index: {1}]
  %s5 = inlined_call_operand.vmem [shape: f32[2,1,64], index: 5, kind: output, shape index: {2}]
  %6 = xla_tuple %s3, %s4, %s5
  %s7 = sld [smem:[#allocation0]]
  $region61: #{conv_bn_relu_forward.2} parent=0
    _
  %s9 = ssub.s32 1, %s7
  %s10 = scalar_select 0, %s9, %s7
  loop: start=0, step=1, limit=4
  $region2: #{conv_bn_relu_forward.2} parent=0 // loop_pre_header
    _
  $region3: #{conv_bn_relu_forward.2} parent=0 // loop_header
    %s12 = sphi 0, %s16
    %p13 = scmp.ge.s32.totalorder %s12, 4
    %s22 = sphi 0, %s24
    %s25 = sphi 0, %s22
    %s26 = sphi 0, %s25
    %s42 = sphi 0, %s26
    %s46 = sphi 0, %s46
    %s48 = sphi 0, %s46
    %s49 = sphi 0, %s48
    %s63 = sphi 0, %s49
    %s67 = sphi 0, %s67
    %s69 = sphi 0, %s67
    %s70 = sphi 0, %s69
    %s84 = sphi 0, %s70
    %s90 = sphi 0, %s92
    %s93 = sphi 0, %s90
    %s94 = sphi 0, %s93
    %s110 = sphi 0, %s94
    %s116 = sphi 0, %s118
    %s119 = sphi 0, %s116
    %s120 = sphi 0, %s119
    %s136 = sphi 0, %s120
    %s142 = sphi 0, %s144
    %s145 = sphi 0, %s142
    %s146 = sphi 0, %s145
    %s162 = sphi 0, %s146
  $region4: #{conv_bn_relu_forward.2} parent=0 // loop_header_branch
    %15 = sbr.rel (%p13) target = $region8
  $region5: #{conv_bn_relu_forward.2} parent=0 // loop_body
    %s17 = ssub.s32 %s12, 1
    %s18 = ssub.s32 %s12, 2
    %s19 = sadd.s32 %s12, 1
    %s20 = ssub.s32 %s12, %s19
    %p21 = scmp.eq.s32.totalorder %s20, 0
    %s23 = sadd.s32 %s22, 1
    %s24 = scalar_select %p21, %s22, %s23
    %p27 = pneg %p21
    %p28 = scmp.eq.s32.totalorder %s12, 1
    %p29 = por %p27, %p28
    %p30 = scmp.ne.s32.totalorder %s22, %s25
    %p31 = scmp.eq.s32.totalorder %s12, 0
    %p32 = por %p30, %p31
    %p33 = scmp.ne.s32.totalorder %s22, %s25
    %p34 = scmp.eq.s32.totalorder %s17, 1
    %p35 = por %p33, %p34
    %p36 = scmp.ne.s32.totalorder %s25, %s26
    %p37 = scmp.eq.s32.totalorder %s17, 0
    %p38 = por %p36, %p37
    %p39 = scmp.ne.s32.totalorder %s25, %s26
    %p40 = scmp.eq.s32.totalorder %s18, 1
    %p41 = por %p39, %p40
    %p43 = scmp.ne.s32.totalorder %s26, %s42
    %p44 = scmp.eq.s32.totalorder %s18, 0
    %p45 = por %p43, %p44
    %s47 = sadd.s32 %s46, 1
    %p50 = scmp.eq.s32.totalorder %s12, 1
    %p51 = scmp.ne.s32.totalorder %s46, %s48
    %p52 = scmp.eq.s32.totalorder %s12, 0
    %p53 = por %p51, %p52
    %p54 = scmp.ne.s32.totalorder %s46, %s48
    %p55 = scmp.eq.s32.totalorder %s17, 1
    %p56 = por %p54, %p55
    %p57 = scmp.ne.s32.totalorder %s48, %s49
    %p58 = scmp.eq.s32.totalorder %s17, 0
    %p59 = por %p57, %p58
    %p60 = scmp.ne.s32.totalorder %s48, %s49
    %p61 = scmp.eq.s32.totalorder %s18, 1
    %p62 = por %p60, %p61
    %p64 = scmp.ne.s32.totalorder %s49, %s63
    %p65 = scmp.eq.s32.totalorder %s18, 0
    %p66 = por %p64, %p65
    %s68 = sadd.s32 %s67, 1
    %p71 = scmp.eq.s32.totalorder %s12, 1
    %p72 = scmp.ne.s32.totalorder %s67, %s69
    %p73 = scmp.eq.s32.totalorder %s12, 0
    %p74 = por %p72, %p73
    %p75 = scmp.ne.s32.totalorder %s67, %s69
    %p76 = scmp.eq.s32.totalorder %s17, 1
    %p77 = por %p75, %p76
    %p78 = scmp.ne.s32.totalorder %s69, %s70
    %p79 = scmp.eq.s32.totalorder %s17, 0
    %p80 = por %p78, %p79
    %p81 = scmp.ne.s32.totalorder %s69, %s70
    %p82 = scmp.eq.s32.totalorder %s18, 1
    %p83 = por %p81, %p82
    %p85 = scmp.ne.s32.totalorder %s70, %s84
    %p86 = scmp.eq.s32.totalorder %s18, 0
    %p87 = por %p85, %p86
    %s88 = ssub.s32 %s12, %s19
    %p89 = scmp.eq.s32.totalorder %s88, 0
    %s91 = sadd.s32 %s90, 1
    %s92 = scalar_select %p89, %s90, %s91
    %p95 = pneg %p89
    %p96 = scmp.eq.s32.totalorder %s12, 1
    %p97 = por %p95, %p96
    %p98 = scmp.ne.s32.totalorder %s90, %s93
    %p99 = scmp.eq.s32.totalorder %s12, 0
    %p100 = por %p98, %p99
    %p101 = scmp.ne.s32.totalorder %s90, %s93
    %p102 = scmp.eq.s32.totalorder %s17, 1
    %p103 = por %p101, %p102
    %p104 = scmp.ne.s32.totalorder %s93, %s94
    %p105 = scmp.eq.s32.totalorder %s17, 0
    %p106 = por %p104, %p105
    %p107 = scmp.ne.s32.totalorder %s93, %s94
    %p108 = scmp.eq.s32.totalorder %s18, 1
    %p109 = por %p107, %p108
    %p111 = scmp.ne.s32.totalorder %s94, %s110
    %p112 = scmp.eq.s32.totalorder %s18, 0
    %p113 = por %p111, %p112
    %s114 = ssub.s32 %s12, %s19
    %p115 = scmp.eq.s32.totalorder %s114, 0
    %s117 = sadd.s32 %s116, 1
    %s118 = scalar_select %p115, %s116, %s117
    %p121 = pneg %p115
    %p122 = scmp.eq.s32.totalorder %s12, 1
    %p123 = por %p121, %p122
    %p124 = scmp.ne.s32.totalorder %s116, %s119
    %p125 = scmp.eq.s32.totalorder %s12, 0
    %p126 = por %p124, %p125
    %p127 = scmp.ne.s32.totalorder %s116, %s119
    %p128 = scmp.eq.s32.totalorder %s17, 1
    %p129 = por %p127, %p128
    %p130 = scmp.ne.s32.totalorder %s119, %s120
    %p131 = scmp.eq.s32.totalorder %s17, 0
    %p132 = por %p130, %p131
    %p133 = scmp.ne.s32.totalorder %s119, %s120
    %p134 = scmp.eq.s32.totalorder %s18, 1
    %p135 = por %p133, %p134
    %p137 = scmp.ne.s32.totalorder %s120, %s136
    %p138 = scmp.eq.s32.totalorder %s18, 0
    %p139 = por %p137, %p138
    %s140 = ssub.s32 %s12, %s19
    %p141 = scmp.eq.s32.totalorder %s140, 0
    %s143 = sadd.s32 %s142, 1
    %s144 = scalar_select %p141, %s142, %s143
    %p147 = pneg %p141
    %p148 = scmp.eq.s32.totalorder %s12, 1
    %p149 = por %p147, %p148
    %p150 = scmp.ne.s32.totalorder %s142, %s145
    %p151 = scmp.eq.s32.totalorder %s12, 0
    %p152 = por %p150, %p151
    %p153 = scmp.ne.s32.totalorder %s142, %s145
    %p154 = scmp.eq.s32.totalorder %s17, 1
    %p155 = por %p153, %p154
    %p156 = scmp.ne.s32.totalorder %s145, %s146
    %p157 = scmp.eq.s32.totalorder %s17, 0
    %p158 = por %p156, %p157
    %p159 = scmp.ne.s32.totalorder %s145, %s146
    %p160 = scmp.eq.s32.totalorder %s18, 1
    %p161 = por %p159, %p160
    %p163 = scmp.ne.s32.totalorder %s146, %s162
    %p164 = scmp.eq.s32.totalorder %s18, 0
    %p165 = por %p163, %p164
    %p166 = scmp.le.s32.totalorder 1, %s12
    %p167 = scmp.lt.s32.totalorder %s12, 3
    %p168 = pnand %p166, %p167
    %p169 = pneg %p168
    // Predicated region
    $region9: #{conv_bn_relu_forward.2} parent=5 // pred_check
      _
    $region10: #{conv_bn_relu_forward.2} parent=5 // pred_check_branch
      %171 = sbr.rel (%p168) target = $region12
    $region11: #{conv_bn_relu_forward.2} parent=5 // pred_region
      %s172 = ssub.s32 %s12, 1
      // Predicated region
      $region13: #{conv_bn_relu_forward.2} parent=11 // pred_check
        %p173 = pneg %p59
      $region14: #{conv_bn_relu_forward.2} parent=11 // pred_check_branch
        %175 = sbr.rel (%p173) target = $region16
      $region15: #{conv_bn_relu_forward.2} parent=11 // pred_region
        _
      $region16: #{conv_bn_relu_forward.2} parent=11 // pred_fallthru
        _
      // Predicated region
      $region17: #{conv_bn_relu_forward.2} parent=11 // pred_check
        %p176 = pneg %p80
      $region18: #{conv_bn_relu_forward.2} parent=11 // pred_check_branch
        %178 = sbr.rel (%p176) target = $region20
      $region19: #{conv_bn_relu_forward.2} parent=11 // pred_region
        _
      $region20: #{conv_bn_relu_forward.2} parent=11 // pred_fallthru
        _
    $region12: #{conv_bn_relu_forward.2} parent=5 // pred_fallthru
      _
    %p179 = scmp.lt.s32.totalorder %s12, 2
    // Predicated region
    $region21: #{conv_bn_relu_forward.2} parent=5 // pred_check
      %p180 = pneg %p179
    $region22: #{conv_bn_relu_forward.2} parent=5 // pred_check_branch
      %182 = sbr.rel (%p180) target = $region24
    $region23: #{conv_bn_relu_forward.2} parent=5 // pred_region
      // Predicated region
      $region25: #{conv_bn_relu_forward.2} parent=23 // pred_check
        %p183 = pneg %p32
      $region26: #{conv_bn_relu_forward.2} parent=23 // pred_check_branch
        %185 = sbr.rel (%p183) target = $region28
      $region27: #{conv_bn_relu_forward.2} parent=23 // pred_region
        %p186 = scmp.lt.s32.totalorder %s12, 1
        %s187 = scalar_select %p186, %s12, 1
        %s188 = smul.addr %s187, 54
        %s189 = smul.addr %s188, 8
        %s190 = scalar_lea.vmem %s0, %s189
      $region28: #{conv_bn_relu_forward.2} parent=23 // pred_fallthru
        _
    $region24: #{conv_bn_relu_forward.2} parent=5 // pred_fallthru
      _
    %p191 = scmp.le.s32.totalorder 1, %s12
    %p192 = scmp.lt.s32.totalorder %s12, 3
    %p193 = pnand %p191, %p192
    %p194 = pneg %p193
    // Predicated region
    $region29: #{conv_bn_relu_forward.2} parent=5 // pred_check
      _
    $region30: #{conv_bn_relu_forward.2} parent=5 // pred_check_branch
      %196 = sbr.rel (%p193) target = $region32
    $region31: #{conv_bn_relu_forward.2} parent=5 // pred_region
      %s197 = ssub.s32 %s12, 1
      %p198 = scmp.lt.s32.totalorder %s17, 1
      %s199 = scalar_select %p198, %s17, 1
      %s200 = smul.addr %s199, 54
      %s201 = smul.addr %s200, 8
      %s202 = scalar_lea.vmem %s0, %s201
      %p203 = pneg %p38
      %p204 = pneg %p35
      %p205 = pneg %p59
      %p206 = pneg %p56
      %p207 = pneg %p80
      %p208 = pneg %p77
      %p209 = pneg %p106
      %p210 = pneg %p103
      %p211 = scmp.lt.s32.totalorder %s17, 1
      %s212 = scalar_select %p211, %s17, 1
      %s213 = smul.addr %s212, 32
      %s214 = smul.addr %s213, 8
      %s215 = scalar_lea.vmem %s3, %s214
      %p216 = pneg %p132
      %p217 = pneg %p129
      %p218 = scmp.lt.s32.totalorder %s17, 1
      %s219 = scalar_select %p218, %s17, 1
      %s220 = scalar_lea.vmem %s4, %s219
      %p221 = pneg %p158
      %p222 = pneg %p155
      %p223 = scmp.lt.s32.totalorder %s17, 1
      %s224 = scalar_select %p223, %s17, 1
      %s225 = scalar_lea.vmem %s5, %s224
      %p226 = scmp.lt.s32.totalorder %s17, 1
      %s227 = scalar_select %p226, %s17, 1
      %s228 = smul.addr %s227, 54
      %s229 = smul.addr %s228, 8
      %s230 = scalar_lea.vmem %s0, %s229
      %p231 = scmp.lt.s32.totalorder %s17, 1
      %s232 = scalar_select %p231, %s17, 1
      %s233 = smul.addr %s232, 32
      %s234 = smul.addr %s233, 8
      %s235 = scalar_lea.vmem %s3, %s234
      %p236 = scmp.lt.s32.totalorder %s17, 1
      %s237 = scalar_select %p236, %s17, 1
      %s238 = scalar_lea.vmem %s4, %s237
      %p239 = scmp.lt.s32.totalorder %s17, 1
      %s240 = scalar_select %p239, %s17, 1
      %s241 = scalar_lea.vmem %s5, %s240
      %v242 = vld [vmem:[%s230] sm:$0xff]
      %v243 = vld [vmem:[%s230 + $0x8] sm:$0xff]
      %v244 = vld [vmem:[%s230 + $0x18] sm:$0xff]
      %v245 = vld [vmem:[%s230 + $0x20] sm:$0xff]
      %v246 = vld [vmem:[%s230 + $0x30] sm:$0xff]
      %v247 = vld [vmem:[%s230 + $0x38] sm:$0xff]
      %v248 = vld [vmem:[%s230 + $0x48] sm:$0xff]
      %v249 = vld [vmem:[%s230 + $0x50] sm:$0xff]
      %v250 = vld [vmem:[%s230 + $0x60] sm:$0xff]
      %v251 = vld [vmem:[%s230 + $0x68] sm:$0xff]
      %v252 = vld [vmem:[%s230 + $0x78] sm:$0xff]
      %v253 = vld [vmem:[%s230 + $0x80] sm:$0xff]
      %v254 = vld [vmem:[%s230 + $0x90] sm:$0xff]
      %v255 = vld [vmem:[%s230 + $0x98] sm:$0xff]
      %v256 = vld [vmem:[%s230 + $0xa8] sm:$0xff]
      %v257 = vld [vmem:[%s230 + $0xb0] sm:$0xff]
      %v258 = vld [vmem:[%s230 + $0xc0] sm:$0xff]
      %v259 = vld [vmem:[%s230 + $0xc8] sm:$0xff]
      %v260 = vld [vmem:[%s230 + $0xd8] sm:$0xff]
      %v261 = vld [vmem:[%s230 + $0xe0] sm:$0xff]
      %v262 = vld [vmem:[%s230 + $0xf0] sm:$0xff]
      %v263 = vld [vmem:[%s230 + $0xf8] sm:$0xff]
      %v264 = vld [vmem:[%s230 + $0x108] sm:$0xff]
      %v265 = vld [vmem:[%s230 + $0x110] sm:$0xff]
      %v266 = vld [vmem:[%s230 + $0x120] sm:$0xff]
      %v267 = vld [vmem:[%s230 + $0x128] sm:$0xff]
      %v268 = vld [vmem:[%s230 + $0x138] sm:$0xff]
      %v269 = vld [vmem:[%s230 + $0x140] sm:$0xff]
      %v270 = vld [vmem:[%s230 + $0x150] sm:$0xff]
      %v271 = vld [vmem:[%s230 + $0x158] sm:$0xff]
      %v272 = vld [vmem:[%s230 + $0x168] sm:$0xff]
      %v273 = vld [vmem:[%s230 + $0x170] sm:$0xff]
      %v274 = vld [vmem:[%s1] sm:$0xff]
      %v275 = vld [vmem:[%s1 + $0x8] sm:$0xff]
      %v276 = vld [vmem:[%s1 + $0x10] sm:$0xff]
      %v277 = vld [vmem:[%s1 + $0x18] sm:$0xff]
      %v278 = vld [vmem:[%s230 + $0x1] sm:$0xff]
      %v279 = vld [vmem:[%s230 + $0x9] sm:$0xff]
      %v280 = vld [vmem:[%s230 + $0x19] sm:$0xff]
      %v281 = vld [vmem:[%s230 + $0x21] sm:$0xff]
      %v282 = vld [vmem:[%s230 + $0x31] sm:$0xff]
      %v283 = vld [vmem:[%s230 + $0x39] sm:$0xff]
      %v284 = vld [vmem:[%s230 + $0x49] sm:$0xff]
      %v285 = vld [vmem:[%s230 + $0x51] sm:$0xff]
      %v286 = vld [vmem:[%s230 + $0x61] sm:$0xff]
      %v287 = vld [vmem:[%s230 + $0x69] sm:$0xff]
      %v288 = vld [vmem:[%s230 + $0x79] sm:$0xff]
      %v289 = vld [vmem:[%s230 + $0x81] sm:$0xff]
      %v290 = vld [vmem:[%s230 + $0x91] sm:$0xff]
      %v291 = vld [vmem:[%s230 + $0x99] sm:$0xff]
      %v292 = vld [vmem:[%s230 + $0xa9] sm:$0xff]
      %v293 = vld [vmem:[%s230 + $0xb1] sm:$0xff]
      %v294 = vld [vmem:[%s230 + $0xc1] sm:$0xff]
      %v295 = vld [vmem:[%s230 + $0xc9] sm:$0xff]
      %v296 = vld [vmem:[%s230 + $0xd9] sm:$0xff]
      %v297 = vld [vmem:[%s230 + $0xe1] sm:$0xff]
      %v298 = vld [vmem:[%s230 + $0xf1] sm:$0xff]
      %v299 = vld [vmem:[%s230 + $0xf9] sm:$0xff]
      %v300 = vld [vmem:[%s230 + $0x109] sm:$0xff]
      %v301 = vld [vmem:[%s230 + $0x111] sm:$0xff]
      %v302 = vld [vmem:[%s230 + $0x121] sm:$0xff]
      %v303 = vld [vmem:[%s230 + $0x129] sm:$0xff]
      %v304 = vld [vmem:[%s230 + $0x139] sm:$0xff]
      %v305 = vld [vmem:[%s230 + $0x141] sm:$0xff]
      %v306 = vld [vmem:[%s230 + $0x151] sm:$0xff]
      %v307 = vld [vmem:[%s230 + $0x159] sm:$0xff]
      %v308 = vld [vmem:[%s230 + $0x169] sm:$0xff]
      %v309 = vld [vmem:[%s230 + $0x171] sm:$0xff]
      %s310 = scalar_lea.vmem %s1, 32
      %v311 = vld [vmem:[%s310] sm:$0xff]
      %v312 = vld [vmem:[%s310 + $0x8] sm:$0xff]
      %v313 = vld [vmem:[%s310 + $0x10] sm:$0xff]
      %v314 = vld [vmem:[%s310 + $0x18] sm:$0xff]
      %vm315 = vcmask 261120
      %v317 = vsel %vm315, %v278, 0
      %v320 = vsel %vm315, %v279, 0
      %v323 = vsel %vm315, %v280, 0
      %v326 = vsel %vm315, %v281, 0
      %v329 = vsel %vm315, %v282, 0
      %v332 = vsel %vm315, %v283, 0
      %v335 = vsel %vm315, %v284, 0
      %v338 = vsel %vm315, %v285, 0
      %v341 = vsel %vm315, %v286, 0
      %v344 = vsel %vm315, %v287, 0
      %v347 = vsel %vm315, %v288, 0
      %v350 = vsel %vm315, %v289, 0
      %v353 = vsel %vm315, %v290, 0
      %v356 = vsel %vm315, %v291, 0
      %v359 = vsel %vm315, %v292, 0
      %v362 = vsel %vm315, %v293, 0
      %v365 = vsel %vm315, %v294, 0
      %v368 = vsel %vm315, %v295, 0
      %v371 = vsel %vm315, %v296, 0
      %v374 = vsel %vm315, %v297, 0
      %v377 = vsel %vm315, %v298, 0
      %v380 = vsel %vm315, %v299, 0
      %v383 = vsel %vm315, %v300, 0
      %v386 = vsel %vm315, %v301, 0
      %v389 = vsel %vm315, %v302, 0
      %v392 = vsel %vm315, %v303, 0
      %v395 = vsel %vm315, %v304, 0
      %v398 = vsel %vm315, %v305, 0
      %v401 = vsel %vm315, %v306, 0
      %v404 = vsel %vm315, %v307, 0
      %v407 = vsel %vm315, %v308, 0
      %v410 = vsel %vm315, %v309, 0
      %412 = vmatprep.subr.mxu0 0.0
      %413 = vmatpush1.msra.mxu0 %v311
      %414 = vmatprep.subr.mxu0 0.0
      %415 = vmatpush1.msra.mxu0 %v312
      %416 = vmatprep.subr.mxu0 0.0
      %417 = vmatpush1.msra.mxu0 %v313
      %418 = vmatprep.subr.mxu0 0.0
      %419 = vmatpush1.msra.mxu0 %v314
      %420 = vmatprep.subr.mxu0 0.0
      %421 = vmatpush1.msra.mxu0 0.0
      %422 = vmatprep.subr.mxu0 0.0
      %423 = vmatpush1.msra.mxu0 0.0
      %424 = vmatprep.subr.mxu0 0.0
      %425 = vmatpush1.msra.mxu0 0.0
      %426 = vmatprep.subr.mxu0 0.0
      %427 = vmatpush1.msra.mxu0 0.0
      %428 = vmatprep.subr.mxu0 0.0
      %429 = vmatpush1.msra.mxu0 0.0
      %430 = vmatprep.subr.mxu0 0.0
      %431 = vmatpush1.msra.mxu0 0.0
      %432 = vmatprep.subr.mxu0 0.0
      %433 = vmatpush1.msra.mxu0 0.0
      %434 = vmatprep.subr.mxu0 0.0
      %435 = vmatpush1.msra.mxu0 0.0
      %436 = vmatprep.subr.mxu0 0.0
      %437 = vmatpush1.msra.mxu0 0.0
      %438 = vmatprep.subr.mxu0 0.0
      %439 = vmatpush1.msra.mxu0 0.0
      %440 = vmatprep.subr.mxu0 0.0
      %441 = vmatpush1.msra.mxu0 0.0
      %442 = vmatprep.subr.mxu0 0.0
      %443 = vmatpush1.msra.mxu0 0.0
      %444 = vmatprep.subr.mxu0 0.0
      %445 = vmatpush1.msra.mxu0 0.0
      %446 = vmatprep.subr.mxu0 0.0
      %447 = vmatpush1.msra.mxu0 0.0
      %448 = vmatprep.subr.mxu0 0.0
      %449 = vmatpush1.msra.mxu0 0.0
      %450 = vmatprep.subr.mxu0 0.0
      %451 = vmatpush1.msra.mxu0 0.0
      %452 = vmatprep.subr.mxu0 0.0
      %453 = vmatpush1.msra.mxu0 0.0
      %454 = vmatprep.subr.mxu0 0.0
      %455 = vmatpush1.msra.mxu0 0.0
      %456 = vmatprep.subr.mxu0 0.0
      %457 = vmatpush1.msra.mxu0 0.0
      %458 = vmatprep.subr.mxu0 0.0
      %459 = vmatpush1.msra.mxu0 0.0
      %460 = vmatprep.subr.mxu0 0.0
      %461 = vmatpush1.msra.mxu0 0.0
      %462 = vmatprep.subr.mxu0 0.0
      %463 = vmatpush1.msra.mxu0 0.0
      %464 = vmatprep.subr.mxu0 0.0
      %465 = vmatpush1.msra.mxu0 0.0
      %466 = vmatprep.subr.mxu0 0.0
      %467 = vmatpush1.msra.mxu0 0.0
      %468 = vmatprep.subr.mxu0 0.0
      %469 = vmatpush1.msra.mxu0 0.0
      %470 = vmatprep.subr.mxu0 0.0
      %471 = vmatpush1.msra.mxu0 0.0
      %472 = vmatprep.subr.mxu0 0.0
      %473 = vmatpush1.msra.mxu0 0.0
      %474 = vmatprep.subr.mxu0 0.0
      %475 = vmatpush1.msra.mxu0 0.0
      %476 = vmatprep.mubr.f32.mxu0 0.0
      %477 = vmatmul.mubr.f32.gmra.mrb[0].mxu0 %v317
      %v478 = vpop.f32.mrb[0].mxu0
      %v479 = vadd.f32 0.0, %v478
      %v480 = vpop.f32.mrb[0].mxu0
      %481 = vmatprep.mubr.f32.mxu0 0.0
      %482 = vmatmul.mubr.f32.gmra.mrb[0].mxu0 %v320
      %v483 = vpop.f32.mrb[0].mxu0
      %v484 = vadd.f32 0.0, %v483
      %v485 = vpop.f32.mrb[0].mxu0
      %486 = vmatprep.mubr.f32.mxu0 0.0
      %487 = vmatmul.mubr.f32.gmra.mrb[0].mxu0 %v323
      %v488 = vpop.f32.mrb[0].mxu0
      %v489 = vadd.f32 0.0, %v488
      %v490 = vpop.f32.mrb[0].mxu0
      %491 = vmatprep.mubr.f32.mxu0 0.0
      %492 = vmatmul.mubr.f32.gmra.mrb[0].mxu0 %v326
      %v493 = vpop.f32.mrb[0].mxu0
      %v494 = vadd.f32 0.0, %v493
      %v495 = vpop.f32.mrb[0].mxu0
      %496 = vmatprep.mubr.f32.mxu0 0.0
      %497 = vmatmul.mubr.f32.gmra.mrb[0].mxu0 %v329
      %v498 = vpop.f32.mrb[0].mxu0
      %v499 = vadd.f32 0.0, %v498
      %v500 = vpop.f32.mrb[0].mxu0
      %501 = vmatprep.mubr.f32.mxu0 0.0
      %502 = vmatmul.mubr.f32.gmra.mrb[0].mxu0 %v332
      %v503 = vpop.f32.mrb[0].mxu0
      %v504 = vadd.f32 0.0, %v503
      %v505 = vpop.f32.mrb[0].mxu0
      %506 = vmatprep.mubr.f32.mxu0 0.0
      %507 = vmatmul.mubr.f32.gmra.mrb[0].mxu0 %v335
      %v508 = vpop.f32.mrb[0].mxu0
      %v509 = vadd.f32 0.0, %v508
      %v510 = vpop.f32.mrb[0].mxu0
      %511 = vmatprep.mubr.f32.mxu0 0.0
      %512 = vmatmul.mubr.f32.gmra.mrb[0].mxu0 %v338
      %v513 = vpop.f32.mrb[0].mxu0
      %v514 = vadd.f32 0.0, %v513
      %v515 = vpop.f32.mrb[0].mxu0
      %516 = vmatprep.mubr.f32.mxu0 0.0
      %517 = vmatmul.mubr.f32.gmra.mrb[0].mxu0 %v341
      %v518 = vpop.f32.mrb[0].mxu0
      %v519 = vadd.f32 0.0, %v518
      %v520 = vpop.f32.mrb[0].mxu0
      %521 = vmatprep.mubr.f32.mxu0 0.0
      %522 = vmatmul.mubr.f32.gmra.mrb[0].mxu0 %v344
      %v523 = vpop.f32.mrb[0].mxu0
      %v524 = vadd.f32 0.0, %v523
      %v525 = vpop.f32.mrb[0].mxu0
      %526 = vmatprep.mubr.f32.mxu0 0.0
      %527 = vmatmul.mubr.f32.gmra.mrb[0].mxu0 %v347
      %v528 = vpop.f32.mrb[0].mxu0
      %v529 = vadd.f32 0.0, %v528
      %v530 = vpop.f32.mrb[0].mxu0
      %531 = vmatprep.mubr.f32.mxu0 0.0
      %532 = vmatmul.mubr.f32.gmra.mrb[0].mxu0 %v350
      %v533 = vpop.f32.mrb[0].mxu0
      %v534 = vadd.f32 0.0, %v533
      %v535 = vpop.f32.mrb[0].mxu0
      %536 = vmatprep.mubr.f32.mxu0 0.0
      %537 = vmatmul.mubr.f32.gmra.mrb[0].mxu0 %v353
      %v538 = vpop.f32.mrb[0].mxu0
      %v539 = vadd.f32 0.0, %v538
      %v540 = vpop.f32.mrb[0].mxu0
      %541 = vmatprep.mubr.f32.mxu0 0.0
      %542 = vmatmul.mubr.f32.gmra.mrb[0].mxu0 %v356
      %v543 = vpop.f32.mrb[0].mxu0
      %v544 = vadd.f32 0.0, %v543
      %v545 = vpop.f32.mrb[0].mxu0
      %546 = vmatprep.mubr.f32.mxu0 0.0
      %547 = vmatmul.mubr.f32.gmra.mrb[0].mxu0 %v359
      %v548 = vpop.f32.mrb[0].mxu0
      %v549 = vadd.f32 0.0, %v548
      %v550 = vpop.f32.mrb[0].mxu0
      %551 = vmatprep.mubr.f32.mxu0 0.0
      %552 = vmatmul.mubr.f32.gmra.mrb[0].mxu0 %v362
      %v553 = vpop.f32.mrb[0].mxu0
      %v554 = vadd.f32 0.0, %v553
      %v555 = vpop.f32.mrb[0].mxu0
      %556 = vmatprep.mubr.f32.mxu0 0.0
      %557 = vmatmul.mubr.f32.gmra.mrb[0].mxu0 %v365
      %v558 = vpop.f32.mrb[0].mxu0
      %v559 = vadd.f32 0.0, %v558
      %v560 = vpop.f32.mrb[0].mxu0
      %561 = vmatprep.mubr.f32.mxu0 0.0
      %562 = vmatmul.mubr.f32.gmra.mrb[0].mxu0 %v368
      %v563 = vpop.f32.mrb[0].mxu0
      %v564 = vadd.f32 0.0, %v563
      %v565 = vpop.f32.mrb[0].mxu0
      %566 = vmatprep.mubr.f32.mxu0 0.0
      %567 = vmatmul.mubr.f32.gmra.mrb[0].mxu0 %v371
      %v568 = vpop.f32.mrb[0].mxu0
      %v569 = vadd.f32 0.0, %v568
      %v570 = vpop.f32.mrb[0].mxu0
      %571 = vmatprep.mubr.f32.mxu0 0.0
      %572 = vmatmul.mubr.f32.gmra.mrb[0].mxu0 %v374
      %v573 = vpop.f32.mrb[0].mxu0
      %v574 = vadd.f32 0.0, %v573
      %v575 = vpop.f32.mrb[0].mxu0
      %576 = vmatprep.mubr.f32.mxu0 0.0
      %577 = vmatmul.mubr.f32.gmra.mrb[0].mxu0 %v377
      %v578 = vpop.f32.mrb[0].mxu0
      %v579 = vadd.f32 0.0, %v578
      %v580 = vpop.f32.mrb[0].mxu0
      %581 = vmatprep.mubr.f32.mxu0 0.0
      %582 = vmatmul.mubr.f32.gmra.mrb[0].mxu0 %v380
      %v583 = vpop.f32.mrb[0].mxu0
      %v584 = vadd.f32 0.0, %v583
      %v585 = vpop.f32.mrb[0].mxu0
      %586 = vmatprep.mubr.f32.mxu0 0.0
      %587 = vmatmul.mubr.f32.gmra.mrb[0].mxu0 %v383
      %v588 = vpop.f32.mrb[0].mxu0
      %v589 = vadd.f32 0.0, %v588
      %v590 = vpop.f32.mrb[0].mxu0
      %591 = vmatprep.mubr.f32.mxu0 0.0
      %592 = vmatmul.mubr.f32.gmra.mrb[0].mxu0 %v386
      %v593 = vpop.f32.mrb[0].mxu0
      %v594 = vadd.f32 0.0, %v593
      %v595 = vpop.f32.mrb[0].mxu0
      %596 = vmatprep.mubr.f32.mxu0 0.0
      %597 = vmatmul.mubr.f32.gmra.mrb[0].mxu0 %v389
      %v598 = vpop.f32.mrb[0].mxu0
      %v599 = vadd.f32 0.0, %v598
      %v600 = vpop.f32.mrb[0].mxu0
      %601 = vmatprep.mubr.f32.mxu0 0.0
      %602 = vmatmul.mubr.f32.gmra.mrb[0].mxu0 %v392
      %v603 = vpop.f32.mrb[0].mxu0
      %v604 = vadd.f32 0.0, %v603
      %v605 = vpop.f32.mrb[0].mxu0
      %606 = vmatprep.mubr.f32.mxu0 0.0
      %607 = vmatmul.mubr.f32.gmra.mrb[0].mxu0 %v395
      %v608 = vpop.f32.mrb[0].mxu0
      %v609 = vadd.f32 0.0, %v608
      %v610 = vpop.f32.mrb[0].mxu0
      %611 = vmatprep.mubr.f32.mxu0 0.0
      %612 = vmatmul.mubr.f32.gmra.mrb[0].mxu0 %v398
      %v613 = vpop.f32.mrb[0].mxu0
      %v614 = vadd.f32 0.0, %v613
      %v615 = vpop.f32.mrb[0].mxu0
      %616 = vmatprep.mubr.f32.mxu0 0.0
      %617 = vmatmul.mubr.f32.gmra.mrb[0].mxu0 %v401
      %v618 = vpop.f32.mrb[0].mxu0
      %v619 = vadd.f32 0.0, %v618
      %v620 = vpop.f32.mrb[0].mxu0
      %621 = vmatprep.mubr.f32.mxu0 0.0
      %622 = vmatmul.mubr.f32.gmra.mrb[0].mxu0 %v404
      %v623 = vpop.f32.mrb[0].mxu0
      %v624 = vadd.f32 0.0, %v623
      %v625 = vpop.f32.mrb[0].mxu0
      %626 = vmatprep.mubr.f32.mxu0 0.0
      %627 = vmatmul.mubr.f32.gmra.mrb[0].mxu0 %v407
      %v628 = vpop.f32.mrb[0].mxu0
      %v629 = vadd.f32 0.0, %v628
      %v630 = vpop.f32.mrb[0].mxu0
      %631 = vmatprep.mubr.f32.mxu0 0.0
      %632 = vmatmul.mubr.f32.gmra.mrb[0].mxu0 %v410
      %v633 = vpop.f32.mrb[0].mxu0
      %v634 = vadd.f32 0.0, %v633
      %v635 = vpop.f32.mrb[0].mxu0
      %636 = vdwg.mxu0
      %v638 = vsel %vm315, %v242, 0
      %v641 = vsel %vm315, %v243, 0
      %v644 = vsel %vm315, %v244, 0
      %v647 = vsel %vm315, %v245, 0
      %v650 = vsel %vm315, %v246, 0
      %v653 = vsel %vm315, %v247, 0
      %v656 = vsel %vm315, %v248, 0
      %v659 = vsel %vm315, %v249, 0
      %v662 = vsel %vm315, %v250, 0
      %v665 = vsel %vm315, %v251, 0
      %v668 = vsel %vm315, %v252, 0
      %v671 = vsel %vm315, %v253, 0
      %v674 = vsel %vm315, %v254, 0
      %v677 = vsel %vm315, %v255, 0
      %v680 = vsel %vm315, %v256, 0
      %v683 = vsel %vm315, %v257, 0
      %v686 = vsel %vm315, %v258, 0
      %v689 = vsel %vm315, %v259, 0
      %v692 = vsel %vm315, %v260, 0
      %v695 = vsel %vm315, %v261, 0
      %v698 = vsel %vm315, %v262, 0
      %v701 = vsel %vm315, %v263, 0
      %v704 = vsel %vm315, %v264, 0
      %v707 = vsel %vm315, %v265, 0
      %v710 = vsel %vm315, %v266, 0
      %v713 = vsel %vm315, %v267, 0
      %v716 = vsel %vm315, %v268, 0
      %v719 = vsel %vm315, %v269, 0
      %v722 = vsel %vm315, %v270, 0
      %v725 = vsel %vm315, %v271, 0
      %v728 = vsel %vm315, %v272, 0
      %v731 = vsel %vm315, %v273, 0
      %733 = vmatprep.subr.mxu0 0.0
      %734 = vmatpush1.msra.mxu0 %v274
      %735 = vmatprep.subr.mxu0 0.0
      %736 = vmatpush1.msra.mxu0 %v275
      %737 = vmatprep.subr.mxu0 0.0
      %738 = vmatpush1.msra.mxu0 %v276
      %739 = vmatprep.subr.mxu0 0.0
      %740 = vmatpush1.msra.mxu0 %v277
      %741 = vmatprep.subr.mxu0 0.0
      %742 = vmatpush1.msra.mxu0 0.0
      %743 = vmatprep.subr.mxu0 0.0
      %744 = vmatpush1.msra.mxu0 0.0
      %745 = vmatprep.subr.mxu0 0.0
      %746 = vmatpush1.msra.mxu0 0.0
      %747 = vmatprep.subr.mxu0 0.0
      %748 = vmatpush1.msra.mxu0 0.0
      %749 = vmatprep.subr.mxu0 0.0
      %750 = vmatpush1.msra.mxu0 0.0
      %751 = vmatprep.subr.mxu0 0.0
      %752 = vmatpush1.msra.mxu0 0.0
      %753 = vmatprep.subr.mxu0 0.0
      %754 = vmatpush1.msra.mxu0 0.0
      %755 = vmatprep.subr.mxu0 0.0
      %756 = vmatpush1.msra.mxu0 0.0
      %757 = vmatprep.subr.mxu0 0.0
      %758 = vmatpush1.msra.mxu0 0.0
      %759 = vmatprep.subr.mxu0 0.0
      %760 = vmatpush1.msra.mxu0 0.0
      %761 = vmatprep.subr.mxu0 0.0
      %762 = vmatpush1.msra.mxu0 0.0
      %763 = vmatprep.subr.mxu0 0.0
      %764 = vmatpush1.msra.mxu0 0.0
      %765 = vmatprep.subr.mxu0 0.0
      %766 = vmatpush1.msra.mxu0 0.0
      %767 = vmatprep.subr.mxu0 0.0
      %768 = vmatpush1.msra.mxu0 0.0
      %769 = vmatprep.subr.mxu0 0.0
      %770 = vmatpush1.msra.mxu0 0.0
      %771 = vmatprep.subr.mxu0 0.0
      %772 = vmatpush1.msra.mxu0 0.0
      %773 = vmatprep.subr.mxu0 0.0
      %774 = vmatpush1.msra.mxu0 0.0
      %775 = vmatprep.subr.mxu0 0.0
      %776 = vmatpush1.msra.mxu0 0.0
      %777 = vmatprep.subr.mxu0 0.0
      %778 = vmatpush1.msra.mxu0 0.0
      %779 = vmatprep.subr.mxu0 0.0
      %780 = vmatpush1.msra.mxu0 0.0
      %781 = vmatprep.subr.mxu0 0.0
      %782 = vmatpush1.msra.mxu0 0.0
      %783 = vmatprep.subr.mxu0 0.0
      %784 = vmatpush1.msra.mxu0 0.0
      %785 = vmatprep.subr.mxu0 0.0
      %786 = vmatpush1.msra.mxu0 0.0
      %787 = vmatprep.subr.mxu0 0.0
      %788 = vmatpush1.msra.mxu0 0.0
      %789 = vmatprep.subr.mxu0 0.0
      %790 = vmatpush1.msra.mxu0 0.0
      %791 = vmatprep.subr.mxu0 0.0
      %792 = vmatpush1.msra.mxu0 0.0
      %793 = vmatprep.subr.mxu0 0.0
      %794 = vmatpush1.msra.mxu0 0.0
      %795 = vmatprep.subr.mxu0 0.0
      %796 = vmatpush1.msra.mxu0 0.0
      %797 = vmatprep.mubr.f32.mxu0 0.0
      %798 = vmatmul.mubr.f32.gmra.mrb[0].mxu0 %v638
      %v799 = vpop.f32.mrb[0].mxu0
      %v800 = vadd.f32 %v479, %v799
      %v801 = vpop.f32.mrb[0].mxu0
      %802 = vmatprep.mubr.f32.mxu0 0.0
      %803 = vmatmul.mubr.f32.gmra.mrb[0].mxu0 %v641
      %v804 = vpop.f32.mrb[0].mxu0
      %v805 = vadd.f32 %v484, %v804
      %v806 = vpop.f32.mrb[0].mxu0
      %807 = vmatprep.mubr.f32.mxu0 0.0
      %808 = vmatmul.mubr.f32.gmra.mrb[0].mxu0 %v644
      %v809 = vpop.f32.mrb[0].mxu0
      %v810 = vadd.f32 %v489, %v809
      %v811 = vpop.f32.mrb[0].mxu0
      %812 = vmatprep.mubr.f32.mxu0 0.0
      %813 = vmatmul.mubr.f32.gmra.mrb[0].mxu0 %v647
      %v814 = vpop.f32.mrb[0].mxu0
      %v815 = vadd.f32 %v494, %v814
      %v816 = vpop.f32.mrb[0].mxu0
      %817 = vmatprep.mubr.f32.mxu0 0.0
      %818 = vmatmul.mubr.f32.gmra.mrb[0].mxu0 %v650
      %v819 = vpop.f32.mrb[0].mxu0
      %v820 = vadd.f32 %v499, %v819
      %v821 = vpop.f32.mrb[0].mxu0
      %822 = vmatprep.mubr.f32.mxu0 0.0
      %823 = vmatmul.mubr.f32.gmra.mrb[0].mxu0 %v653
      %v824 = vpop.f32.mrb[0].mxu0
      %v825 = vadd.f32 %v504, %v824
      %v826 = vpop.f32.mrb[0].mxu0
      %827 = vmatprep.mubr.f32.mxu0 0.0
      %828 = vmatmul.mubr.f32.gmra.mrb[0].mxu0 %v656
      %v829 = vpop.f32.mrb[0].mxu0
      %v830 = vadd.f32 %v509, %v829
      %v831 = vpop.f32.mrb[0].mxu0
      %832 = vmatprep.mubr.f32.mxu0 0.0
      %833 = vmatmul.mubr.f32.gmra.mrb[0].mxu0 %v659
      %v834 = vpop.f32.mrb[0].mxu0
      %v835 = vadd.f32 %v514, %v834
      %v836 = vpop.f32.mrb[0].mxu0
      %837 = vmatprep.mubr.f32.mxu0 0.0
      %838 = vmatmul.mubr.f32.gmra.mrb[0].mxu0 %v662
      %v839 = vpop.f32.mrb[0].mxu0
      %v840 = vadd.f32 %v519, %v839
      %v841 = vpop.f32.mrb[0].mxu0
      %842 = vmatprep.mubr.f32.mxu0 0.0
      %843 = vmatmul.mubr.f32.gmra.mrb[0].mxu0 %v665
      %v844 = vpop.f32.mrb[0].mxu0
      %v845 = vadd.f32 %v524, %v844
      %v846 = vpop.f32.mrb[0].mxu0
      %847 = vmatprep.mubr.f32.mxu0 0.0
      %848 = vmatmul.mubr.f32.gmra.mrb[0].mxu0 %v668
      %v849 = vpop.f32.mrb[0].mxu0
      %v850 = vadd.f32 %v529, %v849
      %v851 = vpop.f32.mrb[0].mxu0
      %852 = vmatprep.mubr.f32.mxu0 0.0
      %853 = vmatmul.mubr.f32.gmra.mrb[0].mxu0 %v671
      %v854 = vpop.f32.mrb[0].mxu0
      %v855 = vadd.f32 %v534, %v854
      %v856 = vpop.f32.mrb[0].mxu0
      %857 = vmatprep.mubr.f32.mxu0 0.0
      %858 = vmatmul.mubr.f32.gmra.mrb[0].mxu0 %v674
      %v859 = vpop.f32.mrb[0].mxu0
      %v860 = vadd.f32 %v539, %v859
      %v861 = vpop.f32.mrb[0].mxu0
      %862 = vmatprep.mubr.f32.mxu0 0.0
      %863 = vmatmul.mubr.f32.gmra.mrb[0].mxu0 %v677
      %v864 = vpop.f32.mrb[0].mxu0
      %v865 = vadd.f32 %v544, %v864
      %v866 = vpop.f32.mrb[0].mxu0
      %867 = vmatprep.mubr.f32.mxu0 0.0
      %868 = vmatmul.mubr.f32.gmra.mrb[0].mxu0 %v680
      %v869 = vpop.f32.mrb[0].mxu0
      %v870 = vadd.f32 %v549, %v869
      %v871 = vpop.f32.mrb[0].mxu0
      %872 = vmatprep.mubr.f32.mxu0 0.0
      %873 = vmatmul.mubr.f32.gmra.mrb[0].mxu0 %v683
      %v874 = vpop.f32.mrb[0].mxu0
      %v875 = vadd.f32 %v554, %v874
      %v876 = vpop.f32.mrb[0].mxu0
      %877 = vmatprep.mubr.f32.mxu0 0.0
      %878 = vmatmul.mubr.f32.gmra.mrb[0].mxu0 %v686
      %v879 = vpop.f32.mrb[0].mxu0
      %v880 = vadd.f32 %v559, %v879
      %v881 = vpop.f32.mrb[0].mxu0
      %882 = vmatprep.mubr.f32.mxu0 0.0
      %883 = vmatmul.mubr.f32.gmra.mrb[0].mxu0 %v689
      %v884 = vpop.f32.mrb[0].mxu0
      %v885 = vadd.f32 %v564, %v884
      %v886 = vpop.f32.mrb[0].mxu0
      %887 = vmatprep.mubr.f32.mxu0 0.0
      %888 = vmatmul.mubr.f32.gmra.mrb[0].mxu0 %v692
      %v889 = vpop.f32.mrb[0].mxu0
      %v890 = vadd.f32 %v569, %v889
      %v891 = vpop.f32.mrb[0].mxu0
      %892 = vmatprep.mubr.f32.mxu0 0.0
      %893 = vmatmul.mubr.f32.gmra.mrb[0].mxu0 %v695
      %v894 = vpop.f32.mrb[0].mxu0
      %v895 = vadd.f32 %v574, %v894
      %v896 = vpop.f32.mrb[0].mxu0
      %897 = vmatprep.mubr.f32.mxu0 0.0
      %898 = vmatmul.mubr.f32.gmra.mrb[0].mxu0 %v698
      %v899 = vpop.f32.mrb[0].mxu0
      %v900 = vadd.f32 %v579, %v899
      %v901 = vpop.f32.mrb[0].mxu0
      %902 = vmatprep.mubr.f32.mxu0 0.0
      %903 = vmatmul.mubr.f32.gmra.mrb[0].mxu0 %v701
      %v904 = vpop.f32.mrb[0].mxu0
      %v905 = vadd.f32 %v584, %v904
      %v906 = vpop.f32.mrb[0].mxu0
      %907 = vmatprep.mubr.f32.mxu0 0.0
      %908 = vmatmul.mubr.f32.gmra.mrb[0].mxu0 %v704
      %v909 = vpop.f32.mrb[0].mxu0
      %v910 = vadd.f32 %v589, %v909
      %v911 = vpop.f32.mrb[0].mxu0
      %912 = vmatprep.mubr.f32.mxu0 0.0
      %913 = vmatmul.mubr.f32.gmra.mrb[0].mxu0 %v707
      %v914 = vpop.f32.mrb[0].mxu0
      %v915 = vadd.f32 %v594, %v914
      %v916 = vpop.f32.mrb[0].mxu0
      %917 = vmatprep.mubr.f32.mxu0 0.0
      %918 = vmatmul.mubr.f32.gmra.mrb[0].mxu0 %v710
      %v919 = vpop.f32.mrb[0].mxu0
      %v920 = vadd.f32 %v599, %v919
      %v921 = vpop.f32.mrb[0].mxu0
      %922 = vmatprep.mubr.f32.mxu0 0.0
      %923 = vmatmul.mubr.f32.gmra.mrb[0].mxu0 %v713
      %v924 = vpop.f32.mrb[0].mxu0
      %v925 = vadd.f32 %v604, %v924
      %v926 = vpop.f32.mrb[0].mxu0
      %927 = vmatprep.mubr.f32.mxu0 0.0
      %928 = vmatmul.mubr.f32.gmra.mrb[0].mxu0 %v716
      %v929 = vpop.f32.mrb[0].mxu0
      %v930 = vadd.f32 %v609, %v929
      %v931 = vpop.f32.mrb[0].mxu0
      %932 = vmatprep.mubr.f32.mxu0 0.0
      %933 = vmatmul.mubr.f32.gmra.mrb[0].mxu0 %v719
      %v934 = vpop.f32.mrb[0].mxu0
      %v935 = vadd.f32 %v614, %v934
      %v936 = vpop.f32.mrb[0].mxu0
      %937 = vmatprep.mubr.f32.mxu0 0.0
      %938 = vmatmul.mubr.f32.gmra.mrb[0].mxu0 %v722
      %v939 = vpop.f32.mrb[0].mxu0
      %v940 = vadd.f32 %v619, %v939
      %v941 = vpop.f32.mrb[0].mxu0
      %942 = vmatprep.mubr.f32.mxu0 0.0
      %943 = vmatmul.mubr.f32.gmra.mrb[0].mxu0 %v725
      %v944 = vpop.f32.mrb[0].mxu0
      %v945 = vadd.f32 %v624, %v944
      %v946 = vpop.f32.mrb[0].mxu0
      %947 = vmatprep.mubr.f32.mxu0 0.0
      %948 = vmatmul.mubr.f32.gmra.mrb[0].mxu0 %v728
      %v949 = vpop.f32.mrb[0].mxu0
      %v950 = vadd.f32 %v629, %v949
      %v951 = vpop.f32.mrb[0].mxu0
      %952 = vmatprep.mubr.f32.mxu0 0.0
      %953 = vmatmul.mubr.f32.gmra.mrb[0].mxu0 %v731
      %v954 = vpop.f32.mrb[0].mxu0
      %v955 = vadd.f32 %v634, %v954
      %v956 = vpop.f32.mrb[0].mxu0
      %957 = vdwg.mxu0
      %v958 = vld [vmem:[%s230 + $0x2] sm:$0xff]
      %v959 = vld [vmem:[%s230 + $0xa] sm:$0xff]
      %v960 = vld [vmem:[%s230 + $0x1a] sm:$0xff]
      %v961 = vld [vmem:[%s230 + $0x22] sm:$0xff]
      %v962 = vld [vmem:[%s230 + $0x32] sm:$0xff]
      %v963 = vld [vmem:[%s230 + $0x3a] sm:$0xff]
      %v964 = vld [vmem:[%s230 + $0x4a] sm:$0xff]
      %v965 = vld [vmem:[%s230 + $0x52] sm:$0xff]
      %v966 = vld [vmem:[%s230 + $0x62] sm:$0xff]
      %v967 = vld [vmem:[%s230 + $0x6a] sm:$0xff]
      %v968 = vld [vmem:[%s230 + $0x7a] sm:$0xff]
      %v969 = vld [vmem:[%s230 + $0x82] sm:$0xff]
      %v970 = vld [vmem:[%s230 + $0x92] sm:$0xff]
      %v971 = vld [vmem:[%s230 + $0x9a] sm:$0xff]
      %v972 = vld [vmem:[%s230 + $0xaa] sm:$0xff]
      %v973 = vld [vmem:[%s230 + $0xb2] sm:$0xff]
      %v974 = vld [vmem:[%s230 + $0xc2] sm:$0xff]
      %v975 = vld [vmem:[%s230 + $0xca] sm:$0xff]
      %v976 = vld [vmem:[%s230 + $0xda] sm:$0xff]
      %v977 = vld [vmem:[%s230 + $0xe2] sm:$0xff]
      %v978 = vld [vmem:[%s230 + $0xf2] sm:$0xff]
      %v979 = vld [vmem:[%s230 + $0xfa] sm:$0xff]
      %v980 = vld [vmem:[%s230 + $0x10a] sm:$0xff]
      %v981 = vld [vmem:[%s230 + $0x112] sm:$0xff]
      %v982 = vld [vmem:[%s230 + $0x122] sm:$0xff]
      %v983 = vld [vmem:[%s230 + $0x12a] sm:$0xff]
      %v984 = vld [vmem:[%s230 + $0x13a] sm:$0xff]
      %v985 = vld [vmem:[%s230 + $0x142] sm:$0xff]
      %v986 = vld [vmem:[%s230 + $0x152] sm:$0xff]
      %v987 = vld [vmem:[%s230 + $0x15a] sm:$0xff]
      %v988 = vld [vmem:[%s230 + $0x16a] sm:$0xff]
      %v989 = vld [vmem:[%s230 + $0x172] sm:$0xff]
      %s990 = scalar_lea.vmem %s1, 64
      %v991 = vld [vmem:[%s990] sm:$0xff]
      %v992 = vld [vmem:[%s990 + $0x8] sm:$0xff]
      %v993 = vld [vmem:[%s990 + $0x10] sm:$0xff]
      %v994 = vld [vmem:[%s990 + $0x18] sm:$0xff]
      %v996 = vsel %vm315, %v958, 0
      %v999 = vsel %vm315, %v959, 0
      %v1002 = vsel %vm315, %v960, 0
      %v1005 = vsel %vm315, %v961, 0
      %v1008 = vsel %vm315, %v962, 0
      %v1011 = vsel %vm315, %v963, 0
      %v1014 = vsel %vm315, %v964, 0
      %v1017 = vsel %vm315, %v965, 0
      %v1020 = vsel %vm315, %v966, 0
      %v1023 = vsel %vm315, %v967, 0
      %v1026 = vsel %vm315, %v968, 0
      %v1029 = vsel %vm315, %v969, 0
      %v1032 = vsel %vm315, %v970, 0
      %v1035 = vsel %vm315, %v971, 0
      %v1038 = vsel %vm315, %v972, 0
      %v1041 = vsel %vm315, %v973, 0
      %v1044 = vsel %vm315, %v974, 0
      %v1047 = vsel %vm315, %v975, 0
      %v1050 = vsel %vm315, %v976, 0
      %v1053 = vsel %vm315, %v977, 0
      %v1056 = vsel %vm315, %v978, 0
      %v1059 = vsel %vm315, %v979, 0
      %v1062 = vsel %vm315, %v980, 0
      %v1065 = vsel %vm315, %v981, 0
      %v1068 = vsel %vm315, %v982, 0
      %v1071 = vsel %vm315, %v983, 0
      %v1074 = vsel %vm315, %v984, 0
      %v1077 = vsel %vm315, %v985, 0
      %v1080 = vsel %vm315, %v986, 0
      %v1083 = vsel %vm315, %v987, 0
      %v1086 = vsel %vm315, %v988, 0
      %v1089 = vsel %vm315, %v989, 0
      %1091 = vmatprep.subr.mxu0 0.0
      %1092 = vmatpush1.msra.mxu0 %v991
      %1093 = vmatprep.subr.mxu0 0.0
      %1094 = vmatpush1.msra.mxu0 %v992
      %1095 = vmatprep.subr.mxu0 0.0
      %1096 = vmatpush1.msra.mxu0 %v993
      %1097 = vmatprep.subr.mxu0 0.0
      %1098 = vmatpush1.msra.mxu0 %v994
      %1099 = vmatprep.subr.mxu0 0.0
      %1100 = vmatpush1.msra.mxu0 0.0
      %1101 = vmatprep.subr.mxu0 0.0
      %1102 = vmatpush1.msra.mxu0 0.0
      %1103 = vmatprep.subr.mxu0 0.0
      %1104 = vmatpush1.msra.mxu0 0.0
      %1105 = vmatprep.subr.mxu0 0.0
      %1106 = vmatpush1.msra.mxu0 0.0
      %1107 = vmatprep.subr.mxu0 0.0
      %1108 = vmatpush1.msra.mxu0 0.0
      %1109 = vmatprep.subr.mxu0 0.0
      %1110 = vmatpush1.msra.mxu0 0.0
      %1111 = vmatprep.subr.mxu0 0.0
      %1112 = vmatpush1.msra.mxu0 0.0
      %1113 = vmatprep.subr.mxu0 0.0
      %1114 = vmatpush1.msra.mxu0 0.0
      %1115 = vmatprep.subr.mxu0 0.0
      %1116 = vmatpush1.msra.mxu0 0.0
      %1117 = vmatprep.subr.mxu0 0.0
      %1118 = vmatpush1.msra.mxu0 0.0
      %1119 = vmatprep.subr.mxu0 0.0
      %1120 = vmatpush1.msra.mxu0 0.0
      %1121 = vmatprep.subr.mxu0 0.0
      %1122 = vmatpush1.msra.mxu0 0.0
      %1123 = vmatprep.subr.mxu0 0.0
      %1124 = vmatpush1.msra.mxu0 0.0
      %1125 = vmatprep.subr.mxu0 0.0
      %1126 = vmatpush1.msra.mxu0 0.0
      %1127 = vmatprep.subr.mxu0 0.0
      %1128 = vmatpush1.msra.mxu0 0.0
      %1129 = vmatprep.subr.mxu0 0.0
      %1130 = vmatpush1.msra.mxu0 0.0
      %1131 = vmatprep.subr.mxu0 0.0
      %1132 = vmatpush1.msra.mxu0 0.0
      %1133 = vmatprep.subr.mxu0 0.0
      %1134 = vmatpush1.msra.mxu0 0.0
      %1135 = vmatprep.subr.mxu0 0.0
      %1136 = vmatpush1.msra.mxu0 0.0
      %1137 = vmatprep.subr.mxu0 0.0
      %1138 = vmatpush1.msra.mxu0 0.0
      %1139 = vmatprep.subr.mxu0 0.0
      %1140 = vmatpush1.msra.mxu0 0.0
      %1141 = vmatprep.subr.mxu0 0.0
      %1142 = vmatpush1.msra.mxu0 0.0
      %1143 = vmatprep.subr.mxu0 0.0
      %1144 = vmatpush1.msra.mxu0 0.0
      %1145 = vmatprep.subr.mxu0 0.0
      %1146 = vmatpush1.msra.mxu0 0.0
      %1147 = vmatprep.subr.mxu0 0.0
      %1148 = vmatpush1.msra.mxu0 0.0
      %1149 = vmatprep.subr.mxu0 0.0
      %1150 = vmatpush1.msra.mxu0 0.0
      %1151 = vmatprep.subr.mxu0 0.0
      %1152 = vmatpush1.msra.mxu0 0.0
      %1153 = vmatprep.subr.mxu0 0.0
      %1154 = vmatpush1.msra.mxu0 0.0
      %1155 = vmatprep.mubr.f32.mxu0 0.0
      %1156 = vmatmul.mubr.f32.gmra.mrb[0].mxu0 %v996
      %v1157 = vpop.f32.mrb[0].mxu0
      %v1158 = vadd.f32 0.0, %v1157
      %v1159 = vpop.f32.mrb[0].mxu0
      %1160 = vmatprep.mubr.f32.mxu0 0.0
      %1161 = vmatmul.mubr.f32.gmra.mrb[0].mxu0 %v999
      %v1162 = vpop.f32.mrb[0].mxu0
      %v1163 = vadd.f32 0.0, %v1162
      %v1164 = vpop.f32.mrb[0].mxu0
      %1165 = vmatprep.mubr.f32.mxu0 0.0
      %1166 = vmatmul.mubr.f32.gmra.mrb[0].mxu0 %v1002
      %v1167 = vpop.f32.mrb[0].mxu0
      %v1168 = vadd.f32 0.0, %v1167
      %v1169 = vpop.f32.mrb[0].mxu0
      %1170 = vmatprep.mubr.f32.mxu0 0.0
      %1171 = vmatmul.mubr.f32.gmra.mrb[0].mxu0 %v1005
      %v1172 = vpop.f32.mrb[0].mxu0
      %v1173 = vadd.f32 0.0, %v1172
      %v1174 = vpop.f32.mrb[0].mxu0
      %1175 = vmatprep.mubr.f32.mxu0 0.0
      %1176 = vmatmul.mubr.f32.gmra.mrb[0].mxu0 %v1008
      %v1177 = vpop.f32.mrb[0].mxu0
      %v1178 = vadd.f32 0.0, %v1177
      %v1179 = vpop.f32.mrb[0].mxu0
      %1180 = vmatprep.mubr.f32.mxu0 0.0
      %1181 = vmatmul.mubr.f32.gmra.mrb[0].mxu0 %v1011
      %v1182 = vpop.f32.mrb[0].mxu0
      %v1183 = vadd.f32 0.0, %v1182
      %v1184 = vpop.f32.mrb[0].mxu0
      %1185 = vmatprep.mubr.f32.mxu0 0.0
      %1186 = vmatmul.mubr.f32.gmra.mrb[0].mxu0 %v1014
      %v1187 = vpop.f32.mrb[0].mxu0
      %v1188 = vadd.f32 0.0, %v1187
      %v1189 = vpop.f32.mrb[0].mxu0
      %1190 = vmatprep.mubr.f32.mxu0 0.0
      %1191 = vmatmul.mubr.f32.gmra.mrb[0].mxu0 %v1017
      %v1192 = vpop.f32.mrb[0].mxu0
      %v1193 = vadd.f32 0.0, %v1192
      %v1194 = vpop.f32.mrb[0].mxu0
      %1195 = vmatprep.mubr.f32.mxu0 0.0
      %1196 = vmatmul.mubr.f32.gmra.mrb[0].mxu0 %v1020
      %v1197 = vpop.f32.mrb[0].mxu0
      %v1198 = vadd.f32 0.0, %v1197
      %v1199 = vpop.f32.mrb[0].mxu0
      %1200 = vmatprep.mubr.f32.mxu0 0.0
      %1201 = vmatmul.mubr.f32.gmra.mrb[0].mxu0 %v1023
      %v1202 = vpop.f32.mrb[0].mxu0
      %v1203 = vadd.f32 0.0, %v1202
      %v1204 = vpop.f32.mrb[0].mxu0
      %1205 = vmatprep.mubr.f32.mxu0 0.0
      %1206 = vmatmul.mubr.f32.gmra.mrb[0].mxu0 %v1026
      %v1207 = vpop.f32.mrb[0].mxu0
      %v1208 = vadd.f32 0.0, %v1207
      %v1209 = vpop.f32.mrb[0].mxu0
      %1210 = vmatprep.mubr.f32.mxu0 0.0
      %1211 = vmatmul.mubr.f32.gmra.mrb[0].mxu0 %v1029
      %v1212 = vpop.f32.mrb[0].mxu0
      %v1213 = vadd.f32 0.0, %v1212
      %v1214 = vpop.f32.mrb[0].mxu0
      %1215 = vmatprep.mubr.f32.mxu0 0.0
      %1216 = vmatmul.mubr.f32.gmra.mrb[0].mxu0 %v1032
      %v1217 = vpop.f32.mrb[0].mxu0
      %v1218 = vadd.f32 0.0, %v1217
      %v1219 = vpop.f32.mrb[0].mxu0
      %1220 = vmatprep.mubr.f32.mxu0 0.0
      %1221 = vmatmul.mubr.f32.gmra.mrb[0].mxu0 %v1035
      %v1222 = vpop.f32.mrb[0].mxu0
      %v1223 = vadd.f32 0.0, %v1222
      %v1224 = vpop.f32.mrb[0].mxu0
      %1225 = vmatprep.mubr.f32.mxu0 0.0
      %1226 = vmatmul.mubr.f32.gmra.mrb[0].mxu0 %v1038
      %v1227 = vpop.f32.mrb[0].mxu0
      %v1228 = vadd.f32 0.0, %v1227
      %v1229 = vpop.f32.mrb[0].mxu0
      %1230 = vmatprep.mubr.f32.mxu0 0.0
      %1231 = vmatmul.mubr.f32.gmra.mrb[0].mxu0 %v1041
      %v1232 = vpop.f32.mrb[0].mxu0
      %v1233 = vadd.f32 0.0, %v1232
      %v1234 = vpop.f32.mrb[0].mxu0
      %1235 = vmatprep.mubr.f32.mxu0 0.0
      %1236 = vmatmul.mubr.f32.gmra.mrb[0].mxu0 %v1044
      %v1237 = vpop.f32.mrb[0].mxu0
      %v1238 = vadd.f32 0.0, %v1237
      %v1239 = vpop.f32.mrb[0].mxu0
      %1240 = vmatprep.mubr.f32.mxu0 0.0
      %1241 = vmatmul.mubr.f32.gmra.mrb[0].mxu0 %v1047
      %v1242 = vpop.f32.mrb[0].mxu0
      %v1243 = vadd.f32 0.0, %v1242
      %v1244 = vpop.f32.mrb[0].mxu0
      %1245 = vmatprep.mubr.f32.mxu0 0.0
      %1246 = vmatmul.mubr.f32.gmra.mrb[0].mxu0 %v1050
      %v1247 = vpop.f32.mrb[0].mxu0
      %v1248 = vadd.f32 0.0, %v1247
      %v1249 = vpop.f32.mrb[0].mxu0
      %1250 = vmatprep.mubr.f32.mxu0 0.0
      %1251 = vmatmul.mubr.f32.gmra.mrb[0].mxu0 %v1053
      %v1252 = vpop.f32.mrb[0].mxu0
      %v1253 = vadd.f32 0.0, %v1252
      %v1254 = vpop.f32.mrb[0].mxu0
      %1255 = vmatprep.mubr.f32.mxu0 0.0
      %1256 = vmatmul.mubr.f32.gmra.mrb[0].mxu0 %v1056
      %v1257 = vpop.f32.mrb[0].mxu0
      %v1258 = vadd.f32 0.0, %v1257
      %v1259 = vpop.f32.mrb[0].mxu0
      %1260 = vmatprep.mubr.f32.mxu0 0.0
      %1261 = vmatmul.mubr.f32.gmra.mrb[0].mxu0 %v1059
      %v1262 = vpop.f32.mrb[0].mxu0
      %v1263 = vadd.f32 0.0, %v1262
      %v1264 = vpop.f32.mrb[0].mxu0
      %1265 = vmatprep.mubr.f32.mxu0 0.0
      %1266 = vmatmul.mubr.f32.gmra.mrb[0].mxu0 %v1062
      %v1267 = vpop.f32.mrb[0].mxu0
      %v1268 = vadd.f32 0.0, %v1267
      %v1269 = vpop.f32.mrb[0].mxu0
      %1270 = vmatprep.mubr.f32.mxu0 0.0
      %1271 = vmatmul.mubr.f32.gmra.mrb[0].mxu0 %v1065
      %v1272 = vpop.f32.mrb[0].mxu0
      %v1273 = vadd.f32 0.0, %v1272
      %v1274 = vpop.f32.mrb[0].mxu0
      %1275 = vmatprep.mubr.f32.mxu0 0.0
      %1276 = vmatmul.mubr.f32.gmra.mrb[0].mxu0 %v1068
      %v1277 = vpop.f32.mrb[0].mxu0
      %v1278 = vadd.f32 0.0, %v1277
      %v1279 = vpop.f32.mrb[0].mxu0
      %1280 = vmatprep.mubr.f32.mxu0 0.0
      %1281 = vmatmul.mubr.f32.gmra.mrb[0].mxu0 %v1071
      %v1282 = vpop.f32.mrb[0].mxu0
      %v1283 = vadd.f32 0.0, %v1282
      %v1284 = vpop.f32.mrb[0].mxu0
      %1285 = vmatprep.mubr.f32.mxu0 0.0
      %1286 = vmatmul.mubr.f32.gmra.mrb[0].mxu0 %v1074
      %v1287 = vpop.f32.mrb[0].mxu0
      %v1288 = vadd.f32 0.0, %v1287
      %v1289 = vpop.f32.mrb[0].mxu0
      %1290 = vmatprep.mubr.f32.mxu0 0.0
      %1291 = vmatmul.mubr.f32.gmra.mrb[0].mxu0 %v1077
      %v1292 = vpop.f32.mrb[0].mxu0
      %v1293 = vadd.f32 0.0, %v1292
      %v1294 = vpop.f32.mrb[0].mxu0
      %1295 = vmatprep.mubr.f32.mxu0 0.0
      %1296 = vmatmul.mubr.f32.gmra.mrb[0].mxu0 %v1080
      %v1297 = vpop.f32.mrb[0].mxu0
      %v1298 = vadd.f32 0.0, %v1297
      %v1299 = vpop.f32.mrb[0].mxu0
      %1300 = vmatprep.mubr.f32.mxu0 0.0
      %1301 = vmatmul.mubr.f32.gmra.mrb[0].mxu0 %v1083
      %v1302 = vpop.f32.mrb[0].mxu0
      %v1303 = vadd.f32 0.0, %v1302
      %v1304 = vpop.f32.mrb[0].mxu0
      %1305 = vmatprep.mubr.f32.mxu0 0.0
      %1306 = vmatmul.mubr.f32.gmra.mrb[0].mxu0 %v1086
      %v1307 = vpop.f32.mrb[0].mxu0
      %v1308 = vadd.f32 0.0, %v1307
      %v1309 = vpop.f32.mrb[0].mxu0
      %1310 = vmatprep.mubr.f32.mxu0 0.0
      %1311 = vmatmul.mubr.f32.gmra.mrb[0].mxu0 %v1089
      %v1312 = vpop.f32.mrb[0].mxu0
      %v1313 = vadd.f32 0.0, %v1312
      %v1314 = vpop.f32.mrb[0].mxu0
      %1315 = vdwg.mxu0
      %v1316 = vadd.f32 %v800, %v1158
      %v1317 = vadd.f32 %v805, %v1163
      %v1318 = vadd.f32 %v810, %v1168
      %v1319 = vadd.f32 %v815, %v1173
      %v1320 = vadd.f32 %v820, %v1178
      %v1321 = vadd.f32 %v825, %v1183
      %v1322 = vadd.f32 %v830, %v1188
      %v1323 = vadd.f32 %v835, %v1193
      %v1324 = vadd.f32 %v840, %v1198
      %v1325 = vadd.f32 %v845, %v1203
      %v1326 = vadd.f32 %v850, %v1208
      %v1327 = vadd.f32 %v855, %v1213
      %v1328 = vadd.f32 %v860, %v1218
      %v1329 = vadd.f32 %v865, %v1223
      %v1330 = vadd.f32 %v870, %v1228
      %v1331 = vadd.f32 %v875, %v1233
      %v1332 = vadd.f32 %v880, %v1238
      %v1333 = vadd.f32 %v885, %v1243
      %v1334 = vadd.f32 %v890, %v1248
      %v1335 = vadd.f32 %v895, %v1253
      %v1336 = vadd.f32 %v900, %v1258
      %v1337 = vadd.f32 %v905, %v1263
      %v1338 = vadd.f32 %v910, %v1268
      %v1339 = vadd.f32 %v915, %v1273
      %v1340 = vadd.f32 %v920, %v1278
      %v1341 = vadd.f32 %v925, %v1283
      %v1342 = vadd.f32 %v930, %v1288
      %v1343 = vadd.f32 %v935, %v1293
      %v1344 = vadd.f32 %v940, %v1298
      %v1345 = vadd.f32 %v945, %v1303
      %v1346 = vadd.f32 %v950, %v1308
      %v1347 = vadd.f32 %v955, %v1313
      %s1348 = scalar_lea.vmem %s230, 24
      %v1349 = vld [vmem:[%s1348] sm:$0xff]
      %v1350 = vld [vmem:[%s1348 + $0x8] sm:$0xff]
      %v1351 = vld [vmem:[%s1348 + $0x18] sm:$0xff]
      %v1352 = vld [vmem:[%s1348 + $0x20] sm:$0xff]
      %v1353 = vld [vmem:[%s1348 + $0x30] sm:$0xff]
      %v1354 = vld [vmem:[%s1348 + $0x38] sm:$0xff]
      %v1355 = vld [vmem:[%s1348 + $0x48] sm:$0xff]
      %v1356 = vld [vmem:[%s1348 + $0x50] sm:$0xff]
      %v1357 = vld [vmem:[%s1348 + $0x60] sm:$0xff]
      %v1358 = vld [vmem:[%s1348 + $0x68] sm:$0xff]
      %v1359 = vld [vmem:[%s1348 + $0x78] sm:$0xff]
      %v1360 = vld [vmem:[%s1348 + $0x80] sm:$0xff]
      %v1361 = vld [vmem:[%s1348 + $0x90] sm:$0xff]
      %v1362 = vld [vmem:[%s1348 + $0x98] sm:$0xff]
      %v1363 = vld [vmem:[%s1348 + $0xa8] sm:$0xff]
      %v1364 = vld [vmem:[%s1348 + $0xb0] sm:$0xff]
      %v1365 = vld [vmem:[%s1348 + $0xc0] sm:$0xff]
      %v1366 = vld [vmem:[%s1348 + $0xc8] sm:$0xff]
      %v1367 = vld [vmem:[%s1348 + $0xd8] sm:$0xff]
      %v1368 = vld [vmem:[%s1348 + $0xe0] sm:$0xff]
      %v1369 = vld [vmem:[%s1348 + $0xf0] sm:$0xff]
      %v1370 = vld [vmem:[%s1348 + $0xf8] sm:$0xff]
      %v1371 = vld [vmem:[%s1348 + $0x108] sm:$0xff]
      %v1372 = vld [vmem:[%s1348 + $0x110] sm:$0xff]
      %v1373 = vld [vmem:[%s1348 + $0x120] sm:$0xff]
      %v1374 = vld [vmem:[%s1348 + $0x128] sm:$0xff]
      %v1375 = vld [vmem:[%s1348 + $0x138] sm:$0xff]
      %v1376 = vld [vmem:[%s1348 + $0x140] sm:$0xff]
      %v1377 = vld [vmem:[%s1348 + $0x150] sm:$0xff]
      %v1378 = vld [vmem:[%s1348 + $0x158] sm:$0xff]
      %v1379 = vld [vmem:[%s1348 + $0x168] sm:$0xff]
      %v1380 = vld [vmem:[%s1348 + $0x170] sm:$0xff]
      %s1381 = scalar_lea.vmem %s1, 96
      %v1382 = vld [vmem:[%s1381] sm:$0xff]
      %v1383 = vld [vmem:[%s1381 + $0x8] sm:$0xff]
      %v1384 = vld [vmem:[%s1381 + $0x10] sm:$0xff]
      %v1385 = vld [vmem:[%s1381 + $0x18] sm:$0xff]
      %v1387 = vsel %vm315, %v1349, 0
      %v1390 = vsel %vm315, %v1350, 0
      %v1393 = vsel %vm315, %v1351, 0
      %v1396 = vsel %vm315, %v1352, 0
      %v1399 = vsel %vm315, %v1353, 0
      %v1402 = vsel %vm315, %v1354, 0
      %v1405 = vsel %vm315, %v1355, 0
      %v1408 = vsel %vm315, %v1356, 0
      %v1411 = vsel %vm315, %v1357, 0
      %v1414 = vsel %vm315, %v1358, 0
      %v1417 = vsel %vm315, %v1359, 0
      %v1420 = vsel %vm315, %v1360, 0
      %v1423 = vsel %vm315, %v1361, 0
      %v1426 = vsel %vm315, %v1362, 0
      %v1429 = vsel %vm315, %v1363, 0
      %v1432 = vsel %vm315, %v1364, 0
      %v1435 = vsel %vm315, %v1365, 0
      %v1438 = vsel %vm315, %v1366, 0
      %v1441 = vsel %vm315, %v1367, 0
      %v1444 = vsel %vm315, %v1368, 0
      %v1447 = vsel %vm315, %v1369, 0
      %v1450 = vsel %vm315, %v1370, 0
      %v1453 = vsel %vm315, %v1371, 0
      %v1456 = vsel %vm315, %v1372, 0
      %v1459 = vsel %vm315, %v1373, 0
      %v1462 = vsel %vm315, %v1374, 0
      %v1465 = vsel %vm315, %v1375, 0
      %v1468 = vsel %vm315, %v1376, 0
      %v1471 = vsel %vm315, %v1377, 0
      %v1474 = vsel %vm315, %v1378, 0
      %v1477 = vsel %vm315, %v1379, 0
      %v1480 = vsel %vm315, %v1380, 0
      %1482 = vmatprep.subr.mxu0 0.0
      %1483 = vmatpush1.msra.mxu0 %v1382
      %1484 = vmatprep.subr.mxu0 0.0
      %1485 = vmatpush1.msra.mxu0 %v1383
      %1486 = vmatprep.subr.mxu0 0.0
      %1487 = vmatpush1.msra.mxu0 %v1384
      %1488 = vmatprep.subr.mxu0 0.0
      %1489 = vmatpush1.msra.mxu0 %v1385
      %1490 = vmatprep.subr.mxu0 0.0
      %1491 = vmatpush1.msra.mxu0 0.0
      %1492 = vmatprep.subr.mxu0 0.0
      %1493 = vmatpush1.msra.mxu0 0.0
      %1494 = vmatprep.subr.mxu0 0.0
      %1495 = vmatpush1.msra.mxu0 0.0
      %1496 = vmatprep.subr.mxu0 0.0
      %1497 = vmatpush1.msra.mxu0 0.0
      %1498 = vmatprep.subr.mxu0 0.0
      %1499 = vmatpush1.msra.mxu0 0.0
      %1500 = vmatprep.subr.mxu0 0.0
      %1501 = vmatpush1.msra.mxu0 0.0
      %1502 = vmatprep.subr.mxu0 0.0
      %1503 = vmatpush1.msra.mxu0 0.0
      %1504 = vmatprep.subr.mxu0 0.0
      %1505 = vmatpush1.msra.mxu0 0.0
      %1506 = vmatprep.subr.mxu0 0.0
      %1507 = vmatpush1.msra.mxu0 0.0
      %1508 = vmatprep.subr.mxu0 0.0
      %1509 = vmatpush1.msra.mxu0 0.0
      %1510 = vmatprep.subr.mxu0 0.0
      %1511 = vmatpush1.msra.mxu0 0.0
      %1512 = vmatprep.subr.mxu0 0.0
      %1513 = vmatpush1.msra.mxu0 0.0
      %1514 = vmatprep.subr.mxu0 0.0
      %1515 = vmatpush1.msra.mxu0 0.0
      %1516 = vmatprep.subr.mxu0 0.0
      %1517 = vmatpush1.msra.mxu0 0.0
      %1518 = vmatprep.subr.mxu0 0.0
      %1519 = vmatpush1.msra.mxu0 0.0
      %1520 = vmatprep.subr.mxu0 0.0
      %1521 = vmatpush1.msra.mxu0 0.0
      %1522 = vmatprep.subr.mxu0 0.0
      %1523 = vmatpush1.msra.mxu0 0.0
      %1524 = vmatprep.subr.mxu0 0.0
      %1525 = vmatpush1.msra.mxu0 0.0
      %1526 = vmatprep.subr.mxu0 0.0
      %1527 = vmatpush1.msra.mxu0 0.0
      %1528 = vmatprep.subr.mxu0 0.0
      %1529 = vmatpush1.msra.mxu0 0.0
      %1530 = vmatprep.subr.mxu0 0.0
      %1531 = vmatpush1.msra.mxu0 0.0
      %1532 = vmatprep.subr.mxu0 0.0
      %1533 = vmatpush1.msra.mxu0 0.0
      %1534 = vmatprep.subr.mxu0 0.0
      %1535 = vmatpush1.msra.mxu0 0.0
      %1536 = vmatprep.subr.mxu0 0.0
      %1537 = vmatpush1.msra.mxu0 0.0
      %1538 = vmatprep.subr.mxu0 0.0
      %1539 = vmatpush1.msra.mxu0 0.0
      %1540 = vmatprep.subr.mxu0 0.0
      %1541 = vmatpush1.msra.mxu0 0.0
      %1542 = vmatprep.subr.mxu0 0.0
      %1543 = vmatpush1.msra.mxu0 0.0
      %1544 = vmatprep.subr.mxu0 0.0
      %1545 = vmatpush1.msra.mxu0 0.0
      %1546 = vmatprep.mubr.f32.mxu0 0.0
      %1547 = vmatmul.mubr.f32.gmra.mrb[0].mxu0 %v1387
      %v1548 = vpop.f32.mrb[0].mxu0
      %v1549 = vadd.f32 0.0, %v1548
      %v1550 = vpop.f32.mrb[0].mxu0
      %1551 = vmatprep.mubr.f32.mxu0 0.0
      %1552 = vmatmul.mubr.f32.gmra.mrb[0].mxu0 %v1390
      %v1553 = vpop.f32.mrb[0].mxu0
      %v1554 = vadd.f32 0.0, %v1553
      %v1555 = vpop.f32.mrb[0].mxu0
      %1556 = vmatprep.mubr.f32.mxu0 0.0
      %1557 = vmatmul.mubr.f32.gmra.mrb[0].mxu0 %v1393
      %v1558 = vpop.f32.mrb[0].mxu0
      %v1559 = vadd.f32 0.0, %v1558
      %v1560 = vpop.f32.mrb[0].mxu0
      %1561 = vmatprep.mubr.f32.mxu0 0.0
      %1562 = vmatmul.mubr.f32.gmra.mrb[0].mxu0 %v1396
      %v1563 = vpop.f32.mrb[0].mxu0
      %v1564 = vadd.f32 0.0, %v1563
      %v1565 = vpop.f32.mrb[0].mxu0
      %1566 = vmatprep.mubr.f32.mxu0 0.0
      %1567 = vmatmul.mubr.f32.gmra.mrb[0].mxu0 %v1399
      %v1568 = vpop.f32.mrb[0].mxu0
      %v1569 = vadd.f32 0.0, %v1568
      %v1570 = vpop.f32.mrb[0].mxu0
      %1571 = vmatprep.mubr.f32.mxu0 0.0
      %1572 = vmatmul.mubr.f32.gmra.mrb[0].mxu0 %v1402
      %v1573 = vpop.f32.mrb[0].mxu0
      %v1574 = vadd.f32 0.0, %v1573
      %v1575 = vpop.f32.mrb[0].mxu0
      %1576 = vmatprep.mubr.f32.mxu0 0.0
      %1577 = vmatmul.mubr.f32.gmra.mrb[0].mxu0 %v1405
      %v1578 = vpop.f32.mrb[0].mxu0
      %v1579 = vadd.f32 0.0, %v1578
      %v1580 = vpop.f32.mrb[0].mxu0
      %1581 = vmatprep.mubr.f32.mxu0 0.0
      %1582 = vmatmul.mubr.f32.gmra.mrb[0].mxu0 %v1408
      %v1583 = vpop.f32.mrb[0].mxu0
      %v1584 = vadd.f32 0.0, %v1583
      %v1585 = vpop.f32.mrb[0].mxu0
      %1586 = vmatprep.mubr.f32.mxu0 0.0
      %1587 = vmatmul.mubr.f32.gmra.mrb[0].mxu0 %v1411
      %v1588 = vpop.f32.mrb[0].mxu0
      %v1589 = vadd.f32 0.0, %v1588
      %v1590 = vpop.f32.mrb[0].mxu0
      %1591 = vmatprep.mubr.f32.mxu0 0.0
      %1592 = vmatmul.mubr.f32.gmra.mrb[0].mxu0 %v1414
      %v1593 = vpop.f32.mrb[0].mxu0
      %v1594 = vadd.f32 0.0, %v1593
      %v1595 = vpop.f32.mrb[0].mxu0
      %1596 = vmatprep.mubr.f32.mxu0 0.0
      %1597 = vmatmul.mubr.f32.gmra.mrb[0].mxu0 %v1417
      %v1598 = vpop.f32.mrb[0].mxu0
      %v1599 = vadd.f32 0.0, %v1598
      %v1600 = vpop.f32.mrb[0].mxu0
      %1601 = vmatprep.mubr.f32.mxu0 0.0
      %1602 = vmatmul.mubr.f32.gmra.mrb[0].mxu0 %v1420
      %v1603 = vpop.f32.mrb[0].mxu0
      %v1604 = vadd.f32 0.0, %v1603
      %v1605 = vpop.f32.mrb[0].mxu0
      %1606 = vmatprep.mubr.f32.mxu0 0.0
      %1607 = vmatmul.mubr.f32.gmra.mrb[0].mxu0 %v1423
      %v1608 = vpop.f32.mrb[0].mxu0
      %v1609 = vadd.f32 0.0, %v1608
      %v1610 = vpop.f32.mrb[0].mxu0
      %1611 = vmatprep.mubr.f32.mxu0 0.0
      %1612 = vmatmul.mubr.f32.gmra.mrb[0].mxu0 %v1426
      %v1613 = vpop.f32.mrb[0].mxu0
      %v1614 = vadd.f32 0.0, %v1613
      %v1615 = vpop.f32.mrb[0].mxu0
      %1616 = vmatprep.mubr.f32.mxu0 0.0
      %1617 = vmatmul.mubr.f32.gmra.mrb[0].mxu0 %v1429
      %v1618 = vpop.f32.mrb[0].mxu0
      %v1619 = vadd.f32 0.0, %v1618
      %v1620 = vpop.f32.mrb[0].mxu0
      %1621 = vmatprep.mubr.f32.mxu0 0.0
      %1622 = vmatmul.mubr.f32.gmra.mrb[0].mxu0 %v1432
      %v1623 = vpop.f32.mrb[0].mxu0
      %v1624 = vadd.f32 0.0, %v1623
      %v1625 = vpop.f32.mrb[0].mxu0
      %1626 = vmatprep.mubr.f32.mxu0 0.0
      %1627 = vmatmul.mubr.f32.gmra.mrb[0].mxu0 %v1435
      %v1628 = vpop.f32.mrb[0].mxu0
      %v1629 = vadd.f32 0.0, %v1628
      %v1630 = vpop.f32.mrb[0].mxu0
      %1631 = vmatprep.mubr.f32.mxu0 0.0
      %1632 = vmatmul.mubr.f32.gmra.mrb[0].mxu0 %v1438
      %v1633 = vpop.f32.mrb[0].mxu0
      %v1634 = vadd.f32 0.0, %v1633
      %v1635 = vpop.f32.mrb[0].mxu0
      %1636 = vmatprep.mubr.f32.mxu0 0.0
      %1637 = vmatmul.mubr.f32.gmra.mrb[0].mxu0 %v1441
      %v1638 = vpop.f32.mrb[0].mxu0
      %v1639 = vadd.f32 0.0, %v1638
      %v1640 = vpop.f32.mrb[0].mxu0
      %1641 = vmatprep.mubr.f32.mxu0 0.0
      %1642 = vmatmul.mubr.f32.gmra.mrb[0].mxu0 %v1444
      %v1643 = vpop.f32.mrb[0].mxu0
      %v1644 = vadd.f32 0.0, %v1643
      %v1645 = vpop.f32.mrb[0].mxu0
      %1646 = vmatprep.mubr.f32.mxu0 0.0
      %1647 = vmatmul.mubr.f32.gmra.mrb[0].mxu0 %v1447
      %v1648 = vpop.f32.mrb[0].mxu0
      %v1649 = vadd.f32 0.0, %v1648
      %v1650 = vpop.f32.mrb[0].mxu0
      %1651 = vmatprep.mubr.f32.mxu0 0.0
      %1652 = vmatmul.mubr.f32.gmra.mrb[0].mxu0 %v1450
      %v1653 = vpop.f32.mrb[0].mxu0
      %v1654 = vadd.f32 0.0, %v1653
      %v1655 = vpop.f32.mrb[0].mxu0
      %1656 = vmatprep.mubr.f32.mxu0 0.0
      %1657 = vmatmul.mubr.f32.gmra.mrb[0].mxu0 %v1453
      %v1658 = vpop.f32.mrb[0].mxu0
      %v1659 = vadd.f32 0.0, %v1658
      %v1660 = vpop.f32.mrb[0].mxu0
      %1661 = vmatprep.mubr.f32.mxu0 0.0
      %1662 = vmatmul.mubr.f32.gmra.mrb[0].mxu0 %v1456
      %v1663 = vpop.f32.mrb[0].mxu0
      %v1664 = vadd.f32 0.0, %v1663
      %v1665 = vpop.f32.mrb[0].mxu0
      %1666 = vmatprep.mubr.f32.mxu0 0.0
      %1667 = vmatmul.mubr.f32.gmra.mrb[0].mxu0 %v1459
      %v1668 = vpop.f32.mrb[0].mxu0
      %v1669 = vadd.f32 0.0, %v1668
      %v1670 = vpop.f32.mrb[0].mxu0
      %1671 = vmatprep.mubr.f32.mxu0 0.0
      %1672 = vmatmul.mubr.f32.gmra.mrb[0].mxu0 %v1462
      %v1673 = vpop.f32.mrb[0].mxu0
      %v1674 = vadd.f32 0.0, %v1673
      %v1675 = vpop.f32.mrb[0].mxu0
      %1676 = vmatprep.mubr.f32.mxu0 0.0
      %1677 = vmatmul.mubr.f32.gmra.mrb[0].mxu0 %v1465
      %v1678 = vpop.f32.mrb[0].mxu0
      %v1679 = vadd.f32 0.0, %v1678
      %v1680 = vpop.f32.mrb[0].mxu0
      %1681 = vmatprep.mubr.f32.mxu0 0.0
      %1682 = vmatmul.mubr.f32.gmra.mrb[0].mxu0 %v1468
      %v1683 = vpop.f32.mrb[0].mxu0
      %v1684 = vadd.f32 0.0, %v1683
      %v1685 = vpop.f32.mrb[0].mxu0
      %1686 = vmatprep.mubr.f32.mxu0 0.0
      %1687 = vmatmul.mubr.f32.gmra.mrb[0].mxu0 %v1471
      %v1688 = vpop.f32.mrb[0].mxu0
      %v1689 = vadd.f32 0.0, %v1688
      %v1690 = vpop.f32.mrb[0].mxu0
      %1691 = vmatprep.mubr.f32.mxu0 0.0
      %1692 = vmatmul.mubr.f32.gmra.mrb[0].mxu0 %v1474
      %v1693 = vpop.f32.mrb[0].mxu0
      %v1694 = vadd.f32 0.0, %v1693
      %v1695 = vpop.f32.mrb[0].mxu0
      %1696 = vmatprep.mubr.f32.mxu0 0.0
      %1697 = vmatmul.mubr.f32.gmra.mrb[0].mxu0 %v1477
      %v1698 = vpop.f32.mrb[0].mxu0
      %v1699 = vadd.f32 0.0, %v1698
      %v1700 = vpop.f32.mrb[0].mxu0
      %1701 = vmatprep.mubr.f32.mxu0 0.0
      %1702 = vmatmul.mubr.f32.gmra.mrb[0].mxu0 %v1480
      %v1703 = vpop.f32.mrb[0].mxu0
      %v1704 = vadd.f32 0.0, %v1703
      %v1705 = vpop.f32.mrb[0].mxu0
      %1706 = vdwg.mxu0
      %v1707 = vadd.f32 %v1316, %v1549
      %v1708 = vadd.f32 %v1317, %v1554
      %v1709 = vadd.f32 %v1318, %v1559
      %v1710 = vadd.f32 %v1319, %v1564
      %v1711 = vadd.f32 %v1320, %v1569
      %v1712 = vadd.f32 %v1321, %v1574
      %v1713 = vadd.f32 %v1322, %v1579
      %v1714 = vadd.f32 %v1323, %v1584
      %v1715 = vadd.f32 %v1324, %v1589
      %v1716 = vadd.f32 %v1325, %v1594
      %v1717 = vadd.f32 %v1326, %v1599
      %v1718 = vadd.f32 %v1327, %v1604
      %v1719 = vadd.f32 %v1328, %v1609
      %v1720 = vadd.f32 %v1329, %v1614
      %v1721 = vadd.f32 %v1330, %v1619
      %v1722 = vadd.f32 %v1331, %v1624
      %v1723 = vadd.f32 %v1332, %v1629
      %v1724 = vadd.f32 %v1333, %v1634
      %v1725 = vadd.f32 %v1334, %v1639
      %v1726 = vadd.f32 %v1335, %v1644
      %v1727 = vadd.f32 %v1336, %v1649
      %v1728 = vadd.f32 %v1337, %v1654
      %v1729 = vadd.f32 %v1338, %v1659
      %v1730 = vadd.f32 %v1339, %v1664
      %v1731 = vadd.f32 %v1340, %v1669
      %v1732 = vadd.f32 %v1341, %v1674
      %v1733 = vadd.f32 %v1342, %v1679
      %v1734 = vadd.f32 %v1343, %v1684
      %v1735 = vadd.f32 %v1344, %v1689
      %v1736 = vadd.f32 %v1345, %v1694
      %v1737 = vadd.f32 %v1346, %v1699
      %v1738 = vadd.f32 %v1347, %v1704
      %v1739 = vld [vmem:[%s1348 + $0x1] sm:$0xff]
      %v1740 = vld [vmem:[%s1348 + $0x9] sm:$0xff]
      %v1741 = vld [vmem:[%s1348 + $0x19] sm:$0xff]
      %v1742 = vld [vmem:[%s1348 + $0x21] sm:$0xff]
      %v1743 = vld [vmem:[%s1348 + $0x31] sm:$0xff]
      %v1744 = vld [vmem:[%s1348 + $0x39] sm:$0xff]
      %v1745 = vld [vmem:[%s1348 + $0x49] sm:$0xff]
      %v1746 = vld [vmem:[%s1348 + $0x51] sm:$0xff]
      %v1747 = vld [vmem:[%s1348 + $0x61] sm:$0xff]
      %v1748 = vld [vmem:[%s1348 + $0x69] sm:$0xff]
      %v1749 = vld [vmem:[%s1348 + $0x79] sm:$0xff]
      %v1750 = vld [vmem:[%s1348 + $0x81] sm:$0xff]
      %v1751 = vld [vmem:[%s1348 + $0x91] sm:$0xff]
      %v1752 = vld [vmem:[%s1348 + $0x99] sm:$0xff]
      %v1753 = vld [vmem:[%s1348 + $0xa9] sm:$0xff]
      %v1754 = vld [vmem:[%s1348 + $0xb1] sm:$0xff]
      %v1755 = vld [vmem:[%s1348 + $0xc1] sm:$0xff]
      %v1756 = vld [vmem:[%s1348 + $0xc9] sm:$0xff]
      %v1757 = vld [vmem:[%s1348 + $0xd9] sm:$0xff]
      %v1758 = vld [vmem:[%s1348 + $0xe1] sm:$0xff]
      %v1759 = vld [vmem:[%s1348 + $0xf1] sm:$0xff]
      %v1760 = vld [vmem:[%s1348 + $0xf9] sm:$0xff]
      %v1761 = vld [vmem:[%s1348 + $0x109] sm:$0xff]
      %v1762 = vld [vmem:[%s1348 + $0x111] sm:$0xff]
      %v1763 = vld [vmem:[%s1348 + $0x121] sm:$0xff]
      %v1764 = vld [vmem:[%s1348 + $0x129] sm:$0xff]
      %v1765 = vld [vmem:[%s1348 + $0x139] sm:$0xff]
      %v1766 = vld [vmem:[%s1348 + $0x141] sm:$0xff]
      %v1767 = vld [vmem:[%s1348 + $0x151] sm:$0xff]
      %v1768 = vld [vmem:[%s1348 + $0x159] sm:$0xff]
      %v1769 = vld [vmem:[%s1348 + $0x169] sm:$0xff]
      %v1770 = vld [vmem:[%s1348 + $0x171] sm:$0xff]
      %s1771 = scalar_lea.vmem %s1, 128
      %v1772 = vld [vmem:[%s1771] sm:$0xff]
      %v1773 = vld [vmem:[%s1771 + $0x8] sm:$0xff]
      %v1774 = vld [vmem:[%s1771 + $0x10] sm:$0xff]
      %v1775 = vld [vmem:[%s1771 + $0x18] sm:$0xff]
      %v1777 = vsel %vm315, %v1739, 0
      %v1780 = vsel %vm315, %v1740, 0
      %v1783 = vsel %vm315, %v1741, 0
      %v1786 = vsel %vm315, %v1742, 0
      %v1789 = vsel %vm315, %v1743, 0
      %v1792 = vsel %vm315, %v1744, 0
      %v1795 = vsel %vm315, %v1745, 0
      %v1798 = vsel %vm315, %v1746, 0
      %v1801 = vsel %vm315, %v1747, 0
      %v1804 = vsel %vm315, %v1748, 0
      %v1807 = vsel %vm315, %v1749, 0
      %v1810 = vsel %vm315, %v1750, 0
      %v1813 = vsel %vm315, %v1751, 0
      %v1816 = vsel %vm315, %v1752, 0
      %v1819 = vsel %vm315, %v1753, 0
      %v1822 = vsel %vm315, %v1754, 0
      %v1825 = vsel %vm315, %v1755, 0
      %v1828 = vsel %vm315, %v1756, 0
      %v1831 = vsel %vm315, %v1757, 0
      %v1834 = vsel %vm315, %v1758, 0
      %v1837 = vsel %vm315, %v1759, 0
      %v1840 = vsel %vm315, %v1760, 0
      %v1843 = vsel %vm315, %v1761, 0
      %v1846 = vsel %vm315, %v1762, 0
      %v1849 = vsel %vm315, %v1763, 0
      %v1852 = vsel %vm315, %v1764, 0
      %v1855 = vsel %vm315, %v1765, 0
      %v1858 = vsel %vm315, %v1766, 0
      %v1861 = vsel %vm315, %v1767, 0
      %v1864 = vsel %vm315, %v1768, 0
      %v1867 = vsel %vm315, %v1769, 0
      %v1870 = vsel %vm315, %v1770, 0
      %1872 = vmatprep.subr.mxu0 0.0
      %1873 = vmatpush1.msra.mxu0 %v1772
      %1874 = vmatprep.subr.mxu0 0.0
      %1875 = vmatpush1.msra.mxu0 %v1773
      %1876 = vmatprep.subr.mxu0 0.0
      %1877 = vmatpush1.msra.mxu0 %v1774
      %1878 = vmatprep.subr.mxu0 0.0
      %1879 = vmatpush1.msra.mxu0 %v1775
      %1880 = vmatprep.subr.mxu0 0.0
      %1881 = vmatpush1.msra.mxu0 0.0
      %1882 = vmatprep.subr.mxu0 0.0
      %1883 = vmatpush1.msra.mxu0 0.0
      %1884 = vmatprep.subr.mxu0 0.0
      %1885 = vmatpush1.msra.mxu0 0.0
      %1886 = vmatprep.subr.mxu0 0.0
      %1887 = vmatpush1.msra.mxu0 0.0
      %1888 = vmatprep.subr.mxu0 0.0
      %1889 = vmatpush1.msra.mxu0 0.0
      %1890 = vmatprep.subr.mxu0 0.0
      %1891 = vmatpush1.msra.mxu0 0.0
      %1892 = vmatprep.subr.mxu0 0.0
      %1893 = vmatpush1.msra.mxu0 0.0
      %1894 = vmatprep.subr.mxu0 0.0
      %1895 = vmatpush1.msra.mxu0 0.0
      %1896 = vmatprep.subr.mxu0 0.0
      %1897 = vmatpush1.msra.mxu0 0.0
      %1898 = vmatprep.subr.mxu0 0.0
      %1899 = vmatpush1.msra.mxu0 0.0
      %1900 = vmatprep.subr.mxu0 0.0
      %1901 = vmatpush1.msra.mxu0 0.0
      %1902 = vmatprep.subr.mxu0 0.0
      %1903 = vmatpush1.msra.mxu0 0.0
      %1904 = vmatprep.subr.mxu0 0.0
      %1905 = vmatpush1.msra.mxu0 0.0
      %1906 = vmatprep.subr.mxu0 0.0
      %1907 = vmatpush1.msra.mxu0 0.0
      %1908 = vmatprep.subr.mxu0 0.0
      %1909 = vmatpush1.msra.mxu0 0.0
      %1910 = vmatprep.subr.mxu0 0.0
      %1911 = vmatpush1.msra.mxu0 0.0
      %1912 = vmatprep.subr.mxu0 0.0
      %1913 = vmatpush1.msra.mxu0 0.0
      %1914 = vmatprep.subr.mxu0 0.0
      %1915 = vmatpush1.msra.mxu0 0.0
      %1916 = vmatprep.subr.mxu0 0.0
      %1917 = vmatpush1.msra.mxu0 0.0
      %1918 = vmatprep.subr.mxu0 0.0
      %1919 = vmatpush1.msra.mxu0 0.0
      %1920 = vmatprep.subr.mxu0 0.0
      %1921 = vmatpush1.msra.mxu0 0.0
      %1922 = vmatprep.subr.mxu0 0.0
      %1923 = vmatpush1.msra.mxu0 0.0
      %1924 = vmatprep.subr.mxu0 0.0
      %1925 = vmatpush1.msra.mxu0 0.0
      %1926 = vmatprep.subr.mxu0 0.0
      %1927 = vmatpush1.msra.mxu0 0.0
      %1928 = vmatprep.subr.mxu0 0.0
      %1929 = vmatpush1.msra.mxu0 0.0
      %1930 = vmatprep.subr.mxu0 0.0
      %1931 = vmatpush1.msra.mxu0 0.0
      %1932 = vmatprep.subr.mxu0 0.0
      %1933 = vmatpush1.msra.mxu0 0.0
      %1934 = vmatprep.subr.mxu0 0.0
      %1935 = vmatpush1.msra.mxu0 0.0
      %1936 = vmatprep.mubr.f32.mxu0 0.0
      %1937 = vmatmul.mubr.f32.gmra.mrb[0].mxu0 %v1777
      %v1938 = vpop.f32.mrb[0].mxu0
      %v1939 = vadd.f32 0.0, %v1938
      %v1940 = vpop.f32.mrb[0].mxu0
      %1941 = vmatprep.mubr.f32.mxu0 0.0
      %1942 = vmatmul.mubr.f32.gmra.mrb[0].mxu0 %v1780
      %v1943 = vpop.f32.mrb[0].mxu0
      %v1944 = vadd.f32 0.0, %v1943
      %v1945 = vpop.f32.mrb[0].mxu0
      %1946 = vmatprep.mubr.f32.mxu0 0.0
      %1947 = vmatmul.mubr.f32.gmra.mrb[0].mxu0 %v1783
      %v1948 = vpop.f32.mrb[0].mxu0
      %v1949 = vadd.f32 0.0, %v1948
      %v1950 = vpop.f32.mrb[0].mxu0
      %1951 = vmatprep.mubr.f32.mxu0 0.0
      %1952 = vmatmul.mubr.f32.gmra.mrb[0].mxu0 %v1786
      %v1953 = vpop.f32.mrb[0].mxu0
      %v1954 = vadd.f32 0.0, %v1953
      %v1955 = vpop.f32.mrb[0].mxu0
      %1956 = vmatprep.mubr.f32.mxu0 0.0
      %1957 = vmatmul.mubr.f32.gmra.mrb[0].mxu0 %v1789
      %v1958 = vpop.f32.mrb[0].mxu0
      %v1959 = vadd.f32 0.0, %v1958
      %v1960 = vpop.f32.mrb[0].mxu0
      %1961 = vmatprep.mubr.f32.mxu0 0.0
      %1962 = vmatmul.mubr.f32.gmra.mrb[0].mxu0 %v1792
      %v1963 = vpop.f32.mrb[0].mxu0
      %v1964 = vadd.f32 0.0, %v1963
      %v1965 = vpop.f32.mrb[0].mxu0
      %1966 = vmatprep.mubr.f32.mxu0 0.0
      %1967 = vmatmul.mubr.f32.gmra.mrb[0].mxu0 %v1795
      %v1968 = vpop.f32.mrb[0].mxu0
      %v1969 = vadd.f32 0.0, %v1968
      %v1970 = vpop.f32.mrb[0].mxu0
      %1971 = vmatprep.mubr.f32.mxu0 0.0
      %1972 = vmatmul.mubr.f32.gmra.mrb[0].mxu0 %v1798
      %v1973 = vpop.f32.mrb[0].mxu0
      %v1974 = vadd.f32 0.0, %v1973
      %v1975 = vpop.f32.mrb[0].mxu0
      %1976 = vmatprep.mubr.f32.mxu0 0.0
      %1977 = vmatmul.mubr.f32.gmra.mrb[0].mxu0 %v1801
      %v1978 = vpop.f32.mrb[0].mxu0
      %v1979 = vadd.f32 0.0, %v1978
      %v1980 = vpop.f32.mrb[0].mxu0
      %1981 = vmatprep.mubr.f32.mxu0 0.0
      %1982 = vmatmul.mubr.f32.gmra.mrb[0].mxu0 %v1804
      %v1983 = vpop.f32.mrb[0].mxu0
      %v1984 = vadd.f32 0.0, %v1983
      %v1985 = vpop.f32.mrb[0].mxu0
      %1986 = vmatprep.mubr.f32.mxu0 0.0
      %1987 = vmatmul.mubr.f32.gmra.mrb[0].mxu0 %v1807
      %v1988 = vpop.f32.mrb[0].mxu0
      %v1989 = vadd.f32 0.0, %v1988
      %v1990 = vpop.f32.mrb[0].mxu0
      %1991 = vmatprep.mubr.f32.mxu0 0.0
      %1992 = vmatmul.mubr.f32.gmra.mrb[0].mxu0 %v1810
      %v1993 = vpop.f32.mrb[0].mxu0
      %v1994 = vadd.f32 0.0, %v1993
      %v1995 = vpop.f32.mrb[0].mxu0
      %1996 = vmatprep.mubr.f32.mxu0 0.0
      %1997 = vmatmul.mubr.f32.gmra.mrb[0].mxu0 %v1813
      %v1998 = vpop.f32.mrb[0].mxu0
      %v1999 = vadd.f32 0.0, %v1998
      %v2000 = vpop.f32.mrb[0].mxu0
      %2001 = vmatprep.mubr.f32.mxu0 0.0
      %2002 = vmatmul.mubr.f32.gmra.mrb[0].mxu0 %v1816
      %v2003 = vpop.f32.mrb[0].mxu0
      %v2004 = vadd.f32 0.0, %v2003
      %v2005 = vpop.f32.mrb[0].mxu0
      %2006 = vmatprep.mubr.f32.mxu0 0.0
      %2007 = vmatmul.mubr.f32.gmra.mrb[0].mxu0 %v1819
      %v2008 = vpop.f32.mrb[0].mxu0
      %v2009 = vadd.f32 0.0, %v2008
      %v2010 = vpop.f32.mrb[0].mxu0
      %2011 = vmatprep.mubr.f32.mxu0 0.0
      %2012 = vmatmul.mubr.f32.gmra.mrb[0].mxu0 %v1822
      %v2013 = vpop.f32.mrb[0].mxu0
      %v2014 = vadd.f32 0.0, %v2013
      %v2015 = vpop.f32.mrb[0].mxu0
      %2016 = vmatprep.mubr.f32.mxu0 0.0
      %2017 = vmatmul.mubr.f32.gmra.mrb[0].mxu0 %v1825
      %v2018 = vpop.f32.mrb[0].mxu0
      %v2019 = vadd.f32 0.0, %v2018
      %v2020 = vpop.f32.mrb[0].mxu0
      %2021 = vmatprep.mubr.f32.mxu0 0.0
      %2022 = vmatmul.mubr.f32.gmra.mrb[0].mxu0 %v1828
      %v2023 = vpop.f32.mrb[0].mxu0
      %v2024 = vadd.f32 0.0, %v2023
      %v2025 = vpop.f32.mrb[0].mxu0
      %2026 = vmatprep.mubr.f32.mxu0 0.0
      %2027 = vmatmul.mubr.f32.gmra.mrb[0].mxu0 %v1831
      %v2028 = vpop.f32.mrb[0].mxu0
      %v2029 = vadd.f32 0.0, %v2028
      %v2030 = vpop.f32.mrb[0].mxu0
      %2031 = vmatprep.mubr.f32.mxu0 0.0
      %2032 = vmatmul.mubr.f32.gmra.mrb[0].mxu0 %v1834
      %v2033 = vpop.f32.mrb[0].mxu0
      %v2034 = vadd.f32 0.0, %v2033
      %v2035 = vpop.f32.mrb[0].mxu0
      %2036 = vmatprep.mubr.f32.mxu0 0.0
      %2037 = vmatmul.mubr.f32.gmra.mrb[0].mxu0 %v1837
      %v2038 = vpop.f32.mrb[0].mxu0
      %v2039 = vadd.f32 0.0, %v2038
      %v2040 = vpop.f32.mrb[0].mxu0
      %2041 = vmatprep.mubr.f32.mxu0 0.0
      %2042 = vmatmul.mubr.f32.gmra.mrb[0].mxu0 %v1840
      %v2043 = vpop.f32.mrb[0].mxu0
      %v2044 = vadd.f32 0.0, %v2043
      %v2045 = vpop.f32.mrb[0].mxu0
      %2046 = vmatprep.mubr.f32.mxu0 0.0
      %2047 = vmatmul.mubr.f32.gmra.mrb[0].mxu0 %v1843
      %v2048 = vpop.f32.mrb[0].mxu0
      %v2049 = vadd.f32 0.0, %v2048
      %v2050 = vpop.f32.mrb[0].mxu0
      %2051 = vmatprep.mubr.f32.mxu0 0.0
      %2052 = vmatmul.mubr.f32.gmra.mrb[0].mxu0 %v1846
      %v2053 = vpop.f32.mrb[0].mxu0
      %v2054 = vadd.f32 0.0, %v2053
      %v2055 = vpop.f32.mrb[0].mxu0
      %2056 = vmatprep.mubr.f32.mxu0 0.0
      %2057 = vmatmul.mubr.f32.gmra.mrb[0].mxu0 %v1849
      %v2058 = vpop.f32.mrb[0].mxu0
      %v2059 = vadd.f32 0.0, %v2058
      %v2060 = vpop.f32.mrb[0].mxu0
      %2061 = vmatprep.mubr.f32.mxu0 0.0
      %2062 = vmatmul.mubr.f32.gmra.mrb[0].mxu0 %v1852
      %v2063 = vpop.f32.mrb[0].mxu0
      %v2064 = vadd.f32 0.0, %v2063
      %v2065 = vpop.f32.mrb[0].mxu0
      %2066 = vmatprep.mubr.f32.mxu0 0.0
      %2067 = vmatmul.mubr.f32.gmra.mrb[0].mxu0 %v1855
      %v2068 = vpop.f32.mrb[0].mxu0
      %v2069 = vadd.f32 0.0, %v2068
      %v2070 = vpop.f32.mrb[0].mxu0
      %2071 = vmatprep.mubr.f32.mxu0 0.0
      %2072 = vmatmul.mubr.f32.gmra.mrb[0].mxu0 %v1858
      %v2073 = vpop.f32.mrb[0].mxu0
      %v2074 = vadd.f32 0.0, %v2073
      %v2075 = vpop.f32.mrb[0].mxu0
      %2076 = vmatprep.mubr.f32.mxu0 0.0
      %2077 = vmatmul.mubr.f32.gmra.mrb[0].mxu0 %v1861
      %v2078 = vpop.f32.mrb[0].mxu0
      %v2079 = vadd.f32 0.0, %v2078
      %v2080 = vpop.f32.mrb[0].mxu0
      %2081 = vmatprep.mubr.f32.mxu0 0.0
      %2082 = vmatmul.mubr.f32.gmra.mrb[0].mxu0 %v1864
      %v2083 = vpop.f32.mrb[0].mxu0
      %v2084 = vadd.f32 0.0, %v2083
      %v2085 = vpop.f32.mrb[0].mxu0
      %2086 = vmatprep.mubr.f32.mxu0 0.0
      %2087 = vmatmul.mubr.f32.gmra.mrb[0].mxu0 %v1867
      %v2088 = vpop.f32.mrb[0].mxu0
      %v2089 = vadd.f32 0.0, %v2088
      %v2090 = vpop.f32.mrb[0].mxu0
      %2091 = vmatprep.mubr.f32.mxu0 0.0
      %2092 = vmatmul.mubr.f32.gmra.mrb[0].mxu0 %v1870
      %v2093 = vpop.f32.mrb[0].mxu0
      %v2094 = vadd.f32 0.0, %v2093
      %v2095 = vpop.f32.mrb[0].mxu0
      %2096 = vdwg.mxu0
      %v2097 = vadd.f32 %v1707, %v1939
      %v2098 = vadd.f32 %v1708, %v1944
      %v2099 = vadd.f32 %v1709, %v1949
      %v2100 = vadd.f32 %v1710, %v1954
      %v2101 = vadd.f32 %v1711, %v1959
      %v2102 = vadd.f32 %v1712, %v1964
      %v2103 = vadd.f32 %v1713, %v1969
      %v2104 = vadd.f32 %v1714, %v1974
      %v2105 = vadd.f32 %v1715, %v1979
      %v2106 = vadd.f32 %v1716, %v1984
      %v2107 = vadd.f32 %v1717, %v1989
      %v2108 = vadd.f32 %v1718, %v1994
      %v2109 = vadd.f32 %v1719, %v1999
      %v2110 = vadd.f32 %v1720, %v2004
      %v2111 = vadd.f32 %v1721, %v2009
      %v2112 = vadd.f32 %v1722, %v2014
      %v2113 = vadd.f32 %v1723, %v2019
      %v2114 = vadd.f32 %v1724, %v2024
      %v2115 = vadd.f32 %v1725, %v2029
      %v2116 = vadd.f32 %v1726, %v2034
      %v2117 = vadd.f32 %v1727, %v2039
      %v2118 = vadd.f32 %v1728, %v2044
      %v2119 = vadd.f32 %v1729, %v2049
      %v2120 = vadd.f32 %v1730, %v2054
      %v2121 = vadd.f32 %v1731, %v2059
      %v2122 = vadd.f32 %v1732, %v2064
      %v2123 = vadd.f32 %v1733, %v2069
      %v2124 = vadd.f32 %v1734, %v2074
      %v2125 = vadd.f32 %v1735, %v2079
      %v2126 = vadd.f32 %v1736, %v2084
      %v2127 = vadd.f32 %v1737, %v2089
      %v2128 = vadd.f32 %v1738, %v2094
      %v2129 = vld [vmem:[%s1348 + $0x2] sm:$0xff]
      %v2130 = vld [vmem:[%s1348 + $0xa] sm:$0xff]
      %v2131 = vld [vmem:[%s1348 + $0x1a] sm:$0xff]
      %v2132 = vld [vmem:[%s1348 + $0x22] sm:$0xff]
      %v2133 = vld [vmem:[%s1348 + $0x32] sm:$0xff]
      %v2134 = vld [vmem:[%s1348 + $0x3a] sm:$0xff]
      %v2135 = vld [vmem:[%s1348 + $0x4a] sm:$0xff]
      %v2136 = vld [vmem:[%s1348 + $0x52] sm:$0xff]
      %v2137 = vld [vmem:[%s1348 + $0x62] sm:$0xff]
      %v2138 = vld [vmem:[%s1348 + $0x6a] sm:$0xff]
      %v2139 = vld [vmem:[%s1348 + $0x7a] sm:$0xff]
      %v2140 = vld [vmem:[%s1348 + $0x82] sm:$0xff]
      %v2141 = vld [vmem:[%s1348 + $0x92] sm:$0xff]
      %v2142 = vld [vmem:[%s1348 + $0x9a] sm:$0xff]
      %v2143 = vld [vmem:[%s1348 + $0xaa] sm:$0xff]
      %v2144 = vld [vmem:[%s1348 + $0xb2] sm:$0xff]
      %v2145 = vld [vmem:[%s1348 + $0xc2] sm:$0xff]
      %v2146 = vld [vmem:[%s1348 + $0xca] sm:$0xff]
      %v2147 = vld [vmem:[%s1348 + $0xda] sm:$0xff]
      %v2148 = vld [vmem:[%s1348 + $0xe2] sm:$0xff]
      %v2149 = vld [vmem:[%s1348 + $0xf2] sm:$0xff]
      %v2150 = vld [vmem:[%s1348 + $0xfa] sm:$0xff]
      %v2151 = vld [vmem:[%s1348 + $0x10a] sm:$0xff]
      %v2152 = vld [vmem:[%s1348 + $0x112] sm:$0xff]
      %v2153 = vld [vmem:[%s1348 + $0x122] sm:$0xff]
      %v2154 = vld [vmem:[%s1348 + $0x12a] sm:$0xff]
      %v2155 = vld [vmem:[%s1348 + $0x13a] sm:$0xff]
      %v2156 = vld [vmem:[%s1348 + $0x142] sm:$0xff]
      %v2157 = vld [vmem:[%s1348 + $0x152] sm:$0xff]
      %v2158 = vld [vmem:[%s1348 + $0x15a] sm:$0xff]
      %v2159 = vld [vmem:[%s1348 + $0x16a] sm:$0xff]
      %v2160 = vld [vmem:[%s1348 + $0x172] sm:$0xff]
      %s2161 = scalar_lea.vmem %s1, 160
      %v2162 = vld [vmem:[%s2161] sm:$0xff]
      %v2163 = vld [vmem:[%s2161 + $0x8] sm:$0xff]
      %v2164 = vld [vmem:[%s2161 + $0x10] sm:$0xff]
      %v2165 = vld [vmem:[%s2161 + $0x18] sm:$0xff]
      %v2167 = vsel %vm315, %v2129, 0
      %v2170 = vsel %vm315, %v2130, 0
      %v2173 = vsel %vm315, %v2131, 0
      %v2176 = vsel %vm315, %v2132, 0
      %v2179 = vsel %vm315, %v2133, 0
      %v2182 = vsel %vm315, %v2134, 0
      %v2185 = vsel %vm315, %v2135, 0
      %v2188 = vsel %vm315, %v2136, 0
      %v2191 = vsel %vm315, %v2137, 0
      %v2194 = vsel %vm315, %v2138, 0
      %v2197 = vsel %vm315, %v2139, 0
      %v2200 = vsel %vm315, %v2140, 0
      %v2203 = vsel %vm315, %v2141, 0
      %v2206 = vsel %vm315, %v2142, 0
      %v2209 = vsel %vm315, %v2143, 0
      %v2212 = vsel %vm315, %v2144, 0
      %v2215 = vsel %vm315, %v2145, 0
      %v2218 = vsel %vm315, %v2146, 0
      %v2221 = vsel %vm315, %v2147, 0
      %v2224 = vsel %vm315, %v2148, 0
      %v2227 = vsel %vm315, %v2149, 0
      %v2230 = vsel %vm315, %v2150, 0
      %v2233 = vsel %vm315, %v2151, 0
      %v2236 = vsel %vm315, %v2152, 0
      %v2239 = vsel %vm315, %v2153, 0
      %v2242 = vsel %vm315, %v2154, 0
      %v2245 = vsel %vm315, %v2155, 0
      %v2248 = vsel %vm315, %v2156, 0
      %v2251 = vsel %vm315, %v2157, 0
      %v2254 = vsel %vm315, %v2158, 0
      %v2257 = vsel %vm315, %v2159, 0
      %v2260 = vsel %vm315, %v2160, 0
      %2262 = vmatprep.subr.mxu0 0.0
      %2263 = vmatpush1.msra.mxu0 %v2162
      %2264 = vmatprep.subr.mxu0 0.0
      %2265 = vmatpush1.msra.mxu0 %v2163
      %2266 = vmatprep.subr.mxu0 0.0
      %2267 = vmatpush1.msra.mxu0 %v2164
      %2268 = vmatprep.subr.mxu0 0.0
      %2269 = vmatpush1.msra.mxu0 %v2165
      %2270 = vmatprep.subr.mxu0 0.0
      %2271 = vmatpush1.msra.mxu0 0.0
      %2272 = vmatprep.subr.mxu0 0.0
      %2273 = vmatpush1.msra.mxu0 0.0
      %2274 = vmatprep.subr.mxu0 0.0
      %2275 = vmatpush1.msra.mxu0 0.0
      %2276 = vmatprep.subr.mxu0 0.0
      %2277 = vmatpush1.msra.mxu0 0.0
      %2278 = vmatprep.subr.mxu0 0.0
      %2279 = vmatpush1.msra.mxu0 0.0
      %2280 = vmatprep.subr.mxu0 0.0
      %2281 = vmatpush1.msra.mxu0 0.0
      %2282 = vmatprep.subr.mxu0 0.0
      %2283 = vmatpush1.msra.mxu0 0.0
      %2284 = vmatprep.subr.mxu0 0.0
      %2285 = vmatpush1.msra.mxu0 0.0
      %2286 = vmatprep.subr.mxu0 0.0
      %2287 = vmatpush1.msra.mxu0 0.0
      %2288 = vmatprep.subr.mxu0 0.0
      %2289 = vmatpush1.msra.mxu0 0.0
      %2290 = vmatprep.subr.mxu0 0.0
      %2291 = vmatpush1.msra.mxu0 0.0
      %2292 = vmatprep.subr.mxu0 0.0
      %2293 = vmatpush1.msra.mxu0 0.0
      %2294 = vmatprep.subr.mxu0 0.0
      %2295 = vmatpush1.msra.mxu0 0.0
      %2296 = vmatprep.subr.mxu0 0.0
      %2297 = vmatpush1.msra.mxu0 0.0
      %2298 = vmatprep.subr.mxu0 0.0
      %2299 = vmatpush1.msra.mxu0 0.0
      %2300 = vmatprep.subr.mxu0 0.0
      %2301 = vmatpush1.msra.mxu0 0.0
      %2302 = vmatprep.subr.mxu0 0.0
      %2303 = vmatpush1.msra.mxu0 0.0
      %2304 = vmatprep.subr.mxu0 0.0
      %2305 = vmatpush1.msra.mxu0 0.0
      %2306 = vmatprep.subr.mxu0 0.0
      %2307 = vmatpush1.msra.mxu0 0.0
      %2308 = vmatprep.subr.mxu0 0.0
      %2309 = vmatpush1.msra.mxu0 0.0
      %2310 = vmatprep.subr.mxu0 0.0
      %2311 = vmatpush1.msra.mxu0 0.0
      %2312 = vmatprep.subr.mxu0 0.0
      %2313 = vmatpush1.msra.mxu0 0.0
      %2314 = vmatprep.subr.mxu0 0.0
      %2315 = vmatpush1.msra.mxu0 0.0
      %2316 = vmatprep.subr.mxu0 0.0
      %2317 = vmatpush1.msra.mxu0 0.0
      %2318 = vmatprep.subr.mxu0 0.0
      %2319 = vmatpush1.msra.mxu0 0.0
      %2320 = vmatprep.subr.mxu0 0.0
      %2321 = vmatpush1.msra.mxu0 0.0
      %2322 = vmatprep.subr.mxu0 0.0
      %2323 = vmatpush1.msra.mxu0 0.0
      %2324 = vmatprep.subr.mxu0 0.0
      %2325 = vmatpush1.msra.mxu0 0.0
      %2326 = vmatprep.mubr.f32.mxu0 0.0
      %2327 = vmatmul.mubr.f32.gmra.mrb[0].mxu0 %v2167
      %v2328 = vpop.f32.mrb[0].mxu0
      %v2329 = vadd.f32 0.0, %v2328
      %v2330 = vpop.f32.mrb[0].mxu0
      %2331 = vmatprep.mubr.f32.mxu0 0.0
      %2332 = vmatmul.mubr.f32.gmra.mrb[0].mxu0 %v2170
      %v2333 = vpop.f32.mrb[0].mxu0
      %v2334 = vadd.f32 0.0, %v2333
      %v2335 = vpop.f32.mrb[0].mxu0
      %2336 = vmatprep.mubr.f32.mxu0 0.0
      %2337 = vmatmul.mubr.f32.gmra.mrb[0].mxu0 %v2173
      %v2338 = vpop.f32.mrb[0].mxu0
      %v2339 = vadd.f32 0.0, %v2338
      %v2340 = vpop.f32.mrb[0].mxu0
      %2341 = vmatprep.mubr.f32.mxu0 0.0
      %2342 = vmatmul.mubr.f32.gmra.mrb[0].mxu0 %v2176
      %v2343 = vpop.f32.mrb[0].mxu0
      %v2344 = vadd.f32 0.0, %v2343
      %v2345 = vpop.f32.mrb[0].mxu0
      %2346 = vmatprep.mubr.f32.mxu0 0.0
      %2347 = vmatmul.mubr.f32.gmra.mrb[0].mxu0 %v2179
      %v2348 = vpop.f32.mrb[0].mxu0
      %v2349 = vadd.f32 0.0, %v2348
      %v2350 = vpop.f32.mrb[0].mxu0
      %2351 = vmatprep.mubr.f32.mxu0 0.0
      %2352 = vmatmul.mubr.f32.gmra.mrb[0].mxu0 %v2182
      %v2353 = vpop.f32.mrb[0].mxu0
      %v2354 = vadd.f32 0.0, %v2353
      %v2355 = vpop.f32.mrb[0].mxu0
      %2356 = vmatprep.mubr.f32.mxu0 0.0
      %2357 = vmatmul.mubr.f32.gmra.mrb[0].mxu0 %v2185
      %v2358 = vpop.f32.mrb[0].mxu0
      %v2359 = vadd.f32 0.0, %v2358
      %v2360 = vpop.f32.mrb[0].mxu0
      %2361 = vmatprep.mubr.f32.mxu0 0.0
      %2362 = vmatmul.mubr.f32.gmra.mrb[0].mxu0 %v2188
      %v2363 = vpop.f32.mrb[0].mxu0
      %v2364 = vadd.f32 0.0, %v2363
      %v2365 = vpop.f32.mrb[0].mxu0
      %2366 = vmatprep.mubr.f32.mxu0 0.0
      %2367 = vmatmul.mubr.f32.gmra.mrb[0].mxu0 %v2191
      %v2368 = vpop.f32.mrb[0].mxu0
      %v2369 = vadd.f32 0.0, %v2368
      %v2370 = vpop.f32.mrb[0].mxu0
      %2371 = vmatprep.mubr.f32.mxu0 0.0
      %2372 = vmatmul.mubr.f32.gmra.mrb[0].mxu0 %v2194
      %v2373 = vpop.f32.mrb[0].mxu0
      %v2374 = vadd.f32 0.0, %v2373
      %v2375 = vpop.f32.mrb[0].mxu0
      %2376 = vmatprep.mubr.f32.mxu0 0.0
      %2377 = vmatmul.mubr.f32.gmra.mrb[0].mxu0 %v2197
      %v2378 = vpop.f32.mrb[0].mxu0
      %v2379 = vadd.f32 0.0, %v2378
      %v2380 = vpop.f32.mrb[0].mxu0
      %2381 = vmatprep.mubr.f32.mxu0 0.0
      %2382 = vmatmul.mubr.f32.gmra.mrb[0].mxu0 %v2200
      %v2383 = vpop.f32.mrb[0].mxu0
      %v2384 = vadd.f32 0.0, %v2383
      %v2385 = vpop.f32.mrb[0].mxu0
      %2386 = vmatprep.mubr.f32.mxu0 0.0
      %2387 = vmatmul.mubr.f32.gmra.mrb[0].mxu0 %v2203
      %v2388 = vpop.f32.mrb[0].mxu0
      %v2389 = vadd.f32 0.0, %v2388
      %v2390 = vpop.f32.mrb[0].mxu0
      %2391 = vmatprep.mubr.f32.mxu0 0.0
      %2392 = vmatmul.mubr.f32.gmra.mrb[0].mxu0 %v2206
      %v2393 = vpop.f32.mrb[0].mxu0
      %v2394 = vadd.f32 0.0, %v2393
      %v2395 = vpop.f32.mrb[0].mxu0
      %2396 = vmatprep.mubr.f32.mxu0 0.0
      %2397 = vmatmul.mubr.f32.gmra.mrb[0].mxu0 %v2209
      %v2398 = vpop.f32.mrb[0].mxu0
      %v2399 = vadd.f32 0.0, %v2398
      %v2400 = vpop.f32.mrb[0].mxu0
      %2401 = vmatprep.mubr.f32.mxu0 0.0
      %2402 = vmatmul.mubr.f32.gmra.mrb[0].mxu0 %v2212
      %v2403 = vpop.f32.mrb[0].mxu0
      %v2404 = vadd.f32 0.0, %v2403
      %v2405 = vpop.f32.mrb[0].mxu0
      %2406 = vmatprep.mubr.f32.mxu0 0.0
      %2407 = vmatmul.mubr.f32.gmra.mrb[0].mxu0 %v2215
      %v2408 = vpop.f32.mrb[0].mxu0
      %v2409 = vadd.f32 0.0, %v2408
      %v2410 = vpop.f32.mrb[0].mxu0
      %2411 = vmatprep.mubr.f32.mxu0 0.0
      %2412 = vmatmul.mubr.f32.gmra.mrb[0].mxu0 %v2218
      %v2413 = vpop.f32.mrb[0].mxu0
      %v2414 = vadd.f32 0.0, %v2413
      %v2415 = vpop.f32.mrb[0].mxu0
      %2416 = vmatprep.mubr.f32.mxu0 0.0
      %2417 = vmatmul.mubr.f32.gmra.mrb[0].mxu0 %v2221
      %v2418 = vpop.f32.mrb[0].mxu0
      %v2419 = vadd.f32 0.0, %v2418
      %v2420 = vpop.f32.mrb[0].mxu0
      %2421 = vmatprep.mubr.f32.mxu0 0.0
      %2422 = vmatmul.mubr.f32.gmra.mrb[0].mxu0 %v2224
      %v2423 = vpop.f32.mrb[0].mxu0
      %v2424 = vadd.f32 0.0, %v2423
      %v2425 = vpop.f32.mrb[0].mxu0
      %2426 = vmatprep.mubr.f32.mxu0 0.0
      %2427 = vmatmul.mubr.f32.gmra.mrb[0].mxu0 %v2227
      %v2428 = vpop.f32.mrb[0].mxu0
      %v2429 = vadd.f32 0.0, %v2428
      %v2430 = vpop.f32.mrb[0].mxu0
      %2431 = vmatprep.mubr.f32.mxu0 0.0
      %2432 = vmatmul.mubr.f32.gmra.mrb[0].mxu0 %v2230
      %v2433 = vpop.f32.mrb[0].mxu0
      %v2434 = vadd.f32 0.0, %v2433
      %v2435 = vpop.f32.mrb[0].mxu0
      %2436 = vmatprep.mubr.f32.mxu0 0.0
      %2437 = vmatmul.mubr.f32.gmra.mrb[0].mxu0 %v2233
      %v2438 = vpop.f32.mrb[0].mxu0
      %v2439 = vadd.f32 0.0, %v2438
      %v2440 = vpop.f32.mrb[0].mxu0
      %2441 = vmatprep.mubr.f32.mxu0 0.0
      %2442 = vmatmul.mubr.f32.gmra.mrb[0].mxu0 %v2236
      %v2443 = vpop.f32.mrb[0].mxu0
      %v2444 = vadd.f32 0.0, %v2443
      %v2445 = vpop.f32.mrb[0].mxu0
      %2446 = vmatprep.mubr.f32.mxu0 0.0
      %2447 = vmatmul.mubr.f32.gmra.mrb[0].mxu0 %v2239
      %v2448 = vpop.f32.mrb[0].mxu0
      %v2449 = vadd.f32 0.0, %v2448
      %v2450 = vpop.f32.mrb[0].mxu0
      %2451 = vmatprep.mubr.f32.mxu0 0.0
      %2452 = vmatmul.mubr.f32.gmra.mrb[0].mxu0 %v2242
      %v2453 = vpop.f32.mrb[0].mxu0
      %v2454 = vadd.f32 0.0, %v2453
      %v2455 = vpop.f32.mrb[0].mxu0
      %2456 = vmatprep.mubr.f32.mxu0 0.0
      %2457 = vmatmul.mubr.f32.gmra.mrb[0].mxu0 %v2245
      %v2458 = vpop.f32.mrb[0].mxu0
      %v2459 = vadd.f32 0.0, %v2458
      %v2460 = vpop.f32.mrb[0].mxu0
      %2461 = vmatprep.mubr.f32.mxu0 0.0
      %2462 = vmatmul.mubr.f32.gmra.mrb[0].mxu0 %v2248
      %v2463 = vpop.f32.mrb[0].mxu0
      %v2464 = vadd.f32 0.0, %v2463
      %v2465 = vpop.f32.mrb[0].mxu0
      %2466 = vmatprep.mubr.f32.mxu0 0.0
      %2467 = vmatmul.mubr.f32.gmra.mrb[0].mxu0 %v2251
      %v2468 = vpop.f32.mrb[0].mxu0
      %v2469 = vadd.f32 0.0, %v2468
      %v2470 = vpop.f32.mrb[0].mxu0
      %2471 = vmatprep.mubr.f32.mxu0 0.0
      %2472 = vmatmul.mubr.f32.gmra.mrb[0].mxu0 %v2254
      %v2473 = vpop.f32.mrb[0].mxu0
      %v2474 = vadd.f32 0.0, %v2473
      %v2475 = vpop.f32.mrb[0].mxu0
      %2476 = vmatprep.mubr.f32.mxu0 0.0
      %2477 = vmatmul.mubr.f32.gmra.mrb[0].mxu0 %v2257
      %v2478 = vpop.f32.mrb[0].mxu0
      %v2479 = vadd.f32 0.0, %v2478
      %v2480 = vpop.f32.mrb[0].mxu0
      %2481 = vmatprep.mubr.f32.mxu0 0.0
      %2482 = vmatmul.mubr.f32.gmra.mrb[0].mxu0 %v2260
      %v2483 = vpop.f32.mrb[0].mxu0
      %v2484 = vadd.f32 0.0, %v2483
      %v2485 = vpop.f32.mrb[0].mxu0
      %2486 = vdwg.mxu0
      %v2487 = vadd.f32 %v2097, %v2329
      %v2488 = vadd.f32 %v2098, %v2334
      %v2489 = vadd.f32 %v2099, %v2339
      %v2490 = vadd.f32 %v2100, %v2344
      %v2491 = vadd.f32 %v2101, %v2349
      %v2492 = vadd.f32 %v2102, %v2354
      %v2493 = vadd.f32 %v2103, %v2359
      %v2494 = vadd.f32 %v2104, %v2364
      %v2495 = vadd.f32 %v2105, %v2369
      %v2496 = vadd.f32 %v2106, %v2374
      %v2497 = vadd.f32 %v2107, %v2379
      %v2498 = vadd.f32 %v2108, %v2384
      %v2499 = vadd.f32 %v2109, %v2389
      %v2500 = vadd.f32 %v2110, %v2394
      %v2501 = vadd.f32 %v2111, %v2399
      %v2502 = vadd.f32 %v2112, %v2404
      %v2503 = vadd.f32 %v2113, %v2409
      %v2504 = vadd.f32 %v2114, %v2414
      %v2505 = vadd.f32 %v2115, %v2419
      %v2506 = vadd.f32 %v2116, %v2424
      %v2507 = vadd.f32 %v2117, %v2429
      %v2508 = vadd.f32 %v2118, %v2434
      %v2509 = vadd.f32 %v2119, %v2439
      %v2510 = vadd.f32 %v2120, %v2444
      %v2511 = vadd.f32 %v2121, %v2449
      %v2512 = vadd.f32 %v2122, %v2454
      %v2513 = vadd.f32 %v2123, %v2459
      %v2514 = vadd.f32 %v2124, %v2464
      %v2515 = vadd.f32 %v2125, %v2469
      %v2516 = vadd.f32 %v2126, %v2474
      %v2517 = vadd.f32 %v2127, %v2479
      %v2518 = vadd.f32 %v2128, %v2484
      %s2519 = scalar_lea.vmem %s230, 48
      %v2520 = vld [vmem:[%s2519] sm:$0xff]
      %v2521 = vld [vmem:[%s2519 + $0x8] sm:$0xff]
      %v2522 = vld [vmem:[%s2519 + $0x18] sm:$0xff]
      %v2523 = vld [vmem:[%s2519 + $0x20] sm:$0xff]
      %v2524 = vld [vmem:[%s2519 + $0x30] sm:$0xff]
      %v2525 = vld [vmem:[%s2519 + $0x38] sm:$0xff]
      %v2526 = vld [vmem:[%s2519 + $0x48] sm:$0xff]
      %v2527 = vld [vmem:[%s2519 + $0x50] sm:$0xff]
      %v2528 = vld [vmem:[%s2519 + $0x60] sm:$0xff]
      %v2529 = vld [vmem:[%s2519 + $0x68] sm:$0xff]
      %v2530 = vld [vmem:[%s2519 + $0x78] sm:$0xff]
      %v2531 = vld [vmem:[%s2519 + $0x80] sm:$0xff]
      %v2532 = vld [vmem:[%s2519 + $0x90] sm:$0xff]
      %v2533 = vld [vmem:[%s2519 + $0x98] sm:$0xff]
      %v2534 = vld [vmem:[%s2519 + $0xa8] sm:$0xff]
      %v2535 = vld [vmem:[%s2519 + $0xb0] sm:$0xff]
      %v2536 = vld [vmem:[%s2519 + $0xc0] sm:$0xff]
      %v2537 = vld [vmem:[%s2519 + $0xc8] sm:$0xff]
      %v2538 = vld [vmem:[%s2519 + $0xd8] sm:$0xff]
      %v2539 = vld [vmem:[%s2519 + $0xe0] sm:$0xff]
      %v2540 = vld [vmem:[%s2519 + $0xf0] sm:$0xff]
      %v2541 = vld [vmem:[%s2519 + $0xf8] sm:$0xff]
      %v2542 = vld [vmem:[%s2519 + $0x108] sm:$0xff]
      %v2543 = vld [vmem:[%s2519 + $0x110] sm:$0xff]
      %v2544 = vld [vmem:[%s2519 + $0x120] sm:$0xff]
      %v2545 = vld [vmem:[%s2519 + $0x128] sm:$0xff]
      %v2546 = vld [vmem:[%s2519 + $0x138] sm:$0xff]
      %v2547 = vld [vmem:[%s2519 + $0x140] sm:$0xff]
      %v2548 = vld [vmem:[%s2519 + $0x150] sm:$0xff]
      %v2549 = vld [vmem:[%s2519 + $0x158] sm:$0xff]
      %v2550 = vld [vmem:[%s2519 + $0x168] sm:$0xff]
      %v2551 = vld [vmem:[%s2519 + $0x170] sm:$0xff]
      %s2552 = scalar_lea.vmem %s1, 192
      %v2553 = vld [vmem:[%s2552] sm:$0xff]
      %v2554 = vld [vmem:[%s2552 + $0x8] sm:$0xff]
      %v2555 = vld [vmem:[%s2552 + $0x10] sm:$0xff]
      %v2556 = vld [vmem:[%s2552 + $0x18] sm:$0xff]
      %v2558 = vsel %vm315, %v2520, 0
      %v2561 = vsel %vm315, %v2521, 0
      %v2564 = vsel %vm315, %v2522, 0
      %v2567 = vsel %vm315, %v2523, 0
      %v2570 = vsel %vm315, %v2524, 0
      %v2573 = vsel %vm315, %v2525, 0
      %v2576 = vsel %vm315, %v2526, 0
      %v2579 = vsel %vm315, %v2527, 0
      %v2582 = vsel %vm315, %v2528, 0
      %v2585 = vsel %vm315, %v2529, 0
      %v2588 = vsel %vm315, %v2530, 0
      %v2591 = vsel %vm315, %v2531, 0
      %v2594 = vsel %vm315, %v2532, 0
      %v2597 = vsel %vm315, %v2533, 0
      %v2600 = vsel %vm315, %v2534, 0
      %v2603 = vsel %vm315, %v2535, 0
      %v2606 = vsel %vm315, %v2536, 0
      %v2609 = vsel %vm315, %v2537, 0
      %v2612 = vsel %vm315, %v2538, 0
      %v2615 = vsel %vm315, %v2539, 0
      %v2618 = vsel %vm315, %v2540, 0
      %v2621 = vsel %vm315, %v2541, 0
      %v2624 = vsel %vm315, %v2542, 0
      %v2627 = vsel %vm315, %v2543, 0
      %v2630 = vsel %vm315, %v2544, 0
      %v2633 = vsel %vm315, %v2545, 0
      %v2636 = vsel %vm315, %v2546, 0
      %v2639 = vsel %vm315, %v2547, 0
      %v2642 = vsel %vm315, %v2548, 0
      %v2645 = vsel %vm315, %v2549, 0
      %v2648 = vsel %vm315, %v2550, 0
      %v2651 = vsel %vm315, %v2551, 0
      %2653 = vmatprep.subr.mxu0 0.0
      %2654 = vmatpush1.msra.mxu0 %v2553
      %2655 = vmatprep.subr.mxu0 0.0
      %2656 = vmatpush1.msra.mxu0 %v2554
      %2657 = vmatprep.subr.mxu0 0.0
      %2658 = vmatpush1.msra.mxu0 %v2555
      %2659 = vmatprep.subr.mxu0 0.0
      %2660 = vmatpush1.msra.mxu0 %v2556
      %2661 = vmatprep.subr.mxu0 0.0
      %2662 = vmatpush1.msra.mxu0 0.0
      %2663 = vmatprep.subr.mxu0 0.0
      %2664 = vmatpush1.msra.mxu0 0.0
      %2665 = vmatprep.subr.mxu0 0.0
      %2666 = vmatpush1.msra.mxu0 0.0
      %2667 = vmatprep.subr.mxu0 0.0
      %2668 = vmatpush1.msra.mxu0 0.0
      %2669 = vmatprep.subr.mxu0 0.0
      %2670 = vmatpush1.msra.mxu0 0.0
      %2671 = vmatprep.subr.mxu0 0.0
      %2672 = vmatpush1.msra.mxu0 0.0
      %2673 = vmatprep.subr.mxu0 0.0
      %2674 = vmatpush1.msra.mxu0 0.0
      %2675 = vmatprep.subr.mxu0 0.0
      %2676 = vmatpush1.msra.mxu0 0.0
      %2677 = vmatprep.subr.mxu0 0.0
      %2678 = vmatpush1.msra.mxu0 0.0
      %2679 = vmatprep.subr.mxu0 0.0
      %2680 = vmatpush1.msra.mxu0 0.0
      %2681 = vmatprep.subr.mxu0 0.0
      %2682 = vmatpush1.msra.mxu0 0.0
      %2683 = vmatprep.subr.mxu0 0.0
      %2684 = vmatpush1.msra.mxu0 0.0
      %2685 = vmatprep.subr.mxu0 0.0
      %2686 = vmatpush1.msra.mxu0 0.0
      %2687 = vmatprep.subr.mxu0 0.0
      %2688 = vmatpush1.msra.mxu0 0.0
      %2689 = vmatprep.subr.mxu0 0.0
      %2690 = vmatpush1.msra.mxu0 0.0
      %2691 = vmatprep.subr.mxu0 0.0
      %2692 = vmatpush1.msra.mxu0 0.0
      %2693 = vmatprep.subr.mxu0 0.0
      %2694 = vmatpush1.msra.mxu0 0.0
      %2695 = vmatprep.subr.mxu0 0.0
      %2696 = vmatpush1.msra.mxu0 0.0
      %2697 = vmatprep.subr.mxu0 0.0
      %2698 = vmatpush1.msra.mxu0 0.0
      %2699 = vmatprep.subr.mxu0 0.0
      %2700 = vmatpush1.msra.mxu0 0.0
      %2701 = vmatprep.subr.mxu0 0.0
      %2702 = vmatpush1.msra.mxu0 0.0
      %2703 = vmatprep.subr.mxu0 0.0
      %2704 = vmatpush1.msra.mxu0 0.0
      %2705 = vmatprep.subr.mxu0 0.0
      %2706 = vmatpush1.msra.mxu0 0.0
      %2707 = vmatprep.subr.mxu0 0.0
      %2708 = vmatpush1.msra.mxu0 0.0
      %2709 = vmatprep.subr.mxu0 0.0
      %2710 = vmatpush1.msra.mxu0 0.0
      %2711 = vmatprep.subr.mxu0 0.0
      %2712 = vmatpush1.msra.mxu0 0.0
      %2713 = vmatprep.subr.mxu0 0.0
      %2714 = vmatpush1.msra.mxu0 0.0
      %2715 = vmatprep.subr.mxu0 0.0
      %2716 = vmatpush1.msra.mxu0 0.0
      %2717 = vmatprep.mubr.f32.mxu0 0.0
      %2718 = vmatmul.mubr.f32.gmra.mrb[0].mxu0 %v2558
      %v2719 = vpop.f32.mrb[0].mxu0
      %v2720 = vadd.f32 0.0, %v2719
      %v2721 = vpop.f32.mrb[0].mxu0
      %2722 = vmatprep.mubr.f32.mxu0 0.0
      %2723 = vmatmul.mubr.f32.gmra.mrb[0].mxu0 %v2561
      %v2724 = vpop.f32.mrb[0].mxu0
      %v2725 = vadd.f32 0.0, %v2724
      %v2726 = vpop.f32.mrb[0].mxu0
      %2727 = vmatprep.mubr.f32.mxu0 0.0
      %2728 = vmatmul.mubr.f32.gmra.mrb[0].mxu0 %v2564
      %v2729 = vpop.f32.mrb[0].mxu0
      %v2730 = vadd.f32 0.0, %v2729
      %v2731 = vpop.f32.mrb[0].mxu0
      %2732 = vmatprep.mubr.f32.mxu0 0.0
      %2733 = vmatmul.mubr.f32.gmra.mrb[0].mxu0 %v2567
      %v2734 = vpop.f32.mrb[0].mxu0
      %v2735 = vadd.f32 0.0, %v2734
      %v2736 = vpop.f32.mrb[0].mxu0
      %2737 = vmatprep.mubr.f32.mxu0 0.0
      %2738 = vmatmul.mubr.f32.gmra.mrb[0].mxu0 %v2570
      %v2739 = vpop.f32.mrb[0].mxu0
      %v2740 = vadd.f32 0.0, %v2739
      %v2741 = vpop.f32.mrb[0].mxu0
      %2742 = vmatprep.mubr.f32.mxu0 0.0
      %2743 = vmatmul.mubr.f32.gmra.mrb[0].mxu0 %v2573
      %v2744 = vpop.f32.mrb[0].mxu0
      %v2745 = vadd.f32 0.0, %v2744
      %v2746 = vpop.f32.mrb[0].mxu0
      %2747 = vmatprep.mubr.f32.mxu0 0.0
      %2748 = vmatmul.mubr.f32.gmra.mrb[0].mxu0 %v2576
      %v2749 = vpop.f32.mrb[0].mxu0
      %v2750 = vadd.f32 0.0, %v2749
      %v2751 = vpop.f32.mrb[0].mxu0
      %2752 = vmatprep.mubr.f32.mxu0 0.0
      %2753 = vmatmul.mubr.f32.gmra.mrb[0].mxu0 %v2579
      %v2754 = vpop.f32.mrb[0].mxu0
      %v2755 = vadd.f32 0.0, %v2754
      %v2756 = vpop.f32.mrb[0].mxu0
      %2757 = vmatprep.mubr.f32.mxu0 0.0
      %2758 = vmatmul.mubr.f32.gmra.mrb[0].mxu0 %v2582
      %v2759 = vpop.f32.mrb[0].mxu0
      %v2760 = vadd.f32 0.0, %v2759
      %v2761 = vpop.f32.mrb[0].mxu0
      %2762 = vmatprep.mubr.f32.mxu0 0.0
      %2763 = vmatmul.mubr.f32.gmra.mrb[0].mxu0 %v2585
      %v2764 = vpop.f32.mrb[0].mxu0
      %v2765 = vadd.f32 0.0, %v2764
      %v2766 = vpop.f32.mrb[0].mxu0
      %2767 = vmatprep.mubr.f32.mxu0 0.0
      %2768 = vmatmul.mubr.f32.gmra.mrb[0].mxu0 %v2588
      %v2769 = vpop.f32.mrb[0].mxu0
      %v2770 = vadd.f32 0.0, %v2769
      %v2771 = vpop.f32.mrb[0].mxu0
      %2772 = vmatprep.mubr.f32.mxu0 0.0
      %2773 = vmatmul.mubr.f32.gmra.mrb[0].mxu0 %v2591
      %v2774 = vpop.f32.mrb[0].mxu0
      %v2775 = vadd.f32 0.0, %v2774
      %v2776 = vpop.f32.mrb[0].mxu0
      %2777 = vmatprep.mubr.f32.mxu0 0.0
      %2778 = vmatmul.mubr.f32.gmra.mrb[0].mxu0 %v2594
      %v2779 = vpop.f32.mrb[0].mxu0
      %v2780 = vadd.f32 0.0, %v2779
      %v2781 = vpop.f32.mrb[0].mxu0
      %2782 = vmatprep.mubr.f32.mxu0 0.0
      %2783 = vmatmul.mubr.f32.gmra.mrb[0].mxu0 %v2597
      %v2784 = vpop.f32.mrb[0].mxu0
      %v2785 = vadd.f32 0.0, %v2784
      %v2786 = vpop.f32.mrb[0].mxu0
      %2787 = vmatprep.mubr.f32.mxu0 0.0
      %2788 = vmatmul.mubr.f32.gmra.mrb[0].mxu0 %v2600
      %v2789 = vpop.f32.mrb[0].mxu0
      %v2790 = vadd.f32 0.0, %v2789
      %v2791 = vpop.f32.mrb[0].mxu0
      %2792 = vmatprep.mubr.f32.mxu0 0.0
      %2793 = vmatmul.mubr.f32.gmra.mrb[0].mxu0 %v2603
      %v2794 = vpop.f32.mrb[0].mxu0
      %v2795 = vadd.f32 0.0, %v2794
      %v2796 = vpop.f32.mrb[0].mxu0
      %2797 = vmatprep.mubr.f32.mxu0 0.0
      %2798 = vmatmul.mubr.f32.gmra.mrb[0].mxu0 %v2606
      %v2799 = vpop.f32.mrb[0].mxu0
      %v2800 = vadd.f32 0.0, %v2799
      %v2801 = vpop.f32.mrb[0].mxu0
      %2802 = vmatprep.mubr.f32.mxu0 0.0
      %2803 = vmatmul.mubr.f32.gmra.mrb[0].mxu0 %v2609
      %v2804 = vpop.f32.mrb[0].mxu0
      %v2805 = vadd.f32 0.0, %v2804
      %v2806 = vpop.f32.mrb[0].mxu0
      %2807 = vmatprep.mubr.f32.mxu0 0.0
      %2808 = vmatmul.mubr.f32.gmra.mrb[0].mxu0 %v2612
      %v2809 = vpop.f32.mrb[0].mxu0
      %v2810 = vadd.f32 0.0, %v2809
      %v2811 = vpop.f32.mrb[0].mxu0
      %2812 = vmatprep.mubr.f32.mxu0 0.0
      %2813 = vmatmul.mubr.f32.gmra.mrb[0].mxu0 %v2615
      %v2814 = vpop.f32.mrb[0].mxu0
      %v2815 = vadd.f32 0.0, %v2814
      %v2816 = vpop.f32.mrb[0].mxu0
      %2817 = vmatprep.mubr.f32.mxu0 0.0
      %2818 = vmatmul.mubr.f32.gmra.mrb[0].mxu0 %v2618
      %v2819 = vpop.f32.mrb[0].mxu0
      %v2820 = vadd.f32 0.0, %v2819
      %v2821 = vpop.f32.mrb[0].mxu0
      %2822 = vmatprep.mubr.f32.mxu0 0.0
      %2823 = vmatmul.mubr.f32.gmra.mrb[0].mxu0 %v2621
      %v2824 = vpop.f32.mrb[0].mxu0
      %v2825 = vadd.f32 0.0, %v2824
      %v2826 = vpop.f32.mrb[0].mxu0
      %2827 = vmatprep.mubr.f32.mxu0 0.0
      %2828 = vmatmul.mubr.f32.gmra.mrb[0].mxu0 %v2624
      %v2829 = vpop.f32.mrb[0].mxu0
      %v2830 = vadd.f32 0.0, %v2829
      %v2831 = vpop.f32.mrb[0].mxu0
      %2832 = vmatprep.mubr.f32.mxu0 0.0
      %2833 = vmatmul.mubr.f32.gmra.mrb[0].mxu0 %v2627
      %v2834 = vpop.f32.mrb[0].mxu0
      %v2835 = vadd.f32 0.0, %v2834
      %v2836 = vpop.f32.mrb[0].mxu0
      %2837 = vmatprep.mubr.f32.mxu0 0.0
      %2838 = vmatmul.mubr.f32.gmra.mrb[0].mxu0 %v2630
      %v2839 = vpop.f32.mrb[0].mxu0
      %v2840 = vadd.f32 0.0, %v2839
      %v2841 = vpop.f32.mrb[0].mxu0
      %2842 = vmatprep.mubr.f32.mxu0 0.0
      %2843 = vmatmul.mubr.f32.gmra.mrb[0].mxu0 %v2633
      %v2844 = vpop.f32.mrb[0].mxu0
      %v2845 = vadd.f32 0.0, %v2844
      %v2846 = vpop.f32.mrb[0].mxu0
      %2847 = vmatprep.mubr.f32.mxu0 0.0
      %2848 = vmatmul.mubr.f32.gmra.mrb[0].mxu0 %v2636
      %v2849 = vpop.f32.mrb[0].mxu0
      %v2850 = vadd.f32 0.0, %v2849
      %v2851 = vpop.f32.mrb[0].mxu0
      %2852 = vmatprep.mubr.f32.mxu0 0.0
      %2853 = vmatmul.mubr.f32.gmra.mrb[0].mxu0 %v2639
      %v2854 = vpop.f32.mrb[0].mxu0
      %v2855 = vadd.f32 0.0, %v2854
      %v2856 = vpop.f32.mrb[0].mxu0
      %2857 = vmatprep.mubr.f32.mxu0 0.0
      %2858 = vmatmul.mubr.f32.gmra.mrb[0].mxu0 %v2642
      %v2859 = vpop.f32.mrb[0].mxu0
      %v2860 = vadd.f32 0.0, %v2859
      %v2861 = vpop.f32.mrb[0].mxu0
      %2862 = vmatprep.mubr.f32.mxu0 0.0
      %2863 = vmatmul.mubr.f32.gmra.mrb[0].mxu0 %v2645
      %v2864 = vpop.f32.mrb[0].mxu0
      %v2865 = vadd.f32 0.0, %v2864
      %v2866 = vpop.f32.mrb[0].mxu0
      %2867 = vmatprep.mubr.f32.mxu0 0.0
      %2868 = vmatmul.mubr.f32.gmra.mrb[0].mxu0 %v2648
      %v2869 = vpop.f32.mrb[0].mxu0
      %v2870 = vadd.f32 0.0, %v2869
      %v2871 = vpop.f32.mrb[0].mxu0
      %2872 = vmatprep.mubr.f32.mxu0 0.0
      %2873 = vmatmul.mubr.f32.gmra.mrb[0].mxu0 %v2651
      %v2874 = vpop.f32.mrb[0].mxu0
      %v2875 = vadd.f32 0.0, %v2874
      %v2876 = vpop.f32.mrb[0].mxu0
      %2877 = vdwg.mxu0
      %v2878 = vadd.f32 %v2487, %v2720
      %v2879 = vadd.f32 %v2488, %v2725
      %v2880 = vadd.f32 %v2489, %v2730
      %v2881 = vadd.f32 %v2490, %v2735
      %v2882 = vadd.f32 %v2491, %v2740
      %v2883 = vadd.f32 %v2492, %v2745
      %v2884 = vadd.f32 %v2493, %v2750
      %v2885 = vadd.f32 %v2494, %v2755
      %v2886 = vadd.f32 %v2495, %v2760
      %v2887 = vadd.f32 %v2496, %v2765
      %v2888 = vadd.f32 %v2497, %v2770
      %v2889 = vadd.f32 %v2498, %v2775
      %v2890 = vadd.f32 %v2499, %v2780
      %v2891 = vadd.f32 %v2500, %v2785
      %v2892 = vadd.f32 %v2501, %v2790
      %v2893 = vadd.f32 %v2502, %v2795
      %v2894 = vadd.f32 %v2503, %v2800
      %v2895 = vadd.f32 %v2504, %v2805
      %v2896 = vadd.f32 %v2505, %v2810
      %v2897 = vadd.f32 %v2506, %v2815
      %v2898 = vadd.f32 %v2507, %v2820
      %v2899 = vadd.f32 %v2508, %v2825
      %v2900 = vadd.f32 %v2509, %v2830
      %v2901 = vadd.f32 %v2510, %v2835
      %v2902 = vadd.f32 %v2511, %v2840
      %v2903 = vadd.f32 %v2512, %v2845
      %v2904 = vadd.f32 %v2513, %v2850
      %v2905 = vadd.f32 %v2514, %v2855
      %v2906 = vadd.f32 %v2515, %v2860
      %v2907 = vadd.f32 %v2516, %v2865
      %v2908 = vadd.f32 %v2517, %v2870
      %v2909 = vadd.f32 %v2518, %v2875
      %v2910 = vld [vmem:[%s2519 + $0x1] sm:$0xff]
      %v2911 = vld [vmem:[%s2519 + $0x9] sm:$0xff]
      %v2912 = vld [vmem:[%s2519 + $0x19] sm:$0xff]
      %v2913 = vld [vmem:[%s2519 + $0x21] sm:$0xff]
      %v2914 = vld [vmem:[%s2519 + $0x31] sm:$0xff]
      %v2915 = vld [vmem:[%s2519 + $0x39] sm:$0xff]
      %v2916 = vld [vmem:[%s2519 + $0x49] sm:$0xff]
      %v2917 = vld [vmem:[%s2519 + $0x51] sm:$0xff]
      %v2918 = vld [vmem:[%s2519 + $0x61] sm:$0xff]
      %v2919 = vld [vmem:[%s2519 + $0x69] sm:$0xff]
      %v2920 = vld [vmem:[%s2519 + $0x79] sm:$0xff]
      %v2921 = vld [vmem:[%s2519 + $0x81] sm:$0xff]
      %v2922 = vld [vmem:[%s2519 + $0x91] sm:$0xff]
      %v2923 = vld [vmem:[%s2519 + $0x99] sm:$0xff]
      %v2924 = vld [vmem:[%s2519 + $0xa9] sm:$0xff]
      %v2925 = vld [vmem:[%s2519 + $0xb1] sm:$0xff]
      %v2926 = vld [vmem:[%s2519 + $0xc1] sm:$0xff]
      %v2927 = vld [vmem:[%s2519 + $0xc9] sm:$0xff]
      %v2928 = vld [vmem:[%s2519 + $0xd9] sm:$0xff]
      %v2929 = vld [vmem:[%s2519 + $0xe1] sm:$0xff]
      %v2930 = vld [vmem:[%s2519 + $0xf1] sm:$0xff]
      %v2931 = vld [vmem:[%s2519 + $0xf9] sm:$0xff]
      %v2932 = vld [vmem:[%s2519 + $0x109] sm:$0xff]
      %v2933 = vld [vmem:[%s2519 + $0x111] sm:$0xff]
      %v2934 = vld [vmem:[%s2519 + $0x121] sm:$0xff]
      %v2935 = vld [vmem:[%s2519 + $0x129] sm:$0xff]
      %v2936 = vld [vmem:[%s2519 + $0x139] sm:$0xff]
      %v2937 = vld [vmem:[%s2519 + $0x141] sm:$0xff]
      %v2938 = vld [vmem:[%s2519 + $0x151] sm:$0xff]
      %v2939 = vld [vmem:[%s2519 + $0x159] sm:$0xff]
      %v2940 = vld [vmem:[%s2519 + $0x169] sm:$0xff]
      %v2941 = vld [vmem:[%s2519 + $0x171] sm:$0xff]
      %s2942 = scalar_lea.vmem %s1, 224
      %v2943 = vld [vmem:[%s2942] sm:$0xff]
      %v2944 = vld [vmem:[%s2942 + $0x8] sm:$0xff]
      %v2945 = vld [vmem:[%s2942 + $0x10] sm:$0xff]
      %v2946 = vld [vmem:[%s2942 + $0x18] sm:$0xff]
      %v2948 = vsel %vm315, %v2910, 0
      %v2951 = vsel %vm315, %v2911, 0
      %v2954 = vsel %vm315, %v2912, 0
      %v2957 = vsel %vm315, %v2913, 0
      %v2960 = vsel %vm315, %v2914, 0
      %v2963 = vsel %vm315, %v2915, 0
      %v2966 = vsel %vm315, %v2916, 0
      %v2969 = vsel %vm315, %v2917, 0
      %v2972 = vsel %vm315, %v2918, 0
      %v2975 = vsel %vm315, %v2919, 0
      %v2978 = vsel %vm315, %v2920, 0
      %v2981 = vsel %vm315, %v2921, 0
      %v2984 = vsel %vm315, %v2922, 0
      %v2987 = vsel %vm315, %v2923, 0
      %v2990 = vsel %vm315, %v2924, 0
      %v2993 = vsel %vm315, %v2925, 0
      %v2996 = vsel %vm315, %v2926, 0
      %v2999 = vsel %vm315, %v2927, 0
      %v3002 = vsel %vm315, %v2928, 0
      %v3005 = vsel %vm315, %v2929, 0
      %v3008 = vsel %vm315, %v2930, 0
      %v3011 = vsel %vm315, %v2931, 0
      %v3014 = vsel %vm315, %v2932, 0
      %v3017 = vsel %vm315, %v2933, 0
      %v3020 = vsel %vm315, %v2934, 0
      %v3023 = vsel %vm315, %v2935, 0
      %v3026 = vsel %vm315, %v2936, 0
      %v3029 = vsel %vm315, %v2937, 0
      %v3032 = vsel %vm315, %v2938, 0
      %v3035 = vsel %vm315, %v2939, 0
      %v3038 = vsel %vm315, %v2940, 0
      %v3041 = vsel %vm315, %v2941, 0
      %3043 = vmatprep.subr.mxu0 0.0
      %3044 = vmatpush1.msra.mxu0 %v2943
      %3045 = vmatprep.subr.mxu0 0.0
      %3046 = vmatpush1.msra.mxu0 %v2944
      %3047 = vmatprep.subr.mxu0 0.0
      %3048 = vmatpush1.msra.mxu0 %v2945
      %3049 = vmatprep.subr.mxu0 0.0
      %3050 = vmatpush1.msra.mxu0 %v2946
      %3051 = vmatprep.subr.mxu0 0.0
      %3052 = vmatpush1.msra.mxu0 0.0
      %3053 = vmatprep.subr.mxu0 0.0
      %3054 = vmatpush1.msra.mxu0 0.0
      %3055 = vmatprep.subr.mxu0 0.0
      %3056 = vmatpush1.msra.mxu0 0.0
      %3057 = vmatprep.subr.mxu0 0.0
      %3058 = vmatpush1.msra.mxu0 0.0
      %3059 = vmatprep.subr.mxu0 0.0
      %3060 = vmatpush1.msra.mxu0 0.0
      %3061 = vmatprep.subr.mxu0 0.0
      %3062 = vmatpush1.msra.mxu0 0.0
      %3063 = vmatprep.subr.mxu0 0.0
      %3064 = vmatpush1.msra.mxu0 0.0
      %3065 = vmatprep.subr.mxu0 0.0
      %3066 = vmatpush1.msra.mxu0 0.0
      %3067 = vmatprep.subr.mxu0 0.0
      %3068 = vmatpush1.msra.mxu0 0.0
      %3069 = vmatprep.subr.mxu0 0.0
      %3070 = vmatpush1.msra.mxu0 0.0
      %3071 = vmatprep.subr.mxu0 0.0
      %3072 = vmatpush1.msra.mxu0 0.0
      %3073 = vmatprep.subr.mxu0 0.0
      %3074 = vmatpush1.msra.mxu0 0.0
      %3075 = vmatprep.subr.mxu0 0.0
      %3076 = vmatpush1.msra.mxu0 0.0
      %3077 = vmatprep.subr.mxu0 0.0
      %3078 = vmatpush1.msra.mxu0 0.0
      %3079 = vmatprep.subr.mxu0 0.0
      %3080 = vmatpush1.msra.mxu0 0.0
      %3081 = vmatprep.subr.mxu0 0.0
      %3082 = vmatpush1.msra.mxu0 0.0
      %3083 = vmatprep.subr.mxu0 0.0
      %3084 = vmatpush1.msra.mxu0 0.0
      %3085 = vmatprep.subr.mxu0 0.0
      %3086 = vmatpush1.msra.mxu0 0.0
      %3087 = vmatprep.subr.mxu0 0.0
      %3088 = vmatpush1.msra.mxu0 0.0
      %3089 = vmatprep.subr.mxu0 0.0
      %3090 = vmatpush1.msra.mxu0 0.0
      %3091 = vmatprep.subr.mxu0 0.0
      %3092 = vmatpush1.msra.mxu0 0.0
      %3093 = vmatprep.subr.mxu0 0.0
      %3094 = vmatpush1.msra.mxu0 0.0
      %3095 = vmatprep.subr.mxu0 0.0
      %3096 = vmatpush1.msra.mxu0 0.0
      %3097 = vmatprep.subr.mxu0 0.0
      %3098 = vmatpush1.msra.mxu0 0.0
      %3099 = vmatprep.subr.mxu0 0.0
      %3100 = vmatpush1.msra.mxu0 0.0
      %3101 = vmatprep.subr.mxu0 0.0
      %3102 = vmatpush1.msra.mxu0 0.0
      %3103 = vmatprep.subr.mxu0 0.0
      %3104 = vmatpush1.msra.mxu0 0.0
      %3105 = vmatprep.subr.mxu0 0.0
      %3106 = vmatpush1.msra.mxu0 0.0
      %3107 = vmatprep.mubr.f32.mxu0 0.0
      %3108 = vmatmul.mubr.f32.gmra.mrb[0].mxu0 %v2948
      %v3109 = vpop.f32.mrb[0].mxu0
      %v3110 = vadd.f32 0.0, %v3109
      %v3111 = vpop.f32.mrb[0].mxu0
      %3112 = vmatprep.mubr.f32.mxu0 0.0
      %3113 = vmatmul.mubr.f32.gmra.mrb[0].mxu0 %v2951
      %v3114 = vpop.f32.mrb[0].mxu0
      %v3115 = vadd.f32 0.0, %v3114
      %v3116 = vpop.f32.mrb[0].mxu0
      %3117 = vmatprep.mubr.f32.mxu0 0.0
      %3118 = vmatmul.mubr.f32.gmra.mrb[0].mxu0 %v2954
      %v3119 = vpop.f32.mrb[0].mxu0
      %v3120 = vadd.f32 0.0, %v3119
      %v3121 = vpop.f32.mrb[0].mxu0
      %3122 = vmatprep.mubr.f32.mxu0 0.0
      %3123 = vmatmul.mubr.f32.gmra.mrb[0].mxu0 %v2957
      %v3124 = vpop.f32.mrb[0].mxu0
      %v3125 = vadd.f32 0.0, %v3124
      %v3126 = vpop.f32.mrb[0].mxu0
      %3127 = vmatprep.mubr.f32.mxu0 0.0
      %3128 = vmatmul.mubr.f32.gmra.mrb[0].mxu0 %v2960
      %v3129 = vpop.f32.mrb[0].mxu0
      %v3130 = vadd.f32 0.0, %v3129
      %v3131 = vpop.f32.mrb[0].mxu0
      %3132 = vmatprep.mubr.f32.mxu0 0.0
      %3133 = vmatmul.mubr.f32.gmra.mrb[0].mxu0 %v2963
      %v3134 = vpop.f32.mrb[0].mxu0
      %v3135 = vadd.f32 0.0, %v3134
      %v3136 = vpop.f32.mrb[0].mxu0
      %3137 = vmatprep.mubr.f32.mxu0 0.0
      %3138 = vmatmul.mubr.f32.gmra.mrb[0].mxu0 %v2966
      %v3139 = vpop.f32.mrb[0].mxu0
      %v3140 = vadd.f32 0.0, %v3139
      %v3141 = vpop.f32.mrb[0].mxu0
      %3142 = vmatprep.mubr.f32.mxu0 0.0
      %3143 = vmatmul.mubr.f32.gmra.mrb[0].mxu0 %v2969
      %v3144 = vpop.f32.mrb[0].mxu0
      %v3145 = vadd.f32 0.0, %v3144
      %v3146 = vpop.f32.mrb[0].mxu0
      %3147 = vmatprep.mubr.f32.mxu0 0.0
      %3148 = vmatmul.mubr.f32.gmra.mrb[0].mxu0 %v2972
      %v3149 = vpop.f32.mrb[0].mxu0
      %v3150 = vadd.f32 0.0, %v3149
      %v3151 = vpop.f32.mrb[0].mxu0
      %3152 = vmatprep.mubr.f32.mxu0 0.0
      %3153 = vmatmul.mubr.f32.gmra.mrb[0].mxu0 %v2975
      %v3154 = vpop.f32.mrb[0].mxu0
      %v3155 = vadd.f32 0.0, %v3154
      %v3156 = vpop.f32.mrb[0].mxu0
      %3157 = vmatprep.mubr.f32.mxu0 0.0
      %3158 = vmatmul.mubr.f32.gmra.mrb[0].mxu0 %v2978
      %v3159 = vpop.f32.mrb[0].mxu0
      %v3160 = vadd.f32 0.0, %v3159
      %v3161 = vpop.f32.mrb[0].mxu0
      %3162 = vmatprep.mubr.f32.mxu0 0.0
      %3163 = vmatmul.mubr.f32.gmra.mrb[0].mxu0 %v2981
      %v3164 = vpop.f32.mrb[0].mxu0
      %v3165 = vadd.f32 0.0, %v3164
      %v3166 = vpop.f32.mrb[0].mxu0
      %3167 = vmatprep.mubr.f32.mxu0 0.0
      %3168 = vmatmul.mubr.f32.gmra.mrb[0].mxu0 %v2984
      %v3169 = vpop.f32.mrb[0].mxu0
      %v3170 = vadd.f32 0.0, %v3169
      %v3171 = vpop.f32.mrb[0].mxu0
      %3172 = vmatprep.mubr.f32.mxu0 0.0
      %3173 = vmatmul.mubr.f32.gmra.mrb[0].mxu0 %v2987
      %v3174 = vpop.f32.mrb[0].mxu0
      %v3175 = vadd.f32 0.0, %v3174
      %v3176 = vpop.f32.mrb[0].mxu0
      %3177 = vmatprep.mubr.f32.mxu0 0.0
      %3178 = vmatmul.mubr.f32.gmra.mrb[0].mxu0 %v2990
      %v3179 = vpop.f32.mrb[0].mxu0
      %v3180 = vadd.f32 0.0, %v3179
      %v3181 = vpop.f32.mrb[0].mxu0
      %3182 = vmatprep.mubr.f32.mxu0 0.0
      %3183 = vmatmul.mubr.f32.gmra.mrb[0].mxu0 %v2993
      %v3184 = vpop.f32.mrb[0].mxu0
      %v3185 = vadd.f32 0.0, %v3184
      %v3186 = vpop.f32.mrb[0].mxu0
      %3187 = vmatprep.mubr.f32.mxu0 0.0
      %3188 = vmatmul.mubr.f32.gmra.mrb[0].mxu0 %v2996
      %v3189 = vpop.f32.mrb[0].mxu0
      %v3190 = vadd.f32 0.0, %v3189
      %v3191 = vpop.f32.mrb[0].mxu0
      %3192 = vmatprep.mubr.f32.mxu0 0.0
      %3193 = vmatmul.mubr.f32.gmra.mrb[0].mxu0 %v2999
      %v3194 = vpop.f32.mrb[0].mxu0
      %v3195 = vadd.f32 0.0, %v3194
      %v3196 = vpop.f32.mrb[0].mxu0
      %3197 = vmatprep.mubr.f32.mxu0 0.0
      %3198 = vmatmul.mubr.f32.gmra.mrb[0].mxu0 %v3002
      %v3199 = vpop.f32.mrb[0].mxu0
      %v3200 = vadd.f32 0.0, %v3199
      %v3201 = vpop.f32.mrb[0].mxu0
      %3202 = vmatprep.mubr.f32.mxu0 0.0
      %3203 = vmatmul.mubr.f32.gmra.mrb[0].mxu0 %v3005
      %v3204 = vpop.f32.mrb[0].mxu0
      %v3205 = vadd.f32 0.0, %v3204
      %v3206 = vpop.f32.mrb[0].mxu0
      %3207 = vmatprep.mubr.f32.mxu0 0.0
      %3208 = vmatmul.mubr.f32.gmra.mrb[0].mxu0 %v3008
      %v3209 = vpop.f32.mrb[0].mxu0
      %v3210 = vadd.f32 0.0, %v3209
      %v3211 = vpop.f32.mrb[0].mxu0
      %3212 = vmatprep.mubr.f32.mxu0 0.0
      %3213 = vmatmul.mubr.f32.gmra.mrb[0].mxu0 %v3011
      %v3214 = vpop.f32.mrb[0].mxu0
      %v3215 = vadd.f32 0.0, %v3214
      %v3216 = vpop.f32.mrb[0].mxu0
      %3217 = vmatprep.mubr.f32.mxu0 0.0
      %3218 = vmatmul.mubr.f32.gmra.mrb[0].mxu0 %v3014
      %v3219 = vpop.f32.mrb[0].mxu0
      %v3220 = vadd.f32 0.0, %v3219
      %v3221 = vpop.f32.mrb[0].mxu0
      %3222 = vmatprep.mubr.f32.mxu0 0.0
      %3223 = vmatmul.mubr.f32.gmra.mrb[0].mxu0 %v3017
      %v3224 = vpop.f32.mrb[0].mxu0
      %v3225 = vadd.f32 0.0, %v3224
      %v3226 = vpop.f32.mrb[0].mxu0
      %3227 = vmatprep.mubr.f32.mxu0 0.0
      %3228 = vmatmul.mubr.f32.gmra.mrb[0].mxu0 %v3020
      %v3229 = vpop.f32.mrb[0].mxu0
      %v3230 = vadd.f32 0.0, %v3229
      %v3231 = vpop.f32.mrb[0].mxu0
      %3232 = vmatprep.mubr.f32.mxu0 0.0
      %3233 = vmatmul.mubr.f32.gmra.mrb[0].mxu0 %v3023
      %v3234 = vpop.f32.mrb[0].mxu0
      %v3235 = vadd.f32 0.0, %v3234
      %v3236 = vpop.f32.mrb[0].mxu0
      %3237 = vmatprep.mubr.f32.mxu0 0.0
      %3238 = vmatmul.mubr.f32.gmra.mrb[0].mxu0 %v3026
      %v3239 = vpop.f32.mrb[0].mxu0
      %v3240 = vadd.f32 0.0, %v3239
      %v3241 = vpop.f32.mrb[0].mxu0
      %3242 = vmatprep.mubr.f32.mxu0 0.0
      %3243 = vmatmul.mubr.f32.gmra.mrb[0].mxu0 %v3029
      %v3244 = vpop.f32.mrb[0].mxu0
      %v3245 = vadd.f32 0.0, %v3244
      %v3246 = vpop.f32.mrb[0].mxu0
      %3247 = vmatprep.mubr.f32.mxu0 0.0
      %3248 = vmatmul.mubr.f32.gmra.mrb[0].mxu0 %v3032
      %v3249 = vpop.f32.mrb[0].mxu0
      %v3250 = vadd.f32 0.0, %v3249
      %v3251 = vpop.f32.mrb[0].mxu0
      %3252 = vmatprep.mubr.f32.mxu0 0.0
      %3253 = vmatmul.mubr.f32.gmra.mrb[0].mxu0 %v3035
      %v3254 = vpop.f32.mrb[0].mxu0
      %v3255 = vadd.f32 0.0, %v3254
      %v3256 = vpop.f32.mrb[0].mxu0
      %3257 = vmatprep.mubr.f32.mxu0 0.0
      %3258 = vmatmul.mubr.f32.gmra.mrb[0].mxu0 %v3038
      %v3259 = vpop.f32.mrb[0].mxu0
      %v3260 = vadd.f32 0.0, %v3259
      %v3261 = vpop.f32.mrb[0].mxu0
      %3262 = vmatprep.mubr.f32.mxu0 0.0
      %3263 = vmatmul.mubr.f32.gmra.mrb[0].mxu0 %v3041
      %v3264 = vpop.f32.mrb[0].mxu0
      %v3265 = vadd.f32 0.0, %v3264
      %v3266 = vpop.f32.mrb[0].mxu0
      %3267 = vdwg.mxu0
      %v3268 = vadd.f32 %v2878, %v3110
      %v3269 = vadd.f32 %v2879, %v3115
      %v3270 = vadd.f32 %v2880, %v3120
      %v3271 = vadd.f32 %v2881, %v3125
      %v3272 = vadd.f32 %v2882, %v3130
      %v3273 = vadd.f32 %v2883, %v3135
      %v3274 = vadd.f32 %v2884, %v3140
      %v3275 = vadd.f32 %v2885, %v3145
      %v3276 = vadd.f32 %v2886, %v3150
      %v3277 = vadd.f32 %v2887, %v3155
      %v3278 = vadd.f32 %v2888, %v3160
      %v3279 = vadd.f32 %v2889, %v3165
      %v3280 = vadd.f32 %v2890, %v3170
      %v3281 = vadd.f32 %v2891, %v3175
      %v3282 = vadd.f32 %v2892, %v3180
      %v3283 = vadd.f32 %v2893, %v3185
      %v3284 = vadd.f32 %v2894, %v3190
      %v3285 = vadd.f32 %v2895, %v3195
      %v3286 = vadd.f32 %v2896, %v3200
      %v3287 = vadd.f32 %v2897, %v3205
      %v3288 = vadd.f32 %v2898, %v3210
      %v3289 = vadd.f32 %v2899, %v3215
      %v3290 = vadd.f32 %v2900, %v3220
      %v3291 = vadd.f32 %v2901, %v3225
      %v3292 = vadd.f32 %v2902, %v3230
      %v3293 = vadd.f32 %v2903, %v3235
      %v3294 = vadd.f32 %v2904, %v3240
      %v3295 = vadd.f32 %v2905, %v3245
      %v3296 = vadd.f32 %v2906, %v3250
      %v3297 = vadd.f32 %v2907, %v3255
      %v3298 = vadd.f32 %v2908, %v3260
      %v3299 = vadd.f32 %v2909, %v3265
      %v3300 = vld [vmem:[%s2519 + $0x2] sm:$0xff]
      %v3301 = vld [vmem:[%s2519 + $0xa] sm:$0xff]
      %v3302 = vld [vmem:[%s2519 + $0x1a] sm:$0xff]
      %v3303 = vld [vmem:[%s2519 + $0x22] sm:$0xff]
      %v3304 = vld [vmem:[%s2519 + $0x32] sm:$0xff]
      %v3305 = vld [vmem:[%s2519 + $0x3a] sm:$0xff]
      %v3306 = vld [vmem:[%s2519 + $0x4a] sm:$0xff]
      %v3307 = vld [vmem:[%s2519 + $0x52] sm:$0xff]
      %v3308 = vld [vmem:[%s2519 + $0x62] sm:$0xff]
      %v3309 = vld [vmem:[%s2519 + $0x6a] sm:$0xff]
      %v3310 = vld [vmem:[%s2519 + $0x7a] sm:$0xff]
      %v3311 = vld [vmem:[%s2519 + $0x82] sm:$0xff]
      %v3312 = vld [vmem:[%s2519 + $0x92] sm:$0xff]
      %v3313 = vld [vmem:[%s2519 + $0x9a] sm:$0xff]
      %v3314 = vld [vmem:[%s2519 + $0xaa] sm:$0xff]
      %v3315 = vld [vmem:[%s2519 + $0xb2] sm:$0xff]
      %v3316 = vld [vmem:[%s2519 + $0xc2] sm:$0xff]
      %v3317 = vld [vmem:[%s2519 + $0xca] sm:$0xff]
      %v3318 = vld [vmem:[%s2519 + $0xda] sm:$0xff]
      %v3319 = vld [vmem:[%s2519 + $0xe2] sm:$0xff]
      %v3320 = vld [vmem:[%s2519 + $0xf2] sm:$0xff]
      %v3321 = vld [vmem:[%s2519 + $0xfa] sm:$0xff]
      %v3322 = vld [vmem:[%s2519 + $0x10a] sm:$0xff]
      %v3323 = vld [vmem:[%s2519 + $0x112] sm:$0xff]
      %v3324 = vld [vmem:[%s2519 + $0x122] sm:$0xff]
      %v3325 = vld [vmem:[%s2519 + $0x12a] sm:$0xff]
      %v3326 = vld [vmem:[%s2519 + $0x13a] sm:$0xff]
      %v3327 = vld [vmem:[%s2519 + $0x142] sm:$0xff]
      %v3328 = vld [vmem:[%s2519 + $0x152] sm:$0xff]
      %v3329 = vld [vmem:[%s2519 + $0x15a] sm:$0xff]
      %v3330 = vld [vmem:[%s2519 + $0x16a] sm:$0xff]
      %v3331 = vld [vmem:[%s2519 + $0x172] sm:$0xff]
      %s3332 = scalar_lea.vmem %s1, 256
      %v3333 = vld [vmem:[%s3332] sm:$0xff]
      %v3334 = vld [vmem:[%s3332 + $0x8] sm:$0xff]
      %v3335 = vld [vmem:[%s3332 + $0x10] sm:$0xff]
      %v3336 = vld [vmem:[%s3332 + $0x18] sm:$0xff]
      %v3338 = vsel %vm315, %v3300, 0
      %v3341 = vsel %vm315, %v3301, 0
      %v3344 = vsel %vm315, %v3302, 0
      %v3347 = vsel %vm315, %v3303, 0
      %v3350 = vsel %vm315, %v3304, 0
      %v3353 = vsel %vm315, %v3305, 0
      %v3356 = vsel %vm315, %v3306, 0
      %v3359 = vsel %vm315, %v3307, 0
      %v3362 = vsel %vm315, %v3308, 0
      %v3365 = vsel %vm315, %v3309, 0
      %v3368 = vsel %vm315, %v3310, 0
      %v3371 = vsel %vm315, %v3311, 0
      %v3374 = vsel %vm315, %v3312, 0
      %v3377 = vsel %vm315, %v3313, 0
      %v3380 = vsel %vm315, %v3314, 0
      %v3383 = vsel %vm315, %v3315, 0
      %v3386 = vsel %vm315, %v3316, 0
      %v3389 = vsel %vm315, %v3317, 0
      %v3392 = vsel %vm315, %v3318, 0
      %v3395 = vsel %vm315, %v3319, 0
      %v3398 = vsel %vm315, %v3320, 0
      %v3401 = vsel %vm315, %v3321, 0
      %v3404 = vsel %vm315, %v3322, 0
      %v3407 = vsel %vm315, %v3323, 0
      %v3410 = vsel %vm315, %v3324, 0
      %v3413 = vsel %vm315, %v3325, 0
      %v3416 = vsel %vm315, %v3326, 0
      %v3419 = vsel %vm315, %v3327, 0
      %v3422 = vsel %vm315, %v3328, 0
      %v3425 = vsel %vm315, %v3329, 0
      %v3428 = vsel %vm315, %v3330, 0
      %v3431 = vsel %vm315, %v3331, 0
      %3433 = vmatprep.subr.mxu0 0.0
      %3434 = vmatpush1.msra.mxu0 %v3333
      %3435 = vmatprep.subr.mxu0 0.0
      %3436 = vmatpush1.msra.mxu0 %v3334
      %3437 = vmatprep.subr.mxu0 0.0
      %3438 = vmatpush1.msra.mxu0 %v3335
      %3439 = vmatprep.subr.mxu0 0.0
      %3440 = vmatpush1.msra.mxu0 %v3336
      %3441 = vmatprep.subr.mxu0 0.0
      %3442 = vmatpush1.msra.mxu0 0.0
      %3443 = vmatprep.subr.mxu0 0.0
      %3444 = vmatpush1.msra.mxu0 0.0
      %3445 = vmatprep.subr.mxu0 0.0
      %3446 = vmatpush1.msra.mxu0 0.0
      %3447 = vmatprep.subr.mxu0 0.0
      %3448 = vmatpush1.msra.mxu0 0.0
      %3449 = vmatprep.subr.mxu0 0.0
      %3450 = vmatpush1.msra.mxu0 0.0
      %3451 = vmatprep.subr.mxu0 0.0
      %3452 = vmatpush1.msra.mxu0 0.0
      %3453 = vmatprep.subr.mxu0 0.0
      %3454 = vmatpush1.msra.mxu0 0.0
      %3455 = vmatprep.subr.mxu0 0.0
      %3456 = vmatpush1.msra.mxu0 0.0
      %3457 = vmatprep.subr.mxu0 0.0
      %3458 = vmatpush1.msra.mxu0 0.0
      %3459 = vmatprep.subr.mxu0 0.0
      %3460 = vmatpush1.msra.mxu0 0.0
      %3461 = vmatprep.subr.mxu0 0.0
      %3462 = vmatpush1.msra.mxu0 0.0
      %3463 = vmatprep.subr.mxu0 0.0
      %3464 = vmatpush1.msra.mxu0 0.0
      %3465 = vmatprep.subr.mxu0 0.0
      %3466 = vmatpush1.msra.mxu0 0.0
      %3467 = vmatprep.subr.mxu0 0.0
      %3468 = vmatpush1.msra.mxu0 0.0
      %3469 = vmatprep.subr.mxu0 0.0
      %3470 = vmatpush1.msra.mxu0 0.0
      %3471 = vmatprep.subr.mxu0 0.0
      %3472 = vmatpush1.msra.mxu0 0.0
      %3473 = vmatprep.subr.mxu0 0.0
      %3474 = vmatpush1.msra.mxu0 0.0
      %3475 = vmatprep.subr.mxu0 0.0
      %3476 = vmatpush1.msra.mxu0 0.0
      %3477 = vmatprep.subr.mxu0 0.0
      %3478 = vmatpush1.msra.mxu0 0.0
      %3479 = vmatprep.subr.mxu0 0.0
      %3480 = vmatpush1.msra.mxu0 0.0
      %3481 = vmatprep.subr.mxu0 0.0
      %3482 = vmatpush1.msra.mxu0 0.0
      %3483 = vmatprep.subr.mxu0 0.0
      %3484 = vmatpush1.msra.mxu0 0.0
      %3485 = vmatprep.subr.mxu0 0.0
      %3486 = vmatpush1.msra.mxu0 0.0
      %3487 = vmatprep.subr.mxu0 0.0
      %3488 = vmatpush1.msra.mxu0 0.0
      %3489 = vmatprep.subr.mxu0 0.0
      %3490 = vmatpush1.msra.mxu0 0.0
      %3491 = vmatprep.subr.mxu0 0.0
      %3492 = vmatpush1.msra.mxu0 0.0
      %3493 = vmatprep.subr.mxu0 0.0
      %3494 = vmatpush1.msra.mxu0 0.0
      %3495 = vmatprep.subr.mxu0 0.0
      %3496 = vmatpush1.msra.mxu0 0.0
      %3497 = vmatprep.mubr.f32.mxu0 0.0
      %3498 = vmatmul.mubr.f32.gmra.mrb[0].mxu0 %v3338
      %v3499 = vpop.f32.mrb[0].mxu0
      %v3500 = vadd.f32 0.0, %v3499
      %v3501 = vpop.f32.mrb[0].mxu0
      %3502 = vmatprep.mubr.f32.mxu0 0.0
      %3503 = vmatmul.mubr.f32.gmra.mrb[0].mxu0 %v3341
      %v3504 = vpop.f32.mrb[0].mxu0
      %v3505 = vadd.f32 0.0, %v3504
      %v3506 = vpop.f32.mrb[0].mxu0
      %3507 = vmatprep.mubr.f32.mxu0 0.0
      %3508 = vmatmul.mubr.f32.gmra.mrb[0].mxu0 %v3344
      %v3509 = vpop.f32.mrb[0].mxu0
      %v3510 = vadd.f32 0.0, %v3509
      %v3511 = vpop.f32.mrb[0].mxu0
      %3512 = vmatprep.mubr.f32.mxu0 0.0
      %3513 = vmatmul.mubr.f32.gmra.mrb[0].mxu0 %v3347
      %v3514 = vpop.f32.mrb[0].mxu0
      %v3515 = vadd.f32 0.0, %v3514
      %v3516 = vpop.f32.mrb[0].mxu0
      %3517 = vmatprep.mubr.f32.mxu0 0.0
      %3518 = vmatmul.mubr.f32.gmra.mrb[0].mxu0 %v3350
      %v3519 = vpop.f32.mrb[0].mxu0
      %v3520 = vadd.f32 0.0, %v3519
      %v3521 = vpop.f32.mrb[0].mxu0
      %3522 = vmatprep.mubr.f32.mxu0 0.0
      %3523 = vmatmul.mubr.f32.gmra.mrb[0].mxu0 %v3353
      %v3524 = vpop.f32.mrb[0].mxu0
      %v3525 = vadd.f32 0.0, %v3524
      %v3526 = vpop.f32.mrb[0].mxu0
      %3527 = vmatprep.mubr.f32.mxu0 0.0
      %3528 = vmatmul.mubr.f32.gmra.mrb[0].mxu0 %v3356
      %v3529 = vpop.f32.mrb[0].mxu0
      %v3530 = vadd.f32 0.0, %v3529
      %v3531 = vpop.f32.mrb[0].mxu0
      %3532 = vmatprep.mubr.f32.mxu0 0.0
      %3533 = vmatmul.mubr.f32.gmra.mrb[0].mxu0 %v3359
      %v3534 = vpop.f32.mrb[0].mxu0
      %v3535 = vadd.f32 0.0, %v3534
      %v3536 = vpop.f32.mrb[0].mxu0
      %3537 = vmatprep.mubr.f32.mxu0 0.0
      %3538 = vmatmul.mubr.f32.gmra.mrb[0].mxu0 %v3362
      %v3539 = vpop.f32.mrb[0].mxu0
      %v3540 = vadd.f32 0.0, %v3539
      %v3541 = vpop.f32.mrb[0].mxu0
      %3542 = vmatprep.mubr.f32.mxu0 0.0
      %3543 = vmatmul.mubr.f32.gmra.mrb[0].mxu0 %v3365
      %v3544 = vpop.f32.mrb[0].mxu0
      %v3545 = vadd.f32 0.0, %v3544
      %v3546 = vpop.f32.mrb[0].mxu0
      %3547 = vmatprep.mubr.f32.mxu0 0.0
      %3548 = vmatmul.mubr.f32.gmra.mrb[0].mxu0 %v3368
      %v3549 = vpop.f32.mrb[0].mxu0
      %v3550 = vadd.f32 0.0, %v3549
      %v3551 = vpop.f32.mrb[0].mxu0
      %3552 = vmatprep.mubr.f32.mxu0 0.0
      %3553 = vmatmul.mubr.f32.gmra.mrb[0].mxu0 %v3371
      %v3554 = vpop.f32.mrb[0].mxu0
      %v3555 = vadd.f32 0.0, %v3554
      %v3556 = vpop.f32.mrb[0].mxu0
      %3557 = vmatprep.mubr.f32.mxu0 0.0
      %3558 = vmatmul.mubr.f32.gmra.mrb[0].mxu0 %v3374
      %v3559 = vpop.f32.mrb[0].mxu0
      %v3560 = vadd.f32 0.0, %v3559
      %v3561 = vpop.f32.mrb[0].mxu0
      %3562 = vmatprep.mubr.f32.mxu0 0.0
      %3563 = vmatmul.mubr.f32.gmra.mrb[0].mxu0 %v3377
      %v3564 = vpop.f32.mrb[0].mxu0
      %v3565 = vadd.f32 0.0, %v3564
      %v3566 = vpop.f32.mrb[0].mxu0
      %3567 = vmatprep.mubr.f32.mxu0 0.0
      %3568 = vmatmul.mubr.f32.gmra.mrb[0].mxu0 %v3380
      %v3569 = vpop.f32.mrb[0].mxu0
      %v3570 = vadd.f32 0.0, %v3569
      %v3571 = vpop.f32.mrb[0].mxu0
      %3572 = vmatprep.mubr.f32.mxu0 0.0
      %3573 = vmatmul.mubr.f32.gmra.mrb[0].mxu0 %v3383
      %v3574 = vpop.f32.mrb[0].mxu0
      %v3575 = vadd.f32 0.0, %v3574
      %v3576 = vpop.f32.mrb[0].mxu0
      %3577 = vmatprep.mubr.f32.mxu0 0.0
      %3578 = vmatmul.mubr.f32.gmra.mrb[0].mxu0 %v3386
      %v3579 = vpop.f32.mrb[0].mxu0
      %v3580 = vadd.f32 0.0, %v3579
      %v3581 = vpop.f32.mrb[0].mxu0
      %3582 = vmatprep.mubr.f32.mxu0 0.0
      %3583 = vmatmul.mubr.f32.gmra.mrb[0].mxu0 %v3389
      %v3584 = vpop.f32.mrb[0].mxu0
      %v3585 = vadd.f32 0.0, %v3584
      %v3586 = vpop.f32.mrb[0].mxu0
      %3587 = vmatprep.mubr.f32.mxu0 0.0
      %3588 = vmatmul.mubr.f32.gmra.mrb[0].mxu0 %v3392
      %v3589 = vpop.f32.mrb[0].mxu0
      %v3590 = vadd.f32 0.0, %v3589
      %v3591 = vpop.f32.mrb[0].mxu0
      %3592 = vmatprep.mubr.f32.mxu0 0.0
      %3593 = vmatmul.mubr.f32.gmra.mrb[0].mxu0 %v3395
      %v3594 = vpop.f32.mrb[0].mxu0
      %v3595 = vadd.f32 0.0, %v3594
      %v3596 = vpop.f32.mrb[0].mxu0
      %3597 = vmatprep.mubr.f32.mxu0 0.0
      %3598 = vmatmul.mubr.f32.gmra.mrb[0].mxu0 %v3398
      %v3599 = vpop.f32.mrb[0].mxu0
      %v3600 = vadd.f32 0.0, %v3599
      %v3601 = vpop.f32.mrb[0].mxu0
      %3602 = vmatprep.mubr.f32.mxu0 0.0
      %3603 = vmatmul.mubr.f32.gmra.mrb[0].mxu0 %v3401
      %v3604 = vpop.f32.mrb[0].mxu0
      %v3605 = vadd.f32 0.0, %v3604
      %v3606 = vpop.f32.mrb[0].mxu0
      %3607 = vmatprep.mubr.f32.mxu0 0.0
      %3608 = vmatmul.mubr.f32.gmra.mrb[0].mxu0 %v3404
      %v3609 = vpop.f32.mrb[0].mxu0
      %v3610 = vadd.f32 0.0, %v3609
      %v3611 = vpop.f32.mrb[0].mxu0
      %3612 = vmatprep.mubr.f32.mxu0 0.0
      %3613 = vmatmul.mubr.f32.gmra.mrb[0].mxu0 %v3407
      %v3614 = vpop.f32.mrb[0].mxu0
      %v3615 = vadd.f32 0.0, %v3614
      %v3616 = vpop.f32.mrb[0].mxu0
      %3617 = vmatprep.mubr.f32.mxu0 0.0
      %3618 = vmatmul.mubr.f32.gmra.mrb[0].mxu0 %v3410
      %v3619 = vpop.f32.mrb[0].mxu0
      %v3620 = vadd.f32 0.0, %v3619
      %v3621 = vpop.f32.mrb[0].mxu0
      %3622 = vmatprep.mubr.f32.mxu0 0.0
      %3623 = vmatmul.mubr.f32.gmra.mrb[0].mxu0 %v3413
      %v3624 = vpop.f32.mrb[0].mxu0
      %v3625 = vadd.f32 0.0, %v3624
      %v3626 = vpop.f32.mrb[0].mxu0
      %3627 = vmatprep.mubr.f32.mxu0 0.0
      %3628 = vmatmul.mubr.f32.gmra.mrb[0].mxu0 %v3416
      %v3629 = vpop.f32.mrb[0].mxu0
      %v3630 = vadd.f32 0.0, %v3629
      %v3631 = vpop.f32.mrb[0].mxu0
      %3632 = vmatprep.mubr.f32.mxu0 0.0
      %3633 = vmatmul.mubr.f32.gmra.mrb[0].mxu0 %v3419
      %v3634 = vpop.f32.mrb[0].mxu0
      %v3635 = vadd.f32 0.0, %v3634
      %v3636 = vpop.f32.mrb[0].mxu0
      %3637 = vmatprep.mubr.f32.mxu0 0.0
      %3638 = vmatmul.mubr.f32.gmra.mrb[0].mxu0 %v3422
      %v3639 = vpop.f32.mrb[0].mxu0
      %v3640 = vadd.f32 0.0, %v3639
      %v3641 = vpop.f32.mrb[0].mxu0
      %3642 = vmatprep.mubr.f32.mxu0 0.0
      %3643 = vmatmul.mubr.f32.gmra.mrb[0].mxu0 %v3425
      %v3644 = vpop.f32.mrb[0].mxu0
      %v3645 = vadd.f32 0.0, %v3644
      %v3646 = vpop.f32.mrb[0].mxu0
      %3647 = vmatprep.mubr.f32.mxu0 0.0
      %3648 = vmatmul.mubr.f32.gmra.mrb[0].mxu0 %v3428
      %v3649 = vpop.f32.mrb[0].mxu0
      %v3650 = vadd.f32 0.0, %v3649
      %v3651 = vpop.f32.mrb[0].mxu0
      %3652 = vmatprep.mubr.f32.mxu0 0.0
      %3653 = vmatmul.mubr.f32.gmra.mrb[0].mxu0 %v3431
      %v3654 = vpop.f32.mrb[0].mxu0
      %v3655 = vadd.f32 0.0, %v3654
      %v3656 = vpop.f32.mrb[0].mxu0
      %3657 = vdwg.mxu0
      %v3658 = vadd.f32 %v3268, %v3500
      %v3659 = vadd.f32 %v3269, %v3505
      %v3660 = vadd.f32 %v3270, %v3510
      %v3661 = vadd.f32 %v3271, %v3515
      %v3662 = vadd.f32 %v3272, %v3520
      %v3663 = vadd.f32 %v3273, %v3525
      %v3664 = vadd.f32 %v3274, %v3530
      %v3665 = vadd.f32 %v3275, %v3535
      %v3666 = vadd.f32 %v3276, %v3540
      %v3667 = vadd.f32 %v3277, %v3545
      %v3668 = vadd.f32 %v3278, %v3550
      %v3669 = vadd.f32 %v3279, %v3555
      %v3670 = vadd.f32 %v3280, %v3560
      %v3671 = vadd.f32 %v3281, %v3565
      %v3672 = vadd.f32 %v3282, %v3570
      %v3673 = vadd.f32 %v3283, %v3575
      %v3674 = vadd.f32 %v3284, %v3580
      %v3675 = vadd.f32 %v3285, %v3585
      %v3676 = vadd.f32 %v3286, %v3590
      %v3677 = vadd.f32 %v3287, %v3595
      %v3678 = vadd.f32 %v3288, %v3600
      %v3679 = vadd.f32 %v3289, %v3605
      %v3680 = vadd.f32 %v3290, %v3610
      %v3681 = vadd.f32 %v3291, %v3615
      %v3682 = vadd.f32 %v3292, %v3620
      %v3683 = vadd.f32 %v3293, %v3625
      %v3684 = vadd.f32 %v3294, %v3630
      %v3685 = vadd.f32 %v3295, %v3635
      %v3686 = vadd.f32 %v3296, %v3640
      %v3687 = vadd.f32 %v3297, %v3645
      %v3688 = vadd.f32 %v3298, %v3650
      %v3689 = vadd.f32 %v3299, %v3655
      %v3690 = vld [vmem:[%s2] sm:$0x1]
      %v3692 = vlaneseq
      %v3693 = vshrl.u32 %v3692, 7
      %v3694 = vsub.s32 0, %v3693
      %v3695 = vrot.slane %v3690, %v3694
      %v3697 = vadd.f32 %v3658, %v3695
      %v3698 = vadd.f32 %v3659, %v3695
      %v3699 = vadd.f32 %v3660, %v3695
      %v3700 = vadd.f32 %v3661, %v3695
      %v3701 = vadd.f32 %v3662, %v3695
      %v3702 = vadd.f32 %v3663, %v3695
      %v3703 = vadd.f32 %v3664, %v3695
      %v3704 = vadd.f32 %v3665, %v3695
      %v3705 = vadd.f32 %v3666, %v3695
      %v3706 = vadd.f32 %v3667, %v3695
      %v3707 = vadd.f32 %v3668, %v3695
      %v3708 = vadd.f32 %v3669, %v3695
      %v3709 = vadd.f32 %v3670, %v3695
      %v3710 = vadd.f32 %v3671, %v3695
      %v3711 = vadd.f32 %v3672, %v3695
      %v3712 = vadd.f32 %v3673, %v3695
      %v3713 = vadd.f32 %v3674, %v3695
      %v3714 = vadd.f32 %v3675, %v3695
      %v3715 = vadd.f32 %v3676, %v3695
      %v3716 = vadd.f32 %v3677, %v3695
      %v3717 = vadd.f32 %v3678, %v3695
      %v3718 = vadd.f32 %v3679, %v3695
      %v3719 = vadd.f32 %v3680, %v3695
      %v3720 = vadd.f32 %v3681, %v3695
      %v3721 = vadd.f32 %v3682, %v3695
      %v3722 = vadd.f32 %v3683, %v3695
      %v3723 = vadd.f32 %v3684, %v3695
      %v3724 = vadd.f32 %v3685, %v3695
      %v3725 = vadd.f32 %v3686, %v3695
      %v3726 = vadd.f32 %v3687, %v3695
      %v3727 = vadd.f32 %v3688, %v3695
      %v3728 = vadd.f32 %v3689, %v3695
      %vm3729 = vcmask 523264
      %v3730 = vsel %vm3729, %v3697, 0.0
      %v3731 = vsel %vm3729, %v3698, 0.0
      %v3732 = vadd.f32 %v3730, %v3731
      %v3733 = vsel %vm3729, %v3699, 0.0
      %v3734 = vadd.f32 %v3732, %v3733
      %v3735 = vsel %vm3729, %v3700, 0.0
      %v3736 = vadd.f32 %v3734, %v3735
      %v3737 = vsel %vm3729, %v3701, 0.0
      %v3738 = vadd.f32 %v3736, %v3737
      %v3739 = vsel %vm3729, %v3702, 0.0
      %v3740 = vadd.f32 %v3738, %v3739
      %v3741 = vsel %vm3729, %v3703, 0.0
      %v3742 = vadd.f32 %v3740, %v3741
      %v3743 = vsel %vm3729, %v3704, 0.0
      %v3744 = vadd.f32 %v3742, %v3743
      %v3745 = vsel %vm3729, %v3705, 0.0
      %v3746 = vadd.f32 %v3744, %v3745
      %v3747 = vsel %vm3729, %v3706, 0.0
      %v3748 = vadd.f32 %v3746, %v3747
      %v3749 = vsel %vm3729, %v3707, 0.0
      %v3750 = vadd.f32 %v3748, %v3749
      %v3751 = vsel %vm3729, %v3708, 0.0
      %v3752 = vadd.f32 %v3750, %v3751
      %v3753 = vsel %vm3729, %v3709, 0.0
      %v3754 = vadd.f32 %v3752, %v3753
      %v3755 = vsel %vm3729, %v3710, 0.0
      %v3756 = vadd.f32 %v3754, %v3755
      %v3757 = vsel %vm3729, %v3711, 0.0
      %v3758 = vadd.f32 %v3756, %v3757
      %v3759 = vsel %vm3729, %v3712, 0.0
      %v3760 = vadd.f32 %v3758, %v3759
      %v3761 = vsel %vm3729, %v3713, 0.0
      %v3762 = vadd.f32 %v3760, %v3761
      %v3763 = vsel %vm3729, %v3714, 0.0
      %v3764 = vadd.f32 %v3762, %v3763
      %v3765 = vsel %vm3729, %v3715, 0.0
      %v3766 = vadd.f32 %v3764, %v3765
      %v3767 = vsel %vm3729, %v3716, 0.0
      %v3768 = vadd.f32 %v3766, %v3767
      %v3769 = vsel %vm3729, %v3717, 0.0
      %v3770 = vadd.f32 %v3768, %v3769
      %v3771 = vsel %vm3729, %v3718, 0.0
      %v3772 = vadd.f32 %v3770, %v3771
      %v3773 = vsel %vm3729, %v3719, 0.0
      %v3774 = vadd.f32 %v3772, %v3773
      %v3775 = vsel %vm3729, %v3720, 0.0
      %v3776 = vadd.f32 %v3774, %v3775
      %v3777 = vsel %vm3729, %v3721, 0.0
      %v3778 = vadd.f32 %v3776, %v3777
      %v3779 = vsel %vm3729, %v3722, 0.0
      %v3780 = vadd.f32 %v3778, %v3779
      %v3781 = vsel %vm3729, %v3723, 0.0
      %v3782 = vadd.f32 %v3780, %v3781
      %v3783 = vsel %vm3729, %v3724, 0.0
      %v3784 = vadd.f32 %v3782, %v3783
      %v3785 = vsel %vm3729, %v3725, 0.0
      %v3786 = vadd.f32 %v3784, %v3785
      %v3787 = vsel %vm3729, %v3726, 0.0
      %v3788 = vadd.f32 %v3786, %v3787
      %v3789 = vsel %vm3729, %v3727, 0.0
      %v3790 = vadd.f32 %v3788, %v3789
      %v3791 = vsel %vm3729, %v3728, 0.0
      %v3792 = vadd.f32 %v3790, %v3791
      %v3793 = vrot.slane %v3792, 4
      %v3794 = vadd.f32 %v3792, %v3793
      %v3795 = vrot.slane %v3794, 2
      %v3796 = vadd.f32 %v3794, %v3795
      %v3797 = vrot.slane %v3796, 1
      %v3798 = vadd.f32 %v3796, %v3797
      %vm3799 = vcmask 516096
      %3800 = vst.msk [vmem:[%s238] sm:$0x1] %vm3799, %v3798
      %v3801 = vmul.f32 %v3697, %v3697
      %v3802 = vmul.f32 %v3698, %v3698
      %v3803 = vmul.f32 %v3699, %v3699
      %v3804 = vmul.f32 %v3700, %v3700
      %v3805 = vmul.f32 %v3701, %v3701
      %v3806 = vmul.f32 %v3702, %v3702
      %v3807 = vmul.f32 %v3703, %v3703
      %v3808 = vmul.f32 %v3704, %v3704
      %v3809 = vmul.f32 %v3705, %v3705
      %v3810 = vmul.f32 %v3706, %v3706
      %v3811 = vmul.f32 %v3707, %v3707
      %v3812 = vmul.f32 %v3708, %v3708
      %v3813 = vmul.f32 %v3709, %v3709
      %v3814 = vmul.f32 %v3710, %v3710
      %v3815 = vmul.f32 %v3711, %v3711
      %v3816 = vmul.f32 %v3712, %v3712
      %v3817 = vmul.f32 %v3713, %v3713
      %v3818 = vmul.f32 %v3714, %v3714
      %v3819 = vmul.f32 %v3715, %v3715
      %v3820 = vmul.f32 %v3716, %v3716
      %v3821 = vmul.f32 %v3717, %v3717
      %v3822 = vmul.f32 %v3718, %v3718
      %v3823 = vmul.f32 %v3719, %v3719
      %v3824 = vmul.f32 %v3720, %v3720
      %v3825 = vmul.f32 %v3721, %v3721
      %v3826 = vmul.f32 %v3722, %v3722
      %v3827 = vmul.f32 %v3723, %v3723
      %v3828 = vmul.f32 %v3724, %v3724
      %v3829 = vmul.f32 %v3725, %v3725
      %v3830 = vmul.f32 %v3726, %v3726
      %v3831 = vmul.f32 %v3727, %v3727
      %v3832 = vmul.f32 %v3728, %v3728
      %v3833 = vsel %vm3729, %v3801, 0.0
      %v3834 = vsel %vm3729, %v3802, 0.0
      %v3835 = vadd.f32 %v3833, %v3834
      %v3836 = vsel %vm3729, %v3803, 0.0
      %v3837 = vadd.f32 %v3835, %v3836
      %v3838 = vsel %vm3729, %v3804, 0.0
      %v3839 = vadd.f32 %v3837, %v3838
      %v3840 = vsel %vm3729, %v3805, 0.0
      %v3841 = vadd.f32 %v3839, %v3840
      %v3842 = vsel %vm3729, %v3806, 0.0
      %v3843 = vadd.f32 %v3841, %v3842
      %v3844 = vsel %vm3729, %v3807, 0.0
      %v3845 = vadd.f32 %v3843, %v3844
      %v3846 = vsel %vm3729, %v3808, 0.0
      %v3847 = vadd.f32 %v3845, %v3846
      %v3848 = vsel %vm3729, %v3809, 0.0
      %v3849 = vadd.f32 %v3847, %v3848
      %v3850 = vsel %vm3729, %v3810, 0.0
      %v3851 = vadd.f32 %v3849, %v3850
      %v3852 = vsel %vm3729, %v3811, 0.0
      %v3853 = vadd.f32 %v3851, %v3852
      %v3854 = vsel %vm3729, %v3812, 0.0
      %v3855 = vadd.f32 %v3853, %v3854
      %v3856 = vsel %vm3729, %v3813, 0.0
      %v3857 = vadd.f32 %v3855, %v3856
      %v3858 = vsel %vm3729, %v3814, 0.0
      %v3859 = vadd.f32 %v3857, %v3858
      %v3860 = vsel %vm3729, %v3815, 0.0
      %v3861 = vadd.f32 %v3859, %v3860
      %v3862 = vsel %vm3729, %v3816, 0.0
      %v3863 = vadd.f32 %v3861, %v3862
      %v3864 = vsel %vm3729, %v3817, 0.0
      %v3865 = vadd.f32 %v3863, %v3864
      %v3866 = vsel %vm3729, %v3818, 0.0
      %v3867 = vadd.f32 %v3865, %v3866
      %v3868 = vsel %vm3729, %v3819, 0.0
      %v3869 = vadd.f32 %v3867, %v3868
      %v3870 = vsel %vm3729, %v3820, 0.0
      %v3871 = vadd.f32 %v3869, %v3870
      %v3872 = vsel %vm3729, %v3821, 0.0
      %v3873 = vadd.f32 %v3871, %v3872
      %v3874 = vsel %vm3729, %v3822, 0.0
      %v3875 = vadd.f32 %v3873, %v3874
      %v3876 = vsel %vm3729, %v3823, 0.0
      %v3877 = vadd.f32 %v3875, %v3876
      %v3878 = vsel %vm3729, %v3824, 0.0
      %v3879 = vadd.f32 %v3877, %v3878
      %v3880 = vsel %vm3729, %v3825, 0.0
      %v3881 = vadd.f32 %v3879, %v3880
      %v3882 = vsel %vm3729, %v3826, 0.0
      %v3883 = vadd.f32 %v3881, %v3882
      %v3884 = vsel %vm3729, %v3827, 0.0
      %v3885 = vadd.f32 %v3883, %v3884
      %v3886 = vsel %vm3729, %v3828, 0.0
      %v3887 = vadd.f32 %v3885, %v3886
      %v3888 = vsel %vm3729, %v3829, 0.0
      %v3889 = vadd.f32 %v3887, %v3888
      %v3890 = vsel %vm3729, %v3830, 0.0
      %v3891 = vadd.f32 %v3889, %v3890
      %v3892 = vsel %vm3729, %v3831, 0.0
      %v3893 = vadd.f32 %v3891, %v3892
      %v3894 = vsel %vm3729, %v3832, 0.0
      %v3895 = vadd.f32 %v3893, %v3894
      %v3896 = vrot.slane %v3895, 4
      %v3897 = vadd.f32 %v3895, %v3896
      %v3898 = vrot.slane %v3897, 2
      %v3899 = vadd.f32 %v3897, %v3898
      %v3900 = vrot.slane %v3899, 1
      %v3901 = vadd.f32 %v3899, %v3900
      %3902 = vst.msk [vmem:[%s241] sm:$0x1] %vm3799, %v3901
      %3903 = vst.msk [vmem:[%s235] sm:$0xff] %vm3729, %v3697
      %3904 = vst.msk [vmem:[%s235 + $0x8] sm:$0xff] %vm3729, %v3698
      %3905 = vst.msk [vmem:[%s235 + $0x10] sm:$0xff] %vm3729, %v3699
      %3906 = vst.msk [vmem:[%s235 + $0x18] sm:$0xff] %vm3729, %v3700
      %3907 = vst.msk [vmem:[%s235 + $0x20] sm:$0xff] %vm3729, %v3701
      %3908 = vst.msk [vmem:[%s235 + $0x28] sm:$0xff] %vm3729, %v3702
      %3909 = vst.msk [vmem:[%s235 + $0x30] sm:$0xff] %vm3729, %v3703
      %3910 = vst.msk [vmem:[%s235 + $0x38] sm:$0xff] %vm3729, %v3704
      %3911 = vst.msk [vmem:[%s235 + $0x40] sm:$0xff] %vm3729, %v3705
      %3912 = vst.msk [vmem:[%s235 + $0x48] sm:$0xff] %vm3729, %v3706
      %3913 = vst.msk [vmem:[%s235 + $0x50] sm:$0xff] %vm3729, %v3707
      %3914 = vst.msk [vmem:[%s235 + $0x58] sm:$0xff] %vm3729, %v3708
      %3915 = vst.msk [vmem:[%s235 + $0x60] sm:$0xff] %vm3729, %v3709
      %3916 = vst.msk [vmem:[%s235 + $0x68] sm:$0xff] %vm3729, %v3710
      %3917 = vst.msk [vmem:[%s235 + $0x70] sm:$0xff] %vm3729, %v3711
      %3918 = vst.msk [vmem:[%s235 + $0x78] sm:$0xff] %vm3729, %v3712
      %3919 = vst.msk [vmem:[%s235 + $0x80] sm:$0xff] %vm3729, %v3713
      %3920 = vst.msk [vmem:[%s235 + $0x88] sm:$0xff] %vm3729, %v3714
      %3921 = vst.msk [vmem:[%s235 + $0x90] sm:$0xff] %vm3729, %v3715
      %3922 = vst.msk [vmem:[%s235 + $0x98] sm:$0xff] %vm3729, %v3716
      %3923 = vst.msk [vmem:[%s235 + $0xa0] sm:$0xff] %vm3729, %v3717
      %3924 = vst.msk [vmem:[%s235 + $0xa8] sm:$0xff] %vm3729, %v3718
      %3925 = vst.msk [vmem:[%s235 + $0xb0] sm:$0xff] %vm3729, %v3719
      %3926 = vst.msk [vmem:[%s235 + $0xb8] sm:$0xff] %vm3729, %v3720
      %3927 = vst.msk [vmem:[%s235 + $0xc0] sm:$0xff] %vm3729, %v3721
      %3928 = vst.msk [vmem:[%s235 + $0xc8] sm:$0xff] %vm3729, %v3722
      %3929 = vst.msk [vmem:[%s235 + $0xd0] sm:$0xff] %vm3729, %v3723
      %3930 = vst.msk [vmem:[%s235 + $0xd8] sm:$0xff] %vm3729, %v3724
      %3931 = vst.msk [vmem:[%s235 + $0xe0] sm:$0xff] %vm3729, %v3725
      %3932 = vst.msk [vmem:[%s235 + $0xe8] sm:$0xff] %vm3729, %v3726
      %3933 = vst.msk [vmem:[%s235 + $0xf0] sm:$0xff] %vm3729, %v3727
      %3934 = vst.msk [vmem:[%s235 + $0xf8] sm:$0xff] %vm3729, %v3728
      %p3935 = scmp.lt.s32.totalorder %s17, 1
      %s3936 = scalar_select %p3935, %s17, 1
      %s3937 = smul.addr %s3936, 32
      %s3938 = smul.addr %s3937, 8
      %s3939 = scalar_lea.vmem %s3, %s3938
      %p3940 = scmp.lt.s32.totalorder %s17, 1
      %s3941 = scalar_select %p3940, %s17, 1
      %s3942 = scalar_lea.vmem %s4, %s3941
      %p3943 = scmp.lt.s32.totalorder %s17, 1
      %s3944 = scalar_select %p3943, %s17, 1
      %s3945 = scalar_lea.vmem %s5, %s3944
      // Predicated region
      $region33: #{conv_bn_relu_forward.2} parent=31 // pred_check
        %p3946 = pneg %p103
      $region34: #{conv_bn_relu_forward.2} parent=31 // pred_check_branch
        %3948 = sbr.rel (%p3946) target = $region36
      $region35: #{conv_bn_relu_forward.2} parent=31 // pred_region
        _
      $region36: #{conv_bn_relu_forward.2} parent=31 // pred_fallthru
        _
      // Predicated region
      $region37: #{conv_bn_relu_forward.2} parent=31 // pred_check
        %p3949 = pneg %p129
      $region38: #{conv_bn_relu_forward.2} parent=31 // pred_check_branch
        %3951 = sbr.rel (%p3949) target = $region40
      $region39: #{conv_bn_relu_forward.2} parent=31 // pred_region
        _
      $region40: #{conv_bn_relu_forward.2} parent=31 // pred_fallthru
        _
      // Predicated region
      $region41: #{conv_bn_relu_forward.2} parent=31 // pred_check
        %p3952 = pneg %p155
      $region42: #{conv_bn_relu_forward.2} parent=31 // pred_check_branch
        %3954 = sbr.rel (%p3952) target = $region44
      $region43: #{conv_bn_relu_forward.2} parent=31 // pred_region
        _
      $region44: #{conv_bn_relu_forward.2} parent=31 // pred_fallthru
        _
    $region32: #{conv_bn_relu_forward.2} parent=5 // pred_fallthru
      _
    %p3955 = scmp.le.s32.totalorder 2, %s12
    // Predicated region
    $region45: #{conv_bn_relu_forward.2} parent=5 // pred_check
      %p3956 = pneg %p3955
    $region46: #{conv_bn_relu_forward.2} parent=5 // pred_check_branch
      %3958 = sbr.rel (%p3956) target = $region48
    $region47: #{conv_bn_relu_forward.2} parent=5 // pred_region
      %s3959 = ssub.s32 %s12, 2
      // Predicated region
      $region49: #{conv_bn_relu_forward.2} parent=47 // pred_check
        %p3960 = pneg %p109
      $region50: #{conv_bn_relu_forward.2} parent=47 // pred_check_branch
        %3962 = sbr.rel (%p3960) target = $region52
      $region51: #{conv_bn_relu_forward.2} parent=47 // pred_region
        %p3963 = scmp.lt.s32.totalorder %s18, 1
        %s3964 = scalar_select %p3963, %s18, 1
        %s3965 = smul.addr %s3964, 32
        %s3966 = smul.addr %s3965, 8
        %s3967 = scalar_lea.vmem %s3, %s3966
      $region52: #{conv_bn_relu_forward.2} parent=47 // pred_fallthru
        _
      // Predicated region
      $region53: #{conv_bn_relu_forward.2} parent=47 // pred_check
        %p3968 = pneg %p135
      $region54: #{conv_bn_relu_forward.2} parent=47 // pred_check_branch
        %3970 = sbr.rel (%p3968) target = $region56
      $region55: #{conv_bn_relu_forward.2} parent=47 // pred_region
        %p3971 = scmp.lt.s32.totalorder %s18, 1
        %s3972 = scalar_select %p3971, %s18, 1
        %s3973 = scalar_lea.vmem %s4, %s3972
      $region56: #{conv_bn_relu_forward.2} parent=47 // pred_fallthru
        _
      // Predicated region
      $region57: #{conv_bn_relu_forward.2} parent=47 // pred_check
        %p3974 = pneg %p161
      $region58: #{conv_bn_relu_forward.2} parent=47 // pred_check_branch
        %3976 = sbr.rel (%p3974) target = $region60
      $region59: #{conv_bn_relu_forward.2} parent=47 // pred_region
        %p3977 = scmp.lt.s32.totalorder %s18, 1
        %s3978 = scalar_select %p3977, %s18, 1
        %s3979 = scalar_lea.vmem %s5, %s3978
      $region60: #{conv_bn_relu_forward.2} parent=47 // pred_fallthru
        _
    $region48: #{conv_bn_relu_forward.2} parent=5 // pred_fallthru
      _
  $region6: #{conv_bn_relu_forward.2} parent=0 // loop_footer
    %s16 = sadd.s32 1, %s12
  $region7: #{conv_bn_relu_forward.2} parent=0 // loop_footer_branch
    %11 = sbr.rel target = $region3
  $region8: #{conv_bn_relu_forward.2} parent=0 // loop_exit
    _

</llo_original>
